<compile_context>
chip_gen: v7x
topology: tpu7x:2x2x1
jax: 0.10.0
libtpu: 0.0.40
codegen_flags: <defaults>
</compile_context>

<pallas_src>
import functools

import numpy as np
import jax
import jax.numpy as jnp
from jax.experimental import pallas as pl
from jax.experimental.pallas import tpu as pltpu


def _paramid_kernel(C,
                    x_ref,                 # (H, W*C)   lane-dense input
                    w1a_ref, b1a_ref,      # (25, W*C), (1, W*C)   dw 5x5 dil2
                    w1b_ref, b1b_ref,      # (49, W*C), (1, W*C)   dw 7x7 dil3
                    w2_ref, b2_ref,        # (9,  W*C), (1, W*C)   dw 3x3
                    sp_ref,                # (19,) SMEM: 2*3*3 gate weights + bias
                    laa_ref, lab_ref,      # (1, W*C) LocalAttention a, b (lane-tiled)
                    paa_ref, pab_ref,      # (1, W*C) ParamidAttention a, b (lane-tiled)
                    o_ref,                 # (H, W*C)
                    xpad_ref,              # (H+8,  (W+8)*C)   input, 4-px zero halo
                    mid_ref,               # (H+18, (W+18)*C)  dw1a out, 9-px zero halo
                    pmax_ref, pmean_ref):  # (H+2,  (W+2)*C)   pooled maps, 1-px halo
    f32 = jnp.float32
    H, WC = o_ref.shape
    W = WC // C

    x = x_ref[...]                                    # (H, WC) -- 2 vregs at demo size

    def fill_halo(ref, pad_rows, pad_px, payload):
        """Write `payload` (H, WC) into the interior of `ref`, zero the halo.

        Done every grid step (cheap in lane-dense layout); zeroing only once
        under program_id(0)==0 would be unsafe with 'parallel' batch semantics
        since each TensorCore owns its own scratch copy."""
        TW = ref.shape[1]
        L = pad_px * C
        ref[0:pad_rows, :] = jnp.zeros((pad_rows, TW), f32)
        ref[pad_rows + H:2 * pad_rows + H, :] = jnp.zeros((pad_rows, TW), f32)
        ref[pad_rows:pad_rows + H, 0:L] = jnp.zeros((H, L), f32)
        ref[pad_rows:pad_rows + H, L + WC:TW] = jnp.zeros((H, TW - L - WC), f32)
        ref[pad_rows:pad_rows + H, L:L + WC] = payload

    # Zero-padded (4 px) copy of the input: feeds the 5x5-dil2 conv, the 3x3
    # conv (reused at offset 3) and the channel-pool lane shifts.
    fill_halo(xpad_ref, 4, 4, x)

    lane_mod = jax.lax.broadcasted_iota(jnp.int32, (H, WC), 1) & (C - 1)
    xbase = 4 * C                                     # lane offset of x inside xpad

    # ---- ChannelPool: per-pixel max & mean over the C lanes of each group ----
    cmax = x
    csum = x
    for d in range(1, C):
        xp_d = xpad_ref[4:4 + H, xbase + d:xbase + d + WC]    # x[h, i + d]
        xm_d = xpad_ref[4:4 + H, xbase - d:xbase - d + WC]    # x[h, i - d]
        fwd_ok = lane_mod < (C - d)      # i and i+d in the same channel group
        bwd_ok = lane_mod >= d           # i and i-d in the same channel group
        cmax = jnp.where(fwd_ok, jnp.maximum(cmax, xp_d), cmax)
        cmax = jnp.where(bwd_ok, jnp.maximum(cmax, xm_d), cmax)
        csum = csum + jnp.where(fwd_ok, xp_d, 0.0) + jnp.where(bwd_ok, xm_d, 0.0)
    cmean = csum * (1.0 / C)

    fill_halo(pmax_ref, 1, 1, cmax)
    fill_halo(pmean_ref, 1, 1, cmean)

    # ---- spatial gate: 3x3 conv (2 -> 1 channel) + bias (broadcast over C) ---
    gate = jnp.zeros((H, WC), f32)
    for ch, pref in enumerate((pmax_ref, pmean_ref)):
        for ki in range(3):
            for kj in range(3):
                gate = gate + (pref[ki:ki + H, kj * C:kj * C + WC]
                               * sp_ref[ch * 9 + ki * 3 + kj])
    gate = gate + sp_ref[18]

    # ---- dw1 part 1: depthwise 5x5, dilation 2, padding 4 --------------------
    acc = jnp.zeros((H, WC), f32)
    for ki in range(5):
        for kj in range(5):
            t = ki * 5 + kj
            acc = acc + (xpad_ref[2 * ki:2 * ki + H, 2 * kj * C:2 * kj * C + WC]
                         * w1a_ref[t:t + 1, :])
    acc = acc + b1a_ref[...]

    # zero-pad the intermediate by 9 px for the second conv
    fill_halo(mid_ref, 9, 9, acc)

    # ---- dw1 part 2: depthwise 7x7, dilation 3, padding 9 --------------------
    acc2 = jnp.zeros((H, WC), f32)
    for ki in range(7):
        for kj in range(7):
            t = ki * 7 + kj
            acc2 = acc2 + (mid_ref[3 * ki:3 * ki + H, 3 * kj * C:3 * kj * C + WC]
                           * w1b_ref[t:t + 1, :])
    dw1 = acc2 + b1b_ref[...]

    # ---- dw2: depthwise 3x3, padding 1 (reuse pad-4 scratch at offset 3) -----
    acc3 = jnp.zeros((H, WC), f32)
    for ki in range(3):
        for kj in range(3):
            t = ki * 3 + kj
            acc3 = acc3 + (xpad_ref[3 + ki:3 + ki + H, (3 + kj) * C:(3 + kj) * C + WC]
                           * w2_ref[t:t + 1, :])
    dw2 = acc3 + b2_ref[...]

    # ---- SpatialGate combine --------------------------------------------------
    sg = dw1 * gate + dw2

    # ---- LocalAttention (p=0): subtract per-channel spatial mean --------------
    colsum = jnp.sum(sg, axis=0, keepdims=True)       # (1, WC): per (pixel, channel) H-sums
    tot = colsum
    s = C
    while s < WC:                                     # log2(W) circular lane rolls: every lane
        tot = tot + pltpu.roll(tot, s, 1)             # ends with the sum over its channel coset
        s *= 2
    mu = tot * (1.0 / (H * W))                        # per-channel spatial mean, lane-dense
    la = laa_ref[...] * (sg - mu) * sg + lab_ref[...] * sg

    # ---- final ParamidAttention affine mix -------------------------------------
    o_ref[...] = (paa_ref[...] * la + pab_ref[...] * x).astype(o_ref.dtype)


def paramid_attention_pallas(x_nchw, p):
    """x_nchw: (B, C, H, W) float32.  p: dict of torch-shaped parameters."""
    B, C, H, W = x_nchw.shape
    WC = W * C
    # lane-dense layout constraints of this (demo-sized) kernel
    assert C & (C - 1) == 0 and C <= 128, "C must be a power of two <= 128"
    assert W & (W - 1) == 0 and WC >= 128, "W must be a power of two with W*C >= 128"

    # NCHW -> lane-dense (B, H, W*C): lane index = w*C + c  (layout plumbing only)
    x_dense = jnp.transpose(x_nchw, (0, 2, 3, 1)).reshape(B, H, WC).astype(jnp.float32)

    # parameter plumbing: per-channel vectors tiled W times along the lane axis
    def lane_tile_w(wt, k):        # (C,1,k,k) -> (k*k, W*C)
        return jnp.tile(jnp.transpose(wt.reshape(C, k * k), (1, 0)), (1, W)).astype(jnp.float32)

    def lane_tile_c(v):            # per-channel -> (1, W*C)
        return jnp.tile(v.reshape(C), W).reshape(1, WC).astype(jnp.float32)

    w1a = lane_tile_w(p["w1a"], 5)
    w1b = lane_tile_w(p["w1b"], 7)
    w2 = lane_tile_w(p["w2"], 3)
    b1a = lane_tile_c(p["b1a"])
    b1b = lane_tile_c(p["b1b"])
    b2 = lane_tile_c(p["b2"])
    laa = lane_tile_c(p["la_a"])
    lab = lane_tile_c(p["la_b"])
    paa = lane_tile_c(p["pa_a"])
    pab = lane_tile_c(p["pa_b"])
    sp = jnp.concatenate([p["spw"].reshape(-1), p["spb"].reshape(-1)]).astype(jnp.float32)  # (19,)

    def full_spec(shape):
        n = len(shape)
        return pl.BlockSpec(shape, lambda b, _n=n: (0,) * _n)

    # VMEM footprint (f32 words) and rough cost hint
    scratch_elems = ((H + 8) * (W + 8) * C + (H + 18) * (W + 18) * C
                     + 2 * (H + 2) * (W + 2) * C)
    block_elems = 2 * H * WC + (25 + 49 + 9 + 6) * WC + 32
    vmem_limit = int(min(32 * 1024 * 1024,
                         max(4 * 1024 * 1024, 8 * 4 * (scratch_elems + block_elems))))
    taps = 25 + 49 + 9
    flops = int(B * H * W * C * (2 * taps + 2 * 18 + 6 * (C - 1) + 24))
    bytes_accessed = int(4 * (2 * B * H * WC + (taps + 6) * WC + 19))

    out_dense = pl.pallas_call(
        functools.partial(_paramid_kernel, C),
        out_shape=jax.ShapeDtypeStruct((B, H, WC), jnp.float32),
        grid=(B,),
        in_specs=[
            pl.BlockSpec((None, H, WC), lambda b: (b, 0, 0)),
            full_spec((25, WC)), full_spec((1, WC)),
            full_spec((49, WC)), full_spec((1, WC)),
            full_spec((9, WC)), full_spec((1, WC)),
            pl.BlockSpec(memory_space=pltpu.MemorySpace.SMEM),
            full_spec((1, WC)), full_spec((1, WC)),
            full_spec((1, WC)), full_spec((1, WC)),
        ],
        out_specs=pl.BlockSpec((None, H, WC), lambda b: (b, 0, 0)),
        scratch_shapes=[
            pltpu.VMEM((H + 8, (W + 8) * C), jnp.float32),    # input, 4-px halo
            pltpu.VMEM((H + 18, (W + 18) * C), jnp.float32),  # dw1a output, 9-px halo
            pltpu.VMEM((H + 2, (W + 2) * C), jnp.float32),    # channel-max, 1-px halo
            pltpu.VMEM((H + 2, (W + 2) * C), jnp.float32),    # channel-mean, 1-px halo
        ],
        compiler_params=pltpu.CompilerParams(
            dimension_semantics=("parallel",),     # batch steps independent (2 TCs on v7x)
            vmem_limit_bytes=vmem_limit,
        ),
        cost_estimate=pl.CostEstimate(flops=flops, transcendentals=0,
                                      bytes_accessed=bytes_accessed),
    )(x_dense, w1a, b1a, w1b, b1b, w2, b2, sp, laa, lab, paa, pab)

    return jnp.transpose(out_dense.reshape(B, H, W, C), (0, 3, 1, 2))


def paramid_attention_reference(x, p):
    """Pure-JAX reference (XLA convs), NCHW, mirrors the PyTorch module."""
    C = x.shape[1]

    def conv(inp, w, b, pad, dil, groups):
        y = jax.lax.conv_general_dilated(
            inp, w, window_strides=(1, 1),
            padding=[(pad, pad), (pad, pad)],
            rhs_dilation=(dil, dil),
            dimension_numbers=("NCHW", "OIHW", "NCHW"),
            feature_group_count=groups)
        return y + b.reshape(1, -1, 1, 1)

    pooled = jnp.concatenate(
        [jnp.max(x, axis=1, keepdims=True), jnp.mean(x, axis=1, keepdims=True)], axis=1)
    gate = conv(pooled, p["spw"], p["spb"], 1, 1, 1)
    d1 = conv(x, p["w1a"], p["b1a"], 4, 2, C)
    d1 = conv(d1, p["w1b"], p["b1b"], 9, 3, C)
    d2 = conv(x, p["w2"], p["b2"], 1, 1, C)
    sg = d1 * gate + d2
    mu = jnp.mean(sg, axis=(2, 3), keepdims=True)
    la = p["la_a"][None] * (sg - mu) * sg + p["la_b"][None] * sg
    return p["pa_a"][None] * la + p["pa_b"][None] * x


if __name__ == "__main__":
    B, C, H, W = 2, 8, 16, 16   # W * C = 128 -> one full lane row per image row

    key = jax.random.PRNGKey(0)
    ks = jax.random.split(key, 16)
    # Deterministic synthetic parameters (torch __init__ shapes; random values
    # instead of the degenerate zeros/ones so the kernel is exercised).
    params = {
        "w1a": jax.random.normal(ks[0], (C, 1, 5, 5), jnp.float32) * 0.1,
        "b1a": jax.random.normal(ks[1], (C,), jnp.float32) * 0.1,
        "w1b": jax.random.normal(ks[2], (C, 1, 7, 7), jnp.float32) * 0.1,
        "b1b": jax.random.normal(ks[3], (C,), jnp.float32) * 0.1,
        "w2": jax.random.normal(ks[4], (C, 1, 3, 3), jnp.float32) * 0.1,
        "b2": jax.random.normal(ks[5], (C,), jnp.float32) * 0.1,
        "spw": jax.random.normal(ks[6], (1, 2, 3, 3), jnp.float32) * 0.1,
        "spb": jax.random.normal(ks[7], (1,), jnp.float32) * 0.1,
        "la_a": jax.random.normal(ks[8], (C, 1, 1), jnp.float32) * 0.1,
        "la_b": jax.random.normal(ks[9], (C, 1, 1), jnp.float32) * 0.1 + 1.0,
        "pa_a": jax.random.normal(ks[10], (C, 1, 1), jnp.float32) * 0.1,
        "pa_b": jax.random.normal(ks[11], (C, 1, 1), jnp.float32) * 0.1 + 1.0,
    }
    x = jax.random.normal(ks[15], (B, C, H, W), jnp.float32)

    out = paramid_attention_pallas(x, params)
    out = jax.block_until_ready(out)

    ref = paramid_attention_reference(x, params)
    np.testing.assert_allclose(np.asarray(out), np.asarray(ref), rtol=1e-4, atol=1e-4)

    print("KERNEL_OK")
</pallas_src>

<mosaic_0001>
module attributes {stable_mosaic.version = 11 : i64} {
  func.func @_paramid_kernel(%arg0: i32, %arg1: memref<1x16x128xf32, #tpu.memory_space<vmem>>, %arg2: memref<25x128xf32, #tpu.memory_space<vmem>>, %arg3: memref<1x128xf32, #tpu.memory_space<vmem>>, %arg4: memref<49x128xf32, #tpu.memory_space<vmem>>, %arg5: memref<1x128xf32, #tpu.memory_space<vmem>>, %arg6: memref<9x128xf32, #tpu.memory_space<vmem>>, %arg7: memref<1x128xf32, #tpu.memory_space<vmem>>, %arg8: memref<19xf32, #tpu.memory_space<smem>>, %arg9: memref<1x128xf32, #tpu.memory_space<vmem>>, %arg10: memref<1x128xf32, #tpu.memory_space<vmem>>, %arg11: memref<1x128xf32, #tpu.memory_space<vmem>>, %arg12: memref<1x128xf32, #tpu.memory_space<vmem>>, %arg13: memref<1x16x128xf32, #tpu.memory_space<vmem>>, %arg14: memref<24x192xf32, #tpu.memory_space<vmem>>, %arg15: memref<34x272xf32, #tpu.memory_space<vmem>>, %arg16: memref<18x144xf32, #tpu.memory_space<vmem>>, %arg17: memref<18x144xf32, #tpu.memory_space<vmem>>) attributes {dimension_semantics = [#tpu.dimension_semantics<parallel>], iteration_bounds = array<i64: 2>, scalar_prefetch = 0 : i64, scratch_operands = 4 : i64, tpu.core_type = #tpu.core_type<tc>, window_params = [{transform_indices = @transform_0, window_bounds = array<i64: 1, 16, 128>}, {pipeline_mode = #tpu.pipeline_mode<synchronous>, transform_indices = @transform_1, window_bounds = array<i64: 25, 128>}, {pipeline_mode = #tpu.pipeline_mode<synchronous>, transform_indices = @transform_2, window_bounds = array<i64: 1, 128>}, {pipeline_mode = #tpu.pipeline_mode<synchronous>, transform_indices = @transform_3, window_bounds = array<i64: 49, 128>}, {pipeline_mode = #tpu.pipeline_mode<synchronous>, transform_indices = @transform_4, window_bounds = array<i64: 1, 128>}, {pipeline_mode = #tpu.pipeline_mode<synchronous>, transform_indices = @transform_5, window_bounds = array<i64: 9, 128>}, {pipeline_mode = #tpu.pipeline_mode<synchronous>, transform_indices = @transform_6, window_bounds = array<i64: 1, 128>}, {transform_indices = @transform_7, window_bounds = array<i64: 19>}, {pipeline_mode = #tpu.pipeline_mode<synchronous>, transform_indices = @transform_8, window_bounds = array<i64: 1, 128>}, {pipeline_mode = #tpu.pipeline_mode<synchronous>, transform_indices = @transform_9, window_bounds = array<i64: 1, 128>}, {pipeline_mode = #tpu.pipeline_mode<synchronous>, transform_indices = @transform_10, window_bounds = array<i64: 1, 128>}, {pipeline_mode = #tpu.pipeline_mode<synchronous>, transform_indices = @transform_11, window_bounds = array<i64: 1, 128>}, {transform_indices = @transform_12, window_bounds = array<i64: 1, 16, 128>}]} {
    %c0 = arith.constant 0 : index
    %c0_0 = arith.constant 0 : index
    %c0_1 = arith.constant 0 : index
    %0 = vector.load %arg1[%c0, %c0_0, %c0_1] : memref<1x16x128xf32, #tpu.memory_space<vmem>>, vector<1x16x128xf32>
    %1 = vector.shape_cast %0 : vector<1x16x128xf32> to vector<16x128xf32>
    %cst = arith.constant 0.000000e+00 : f32
    %2 = vector.broadcast %cst : f32 to vector<4x192xf32>
    %c0_2 = arith.constant 0 : index
    %c0_3 = arith.constant 0 : index
    %3 = vector.load %arg14[%c0_2, %c0_3] : memref<24x192xf32, #tpu.memory_space<vmem>>, vector<4x192xf32>
    tpu.vector_store %arg14[%c0_2, %c0_3], %2 {strides = array<i32>} : memref<24x192xf32, #tpu.memory_space<vmem>>, vector<4x192xf32>,
    %cst_4 = arith.constant 0.000000e+00 : f32
    %4 = vector.broadcast %cst_4 : f32 to vector<4x192xf32>
    %c20 = arith.constant 20 : index
    %c0_5 = arith.constant 0 : index
    %5 = vector.load %arg14[%c20, %c0_5] : memref<24x192xf32, #tpu.memory_space<vmem>>, vector<4x192xf32>
    tpu.vector_store %arg14[%c20, %c0_5], %4 {strides = array<i32>} : memref<24x192xf32, #tpu.memory_space<vmem>>, vector<4x192xf32>,
    %cst_6 = arith.constant 0.000000e+00 : f32
    %6 = vector.broadcast %cst_6 : f32 to vector<16x32xf32>
    %c4 = arith.constant 4 : index
    %c0_7 = arith.constant 0 : index
    %7 = vector.load %arg14[%c4, %c0_7] : memref<24x192xf32, #tpu.memory_space<vmem>>, vector<16x32xf32>
    tpu.vector_store %arg14[%c4, %c0_7], %6 {strides = array<i32>} : memref<24x192xf32, #tpu.memory_space<vmem>>, vector<16x32xf32>,
    %cst_8 = arith.constant 0.000000e+00 : f32
    %8 = vector.broadcast %cst_8 : f32 to vector<16x32xf32>
    %c4_9 = arith.constant 4 : index
    %c160 = arith.constant 160 : index
    %9 = vector.load %arg14[%c4_9, %c160] : memref<24x192xf32, #tpu.memory_space<vmem>>, vector<16x32xf32>
    tpu.vector_store %arg14[%c4_9, %c160], %8 {strides = array<i32>} : memref<24x192xf32, #tpu.memory_space<vmem>>, vector<16x32xf32>,
    %c4_10 = arith.constant 4 : index
    %c32 = arith.constant 32 : index
    %10 = vector.load %arg14[%c4_10, %c32] : memref<24x192xf32, #tpu.memory_space<vmem>>, vector<16x128xf32>
    tpu.vector_store %arg14[%c4_10, %c32], %1 {strides = array<i32>} : memref<24x192xf32, #tpu.memory_space<vmem>>, vector<16x128xf32>,
    %11 = tpu.iota {dimensions = array<i32: 1>} : vector<16x128xi32>
    %c7_i32 = arith.constant 7 : i32
    %12 = vector.broadcast %c7_i32 : i32 to vector<16x128xi32>
    %13 = arith.andi %11, %12 : vector<16x128xi32>
    %c4_11 = arith.constant 4 : index
    %c33 = arith.constant 33 : index
    %14 = vector.load %arg14[%c4_11, %c33] : memref<24x192xf32, #tpu.memory_space<vmem>>, vector<16x128xf32>
    %c4_12 = arith.constant 4 : index
    %c31 = arith.constant 31 : index
    %15 = vector.load %arg14[%c4_12, %c31] : memref<24x192xf32, #tpu.memory_space<vmem>>, vector<16x128xf32>
    %c7_i32_13 = arith.constant 7 : i32
    %16 = vector.broadcast %c7_i32_13 : i32 to vector<16x128xi32>
    %17 = arith.cmpi slt, %13, %16 : vector<16x128xi32>
    %c1_i32 = arith.constant 1 : i32
    %18 = vector.broadcast %c1_i32 : i32 to vector<16x128xi32>
    %19 = arith.cmpi sge, %13, %18 : vector<16x128xi32>
    %20 = arith.maximumf %1, %14 : vector<16x128xf32>
    %21 = arith.select %17, %20, %1 : vector<16x128xi1>, vector<16x128xf32>
    %22 = arith.maximumf %21, %15 : vector<16x128xf32>
    %23 = arith.select %19, %22, %21 : vector<16x128xi1>, vector<16x128xf32>
    %cst_14 = arith.constant 0.000000e+00 : f32
    %24 = vector.broadcast %cst_14 : f32 to vector<16x128xf32>
    %25 = arith.select %17, %14, %24 : vector<16x128xi1>, vector<16x128xf32>
    %26 = arith.addf %1, %25 : vector<16x128xf32>
    %cst_15 = arith.constant 0.000000e+00 : f32
    %27 = vector.broadcast %cst_15 : f32 to vector<16x128xf32>
    %28 = arith.select %19, %15, %27 : vector<16x128xi1>, vector<16x128xf32>
    %29 = arith.addf %26, %28 : vector<16x128xf32>
    %c4_16 = arith.constant 4 : index
    %c34 = arith.constant 34 : index
    %30 = vector.load %arg14[%c4_16, %c34] : memref<24x192xf32, #tpu.memory_space<vmem>>, vector<16x128xf32>
    %c4_17 = arith.constant 4 : index
    %c30 = arith.constant 30 : index
    %31 = vector.load %arg14[%c4_17, %c30] : memref<24x192xf32, #tpu.memory_space<vmem>>, vector<16x128xf32>
    %c6_i32 = arith.constant 6 : i32
    %32 = vector.broadcast %c6_i32 : i32 to vector<16x128xi32>
    %33 = arith.cmpi slt, %13, %32 : vector<16x128xi32>
    %c2_i32 = arith.constant 2 : i32
    %34 = vector.broadcast %c2_i32 : i32 to vector<16x128xi32>
    %35 = arith.cmpi sge, %13, %34 : vector<16x128xi32>
    %36 = arith.maximumf %23, %30 : vector<16x128xf32>
    %37 = arith.select %33, %36, %23 : vector<16x128xi1>, vector<16x128xf32>
    %38 = arith.maximumf %37, %31 : vector<16x128xf32>
    %39 = arith.select %35, %38, %37 : vector<16x128xi1>, vector<16x128xf32>
    %cst_18 = arith.constant 0.000000e+00 : f32
    %40 = vector.broadcast %cst_18 : f32 to vector<16x128xf32>
    %41 = arith.select %33, %30, %40 : vector<16x128xi1>, vector<16x128xf32>
    %42 = arith.addf %29, %41 : vector<16x128xf32>
    %cst_19 = arith.constant 0.000000e+00 : f32
    %43 = vector.broadcast %cst_19 : f32 to vector<16x128xf32>
    %44 = arith.select %35, %31, %43 : vector<16x128xi1>, vector<16x128xf32>
    %45 = arith.addf %42, %44 : vector<16x128xf32>
    %c4_20 = arith.constant 4 : index
    %c35 = arith.constant 35 : index
    %46 = vector.load %arg14[%c4_20, %c35] : memref<24x192xf32, #tpu.memory_space<vmem>>, vector<16x128xf32>
    %c4_21 = arith.constant 4 : index
    %c29 = arith.constant 29 : index
    %47 = vector.load %arg14[%c4_21, %c29] : memref<24x192xf32, #tpu.memory_space<vmem>>, vector<16x128xf32>
    %c5_i32 = arith.constant 5 : i32
    %48 = vector.broadcast %c5_i32 : i32 to vector<16x128xi32>
    %49 = arith.cmpi slt, %13, %48 : vector<16x128xi32>
    %c3_i32 = arith.constant 3 : i32
    %50 = vector.broadcast %c3_i32 : i32 to vector<16x128xi32>
    %51 = arith.cmpi sge, %13, %50 : vector<16x128xi32>
    %52 = arith.maximumf %39, %46 : vector<16x128xf32>
    %53 = arith.select %49, %52, %39 : vector<16x128xi1>, vector<16x128xf32>
    %54 = arith.maximumf %53, %47 : vector<16x128xf32>
    %55 = arith.select %51, %54, %53 : vector<16x128xi1>, vector<16x128xf32>
    %cst_22 = arith.constant 0.000000e+00 : f32
    %56 = vector.broadcast %cst_22 : f32 to vector<16x128xf32>
    %57 = arith.select %49, %46, %56 : vector<16x128xi1>, vector<16x128xf32>
    %58 = arith.addf %45, %57 : vector<16x128xf32>
    %cst_23 = arith.constant 0.000000e+00 : f32
    %59 = vector.broadcast %cst_23 : f32 to vector<16x128xf32>
    %60 = arith.select %51, %47, %59 : vector<16x128xi1>, vector<16x128xf32>
    %61 = arith.addf %58, %60 : vector<16x128xf32>
    %c4_24 = arith.constant 4 : index
    %c36 = arith.constant 36 : index
    %62 = vector.load %arg14[%c4_24, %c36] : memref<24x192xf32, #tpu.memory_space<vmem>>, vector<16x128xf32>
    %c4_25 = arith.constant 4 : index
    %c28 = arith.constant 28 : index
    %63 = vector.load %arg14[%c4_25, %c28] : memref<24x192xf32, #tpu.memory_space<vmem>>, vector<16x128xf32>
    %c4_i32 = arith.constant 4 : i32
    %64 = vector.broadcast %c4_i32 : i32 to vector<16x128xi32>
    %65 = arith.cmpi slt, %13, %64 : vector<16x128xi32>
    %c4_i32_26 = arith.constant 4 : i32
    %66 = vector.broadcast %c4_i32_26 : i32 to vector<16x128xi32>
    %67 = arith.cmpi sge, %13, %66 : vector<16x128xi32>
    %68 = arith.maximumf %55, %62 : vector<16x128xf32>
    %69 = arith.select %65, %68, %55 : vector<16x128xi1>, vector<16x128xf32>
    %70 = arith.maximumf %69, %63 : vector<16x128xf32>
    %71 = arith.select %67, %70, %69 : vector<16x128xi1>, vector<16x128xf32>
    %cst_27 = arith.constant 0.000000e+00 : f32
    %72 = vector.broadcast %cst_27 : f32 to vector<16x128xf32>
    %73 = arith.select %65, %62, %72 : vector<16x128xi1>, vector<16x128xf32>
    %74 = arith.addf %61, %73 : vector<16x128xf32>
    %cst_28 = arith.constant 0.000000e+00 : f32
    %75 = vector.broadcast %cst_28 : f32 to vector<16x128xf32>
    %76 = arith.select %67, %63, %75 : vector<16x128xi1>, vector<16x128xf32>
    %77 = arith.addf %74, %76 : vector<16x128xf32>
    %c4_29 = arith.constant 4 : index
    %c37 = arith.constant 37 : index
    %78 = vector.load %arg14[%c4_29, %c37] : memref<24x192xf32, #tpu.memory_space<vmem>>, vector<16x128xf32>
    %c4_30 = arith.constant 4 : index
    %c27 = arith.constant 27 : index
    %79 = vector.load %arg14[%c4_30, %c27] : memref<24x192xf32, #tpu.memory_space<vmem>>, vector<16x128xf32>
    %c3_i32_31 = arith.constant 3 : i32
    %80 = vector.broadcast %c3_i32_31 : i32 to vector<16x128xi32>
    %81 = arith.cmpi slt, %13, %80 : vector<16x128xi32>
    %c5_i32_32 = arith.constant 5 : i32
    %82 = vector.broadcast %c5_i32_32 : i32 to vector<16x128xi32>
    %83 = arith.cmpi sge, %13, %82 : vector<16x128xi32>
    %84 = arith.maximumf %71, %78 : vector<16x128xf32>
    %85 = arith.select %81, %84, %71 : vector<16x128xi1>, vector<16x128xf32>
    %86 = arith.maximumf %85, %79 : vector<16x128xf32>
    %87 = arith.select %83, %86, %85 : vector<16x128xi1>, vector<16x128xf32>
    %cst_33 = arith.constant 0.000000e+00 : f32
    %88 = vector.broadcast %cst_33 : f32 to vector<16x128xf32>
    %89 = arith.select %81, %78, %88 : vector<16x128xi1>, vector<16x128xf32>
    %90 = arith.addf %77, %89 : vector<16x128xf32>
    %cst_34 = arith.constant 0.000000e+00 : f32
    %91 = vector.broadcast %cst_34 : f32 to vector<16x128xf32>
    %92 = arith.select %83, %79, %91 : vector<16x128xi1>, vector<16x128xf32>
    %93 = arith.addf %90, %92 : vector<16x128xf32>
    %c4_35 = arith.constant 4 : index
    %c38 = arith.constant 38 : index
    %94 = vector.load %arg14[%c4_35, %c38] : memref<24x192xf32, #tpu.memory_space<vmem>>, vector<16x128xf32>
    %c4_36 = arith.constant 4 : index
    %c26 = arith.constant 26 : index
    %95 = vector.load %arg14[%c4_36, %c26] : memref<24x192xf32, #tpu.memory_space<vmem>>, vector<16x128xf32>
    %c2_i32_37 = arith.constant 2 : i32
    %96 = vector.broadcast %c2_i32_37 : i32 to vector<16x128xi32>
    %97 = arith.cmpi slt, %13, %96 : vector<16x128xi32>
    %c6_i32_38 = arith.constant 6 : i32
    %98 = vector.broadcast %c6_i32_38 : i32 to vector<16x128xi32>
    %99 = arith.cmpi sge, %13, %98 : vector<16x128xi32>
    %100 = arith.maximumf %87, %94 : vector<16x128xf32>
    %101 = arith.select %97, %100, %87 : vector<16x128xi1>, vector<16x128xf32>
    %102 = arith.maximumf %101, %95 : vector<16x128xf32>
    %103 = arith.select %99, %102, %101 : vector<16x128xi1>, vector<16x128xf32>
    %cst_39 = arith.constant 0.000000e+00 : f32
    %104 = vector.broadcast %cst_39 : f32 to vector<16x128xf32>
    %105 = arith.select %97, %94, %104 : vector<16x128xi1>, vector<16x128xf32>
    %106 = arith.addf %93, %105 : vector<16x128xf32>
    %cst_40 = arith.constant 0.000000e+00 : f32
    %107 = vector.broadcast %cst_40 : f32 to vector<16x128xf32>
    %108 = arith.select %99, %95, %107 : vector<16x128xi1>, vector<16x128xf32>
    %109 = arith.addf %106, %108 : vector<16x128xf32>
    %c4_41 = arith.constant 4 : index
    %c39 = arith.constant 39 : index
    %110 = vector.load %arg14[%c4_41, %c39] : memref<24x192xf32, #tpu.memory_space<vmem>>, vector<16x128xf32>
    %c4_42 = arith.constant 4 : index
    %c25 = arith.constant 25 : index
    %111 = vector.load %arg14[%c4_42, %c25] : memref<24x192xf32, #tpu.memory_space<vmem>>, vector<16x128xf32>
    %c1_i32_43 = arith.constant 1 : i32
    %112 = vector.broadcast %c1_i32_43 : i32 to vector<16x128xi32>
    %113 = arith.cmpi slt, %13, %112 : vector<16x128xi32>
    %c7_i32_44 = arith.constant 7 : i32
    %114 = vector.broadcast %c7_i32_44 : i32 to vector<16x128xi32>
    %115 = arith.cmpi sge, %13, %114 : vector<16x128xi32>
    %116 = arith.maximumf %103, %110 : vector<16x128xf32>
    %117 = arith.select %113, %116, %103 : vector<16x128xi1>, vector<16x128xf32>
    %118 = arith.maximumf %117, %111 : vector<16x128xf32>
    %119 = arith.select %115, %118, %117 : vector<16x128xi1>, vector<16x128xf32>
    %cst_45 = arith.constant 0.000000e+00 : f32
    %120 = vector.broadcast %cst_45 : f32 to vector<16x128xf32>
    %121 = arith.select %113, %110, %120 : vector<16x128xi1>, vector<16x128xf32>
    %122 = arith.addf %109, %121 : vector<16x128xf32>
    %cst_46 = arith.constant 0.000000e+00 : f32
    %123 = vector.broadcast %cst_46 : f32 to vector<16x128xf32>
    %124 = arith.select %115, %111, %123 : vector<16x128xi1>, vector<16x128xf32>
    %125 = arith.addf %122, %124 : vector<16x128xf32>
    %cst_47 = arith.constant 1.250000e-01 : f32
    %126 = vector.broadcast %cst_47 : f32 to vector<16x128xf32>
    %127 = arith.mulf %125, %126 : vector<16x128xf32>
    %cst_48 = arith.constant 0.000000e+00 : f32
    %128 = vector.broadcast %cst_48 : f32 to vector<1x144xf32>
    %c0_49 = arith.constant 0 : index
    %c0_50 = arith.constant 0 : index
    %129 = vector.load %arg16[%c0_49, %c0_50] : memref<18x144xf32, #tpu.memory_space<vmem>>, vector<1x144xf32>
    tpu.vector_store %arg16[%c0_49, %c0_50], %128 {strides = array<i32>} : memref<18x144xf32, #tpu.memory_space<vmem>>, vector<1x144xf32>,
    %cst_51 = arith.constant 0.000000e+00 : f32
    %130 = vector.broadcast %cst_51 : f32 to vector<1x144xf32>
    %c17 = arith.constant 17 : index
    %c0_52 = arith.constant 0 : index
    %131 = vector.load %arg16[%c17, %c0_52] : memref<18x144xf32, #tpu.memory_space<vmem>>, vector<1x144xf32>
    tpu.vector_store %arg16[%c17, %c0_52], %130 {strides = array<i32>} : memref<18x144xf32, #tpu.memory_space<vmem>>, vector<1x144xf32>,
    %cst_53 = arith.constant 0.000000e+00 : f32
    %132 = vector.broadcast %cst_53 : f32 to vector<16x8xf32>
    %c1 = arith.constant 1 : index
    %c0_54 = arith.constant 0 : index
    %133 = vector.load %arg16[%c1, %c0_54] : memref<18x144xf32, #tpu.memory_space<vmem>>, vector<16x8xf32>
    tpu.vector_store %arg16[%c1, %c0_54], %132 {strides = array<i32>} : memref<18x144xf32, #tpu.memory_space<vmem>>, vector<16x8xf32>,
    %cst_55 = arith.constant 0.000000e+00 : f32
    %134 = vector.broadcast %cst_55 : f32 to vector<16x8xf32>
    %c1_56 = arith.constant 1 : index
    %c136 = arith.constant 136 : index
    %135 = vector.load %arg16[%c1_56, %c136] : memref<18x144xf32, #tpu.memory_space<vmem>>, vector<16x8xf32>
    tpu.vector_store %arg16[%c1_56, %c136], %134 {strides = array<i32>} : memref<18x144xf32, #tpu.memory_space<vmem>>, vector<16x8xf32>,
    %c1_57 = arith.constant 1 : index
    %c8 = arith.constant 8 : index
    %136 = vector.load %arg16[%c1_57, %c8] : memref<18x144xf32, #tpu.memory_space<vmem>>, vector<16x128xf32>
    tpu.vector_store %arg16[%c1_57, %c8], %119 {strides = array<i32>} : memref<18x144xf32, #tpu.memory_space<vmem>>, vector<16x128xf32>,
    %cst_58 = arith.constant 0.000000e+00 : f32
    %137 = vector.broadcast %cst_58 : f32 to vector<1x144xf32>
    %c0_59 = arith.constant 0 : index
    %c0_60 = arith.constant 0 : index
    %138 = vector.load %arg17[%c0_59, %c0_60] : memref<18x144xf32, #tpu.memory_space<vmem>>, vector<1x144xf32>
    tpu.vector_store %arg17[%c0_59, %c0_60], %137 {strides = array<i32>} : memref<18x144xf32, #tpu.memory_space<vmem>>, vector<1x144xf32>,
    %cst_61 = arith.constant 0.000000e+00 : f32
    %139 = vector.broadcast %cst_61 : f32 to vector<1x144xf32>
    %c17_62 = arith.constant 17 : index
    %c0_63 = arith.constant 0 : index
    %140 = vector.load %arg17[%c17_62, %c0_63] : memref<18x144xf32, #tpu.memory_space<vmem>>, vector<1x144xf32>
    tpu.vector_store %arg17[%c17_62, %c0_63], %139 {strides = array<i32>} : memref<18x144xf32, #tpu.memory_space<vmem>>, vector<1x144xf32>,
    %cst_64 = arith.constant 0.000000e+00 : f32
    %141 = vector.broadcast %cst_64 : f32 to vector<16x8xf32>
    %c1_65 = arith.constant 1 : index
    %c0_66 = arith.constant 0 : index
    %142 = vector.load %arg17[%c1_65, %c0_66] : memref<18x144xf32, #tpu.memory_space<vmem>>, vector<16x8xf32>
    tpu.vector_store %arg17[%c1_65, %c0_66], %141 {strides = array<i32>} : memref<18x144xf32, #tpu.memory_space<vmem>>, vector<16x8xf32>,
    %cst_67 = arith.constant 0.000000e+00 : f32
    %143 = vector.broadcast %cst_67 : f32 to vector<16x8xf32>
    %c1_68 = arith.constant 1 : index
    %c136_69 = arith.constant 136 : index
    %144 = vector.load %arg17[%c1_68, %c136_69] : memref<18x144xf32, #tpu.memory_space<vmem>>, vector<16x8xf32>
    tpu.vector_store %arg17[%c1_68, %c136_69], %143 {strides = array<i32>} : memref<18x144xf32, #tpu.memory_space<vmem>>, vector<16x8xf32>,
    %c1_70 = arith.constant 1 : index
    %c8_71 = arith.constant 8 : index
    %145 = vector.load %arg17[%c1_70, %c8_71] : memref<18x144xf32, #tpu.memory_space<vmem>>, vector<16x128xf32>
    tpu.vector_store %arg17[%c1_70, %c8_71], %127 {strides = array<i32>} : memref<18x144xf32, #tpu.memory_space<vmem>>, vector<16x128xf32>,
    %cst_72 = arith.constant 0.000000e+00 : f32
    %146 = vector.broadcast %cst_72 : f32 to vector<16x128xf32>
    %c0_73 = arith.constant 0 : index
    %c0_74 = arith.constant 0 : index
    %147 = vector.load %arg16[%c0_73, %c0_74] : memref<18x144xf32, #tpu.memory_space<vmem>>, vector<16x128xf32>
    %c0_75 = arith.constant 0 : index
    %148 = memref.load %arg8[%c0_75] : memref<19xf32, #tpu.memory_space<smem>>
    %149 = vector.broadcast %148 : f32 to vector<16x128xf32>
    %150 = arith.mulf %147, %149 : vector<16x128xf32>
    %151 = arith.addf %146, %150 : vector<16x128xf32>
    %c0_76 = arith.constant 0 : index
    %c8_77 = arith.constant 8 : index
    %152 = vector.load %arg16[%c0_76, %c8_77] : memref<18x144xf32, #tpu.memory_space<vmem>>, vector<16x128xf32>
    %c1_78 = arith.constant 1 : index
    %153 = memref.load %arg8[%c1_78] : memref<19xf32, #tpu.memory_space<smem>>
    %154 = vector.broadcast %153 : f32 to vector<16x128xf32>
    %155 = arith.mulf %152, %154 : vector<16x128xf32>
    %156 = arith.addf %151, %155 : vector<16x128xf32>
    %c0_79 = arith.constant 0 : index
    %c16 = arith.constant 16 : index
    %157 = vector.load %arg16[%c0_79, %c16] : memref<18x144xf32, #tpu.memory_space<vmem>>, vector<16x128xf32>
    %c2 = arith.constant 2 : index
    %158 = memref.load %arg8[%c2] : memref<19xf32, #tpu.memory_space<smem>>
    %159 = vector.broadcast %158 : f32 to vector<16x128xf32>
    %160 = arith.mulf %157, %159 : vector<16x128xf32>
    %161 = arith.addf %156, %160 : vector<16x128xf32>
    %c1_80 = arith.constant 1 : index
    %c0_81 = arith.constant 0 : index
    %162 = vector.load %arg16[%c1_80, %c0_81] : memref<18x144xf32, #tpu.memory_space<vmem>>, vector<16x128xf32>
    %c3 = arith.constant 3 : index
    %163 = memref.load %arg8[%c3] : memref<19xf32, #tpu.memory_space<smem>>
    %164 = vector.broadcast %163 : f32 to vector<16x128xf32>
    %165 = arith.mulf %162, %164 : vector<16x128xf32>
    %166 = arith.addf %161, %165 : vector<16x128xf32>
    %c1_82 = arith.constant 1 : index
    %c8_83 = arith.constant 8 : index
    %167 = vector.load %arg16[%c1_82, %c8_83] : memref<18x144xf32, #tpu.memory_space<vmem>>, vector<16x128xf32>
    %c4_84 = arith.constant 4 : index
    %168 = memref.load %arg8[%c4_84] : memref<19xf32, #tpu.memory_space<smem>>
    %169 = vector.broadcast %168 : f32 to vector<16x128xf32>
    %170 = arith.mulf %167, %169 : vector<16x128xf32>
    %171 = arith.addf %166, %170 : vector<16x128xf32>
    %c1_85 = arith.constant 1 : index
    %c16_86 = arith.constant 16 : index
    %172 = vector.load %arg16[%c1_85, %c16_86] : memref<18x144xf32, #tpu.memory_space<vmem>>, vector<16x128xf32>
    %c5 = arith.constant 5 : index
    %173 = memref.load %arg8[%c5] : memref<19xf32, #tpu.memory_space<smem>>
    %174 = vector.broadcast %173 : f32 to vector<16x128xf32>
    %175 = arith.mulf %172, %174 : vector<16x128xf32>
    %176 = arith.addf %171, %175 : vector<16x128xf32>
    %c2_87 = arith.constant 2 : index
    %c0_88 = arith.constant 0 : index
    %177 = vector.load %arg16[%c2_87, %c0_88] : memref<18x144xf32, #tpu.memory_space<vmem>>, vector<16x128xf32>
    %c6 = arith.constant 6 : index
    %178 = memref.load %arg8[%c6] : memref<19xf32, #tpu.memory_space<smem>>
    %179 = vector.broadcast %178 : f32 to vector<16x128xf32>
    %180 = arith.mulf %177, %179 : vector<16x128xf32>
    %181 = arith.addf %176, %180 : vector<16x128xf32>
    %c2_89 = arith.constant 2 : index
    %c8_90 = arith.constant 8 : index
    %182 = vector.load %arg16[%c2_89, %c8_90] : memref<18x144xf32, #tpu.memory_space<vmem>>, vector<16x128xf32>
    %c7 = arith.constant 7 : index
    %183 = memref.load %arg8[%c7] : memref<19xf32, #tpu.memory_space<smem>>
    %184 = vector.broadcast %183 : f32 to vector<16x128xf32>
    %185 = arith.mulf %182, %184 : vector<16x128xf32>
    %186 = arith.addf %181, %185 : vector<16x128xf32>
    %c2_91 = arith.constant 2 : index
    %c16_92 = arith.constant 16 : index
    %187 = vector.load %arg16[%c2_91, %c16_92] : memref<18x144xf32, #tpu.memory_space<vmem>>, vector<16x128xf32>
    %c8_93 = arith.constant 8 : index
    %188 = memref.load %arg8[%c8_93] : memref<19xf32, #tpu.memory_space<smem>>
    %189 = vector.broadcast %188 : f32 to vector<16x128xf32>
    %190 = arith.mulf %187, %189 : vector<16x128xf32>
    %191 = arith.addf %186, %190 : vector<16x128xf32>
    %c0_94 = arith.constant 0 : index
    %c0_95 = arith.constant 0 : index
    %192 = vector.load %arg17[%c0_94, %c0_95] : memref<18x144xf32, #tpu.memory_space<vmem>>, vector<16x128xf32>
    %c9 = arith.constant 9 : index
    %193 = memref.load %arg8[%c9] : memref<19xf32, #tpu.memory_space<smem>>
    %194 = vector.broadcast %193 : f32 to vector<16x128xf32>
    %195 = arith.mulf %192, %194 : vector<16x128xf32>
    %196 = arith.addf %191, %195 : vector<16x128xf32>
    %c0_96 = arith.constant 0 : index
    %c8_97 = arith.constant 8 : index
    %197 = vector.load %arg17[%c0_96, %c8_97] : memref<18x144xf32, #tpu.memory_space<vmem>>, vector<16x128xf32>
    %c10 = arith.constant 10 : index
    %198 = memref.load %arg8[%c10] : memref<19xf32, #tpu.memory_space<smem>>
    %199 = vector.broadcast %198 : f32 to vector<16x128xf32>
    %200 = arith.mulf %197, %199 : vector<16x128xf32>
    %201 = arith.addf %196, %200 : vector<16x128xf32>
    %c0_98 = arith.constant 0 : index
    %c16_99 = arith.constant 16 : index
    %202 = vector.load %arg17[%c0_98, %c16_99] : memref<18x144xf32, #tpu.memory_space<vmem>>, vector<16x128xf32>
    %c11 = arith.constant 11 : index
    %203 = memref.load %arg8[%c11] : memref<19xf32, #tpu.memory_space<smem>>
    %204 = vector.broadcast %203 : f32 to vector<16x128xf32>
    %205 = arith.mulf %202, %204 : vector<16x128xf32>
    %206 = arith.addf %201, %205 : vector<16x128xf32>
    %c1_100 = arith.constant 1 : index
    %c0_101 = arith.constant 0 : index
    %207 = vector.load %arg17[%c1_100, %c0_101] : memref<18x144xf32, #tpu.memory_space<vmem>>, vector<16x128xf32>
    %c12 = arith.constant 12 : index
    %208 = memref.load %arg8[%c12] : memref<19xf32, #tpu.memory_space<smem>>
    %209 = vector.broadcast %208 : f32 to vector<16x128xf32>
    %210 = arith.mulf %207, %209 : vector<16x128xf32>
    %211 = arith.addf %206, %210 : vector<16x128xf32>
    %c1_102 = arith.constant 1 : index
    %c8_103 = arith.constant 8 : index
    %212 = vector.load %arg17[%c1_102, %c8_103] : memref<18x144xf32, #tpu.memory_space<vmem>>, vector<16x128xf32>
    %c13 = arith.constant 13 : index
    %213 = memref.load %arg8[%c13] : memref<19xf32, #tpu.memory_space<smem>>
    %214 = vector.broadcast %213 : f32 to vector<16x128xf32>
    %215 = arith.mulf %212, %214 : vector<16x128xf32>
    %216 = arith.addf %211, %215 : vector<16x128xf32>
    %c1_104 = arith.constant 1 : index
    %c16_105 = arith.constant 16 : index
    %217 = vector.load %arg17[%c1_104, %c16_105] : memref<18x144xf32, #tpu.memory_space<vmem>>, vector<16x128xf32>
    %c14 = arith.constant 14 : index
    %218 = memref.load %arg8[%c14] : memref<19xf32, #tpu.memory_space<smem>>
    %219 = vector.broadcast %218 : f32 to vector<16x128xf32>
    %220 = arith.mulf %217, %219 : vector<16x128xf32>
    %221 = arith.addf %216, %220 : vector<16x128xf32>
    %c2_106 = arith.constant 2 : index
    %c0_107 = arith.constant 0 : index
    %222 = vector.load %arg17[%c2_106, %c0_107] : memref<18x144xf32, #tpu.memory_space<vmem>>, vector<16x128xf32>
    %c15 = arith.constant 15 : index
    %223 = memref.load %arg8[%c15] : memref<19xf32, #tpu.memory_space<smem>>
    %224 = vector.broadcast %223 : f32 to vector<16x128xf32>
    %225 = arith.mulf %222, %224 : vector<16x128xf32>
    %226 = arith.addf %221, %225 : vector<16x128xf32>
    %c2_108 = arith.constant 2 : index
    %c8_109 = arith.constant 8 : index
    %227 = vector.load %arg17[%c2_108, %c8_109] : memref<18x144xf32, #tpu.memory_space<vmem>>, vector<16x128xf32>
    %c16_110 = arith.constant 16 : index
    %228 = memref.load %arg8[%c16_110] : memref<19xf32, #tpu.memory_space<smem>>
    %229 = vector.broadcast %228 : f32 to vector<16x128xf32>
    %230 = arith.mulf %227, %229 : vector<16x128xf32>
    %231 = arith.addf %226, %230 : vector<16x128xf32>
    %c2_111 = arith.constant 2 : index
    %c16_112 = arith.constant 16 : index
    %232 = vector.load %arg17[%c2_111, %c16_112] : memref<18x144xf32, #tpu.memory_space<vmem>>, vector<16x128xf32>
    %c17_113 = arith.constant 17 : index
    %233 = memref.load %arg8[%c17_113] : memref<19xf32, #tpu.memory_space<smem>>
    %234 = vector.broadcast %233 : f32 to vector<16x128xf32>
    %235 = arith.mulf %232, %234 : vector<16x128xf32>
    %236 = arith.addf %231, %235 : vector<16x128xf32>
    %c18 = arith.constant 18 : index
    %237 = memref.load %arg8[%c18] : memref<19xf32, #tpu.memory_space<smem>>
    %238 = vector.broadcast %237 : f32 to vector<16x128xf32>
    %239 = arith.addf %236, %238 : vector<16x128xf32>
    %cst_114 = arith.constant 0.000000e+00 : f32
    %240 = vector.broadcast %cst_114 : f32 to vector<16x128xf32>
    %c0_115 = arith.constant 0 : index
    %c0_116 = arith.constant 0 : index
    %241 = vector.load %arg14[%c0_115, %c0_116] : memref<24x192xf32, #tpu.memory_space<vmem>>, vector<16x128xf32>
    %c0_117 = arith.constant 0 : index
    %c0_118 = arith.constant 0 : index
    %242 = vector.load %arg2[%c0_117, %c0_118] : memref<25x128xf32, #tpu.memory_space<vmem>>, vector<1x128xf32>
    %243 = vector.broadcast %242 : vector<1x128xf32> to vector<16x128xf32>
    %244 = arith.mulf %241, %243 : vector<16x128xf32>
    %245 = arith.addf %240, %244 : vector<16x128xf32>
    %c0_119 = arith.constant 0 : index
    %c16_120 = arith.constant 16 : index
    %246 = vector.load %arg14[%c0_119, %c16_120] : memref<24x192xf32, #tpu.memory_space<vmem>>, vector<16x128xf32>
    %c1_121 = arith.constant 1 : index
    %c0_122 = arith.constant 0 : index
    %247 = vector.load %arg2[%c1_121, %c0_122] : memref<25x128xf32, #tpu.memory_space<vmem>>, vector<1x128xf32>
    %248 = vector.broadcast %247 : vector<1x128xf32> to vector<16x128xf32>
    %249 = arith.mulf %246, %248 : vector<16x128xf32>
    %250 = arith.addf %245, %249 : vector<16x128xf32>
    %c0_123 = arith.constant 0 : index
    %c32_124 = arith.constant 32 : index
    %251 = vector.load %arg14[%c0_123, %c32_124] : memref<24x192xf32, #tpu.memory_space<vmem>>, vector<16x128xf32>
    %c2_125 = arith.constant 2 : index
    %c0_126 = arith.constant 0 : index
    %252 = vector.load %arg2[%c2_125, %c0_126] : memref<25x128xf32, #tpu.memory_space<vmem>>, vector<1x128xf32>
    %253 = vector.broadcast %252 : vector<1x128xf32> to vector<16x128xf32>
    %254 = arith.mulf %251, %253 : vector<16x128xf32>
    %255 = arith.addf %250, %254 : vector<16x128xf32>
    %c0_127 = arith.constant 0 : index
    %c48 = arith.constant 48 : index
    %256 = vector.load %arg14[%c0_127, %c48] : memref<24x192xf32, #tpu.memory_space<vmem>>, vector<16x128xf32>
    %c3_128 = arith.constant 3 : index
    %c0_129 = arith.constant 0 : index
    %257 = vector.load %arg2[%c3_128, %c0_129] : memref<25x128xf32, #tpu.memory_space<vmem>>, vector<1x128xf32>
    %258 = vector.broadcast %257 : vector<1x128xf32> to vector<16x128xf32>
    %259 = arith.mulf %256, %258 : vector<16x128xf32>
    %260 = arith.addf %255, %259 : vector<16x128xf32>
    %c0_130 = arith.constant 0 : index
    %c64 = arith.constant 64 : index
    %261 = vector.load %arg14[%c0_130, %c64] : memref<24x192xf32, #tpu.memory_space<vmem>>, vector<16x128xf32>
    %c4_131 = arith.constant 4 : index
    %c0_132 = arith.constant 0 : index
    %262 = vector.load %arg2[%c4_131, %c0_132] : memref<25x128xf32, #tpu.memory_space<vmem>>, vector<1x128xf32>
    %263 = vector.broadcast %262 : vector<1x128xf32> to vector<16x128xf32>
    %264 = arith.mulf %261, %263 : vector<16x128xf32>
    %265 = arith.addf %260, %264 : vector<16x128xf32>
    %c2_133 = arith.constant 2 : index
    %c0_134 = arith.constant 0 : index
    %266 = vector.load %arg14[%c2_133, %c0_134] : memref<24x192xf32, #tpu.memory_space<vmem>>, vector<16x128xf32>
    %c5_135 = arith.constant 5 : index
    %c0_136 = arith.constant 0 : index
    %267 = vector.load %arg2[%c5_135, %c0_136] : memref<25x128xf32, #tpu.memory_space<vmem>>, vector<1x128xf32>
    %268 = vector.broadcast %267 : vector<1x128xf32> to vector<16x128xf32>
    %269 = arith.mulf %266, %268 : vector<16x128xf32>
    %270 = arith.addf %265, %269 : vector<16x128xf32>
    %c2_137 = arith.constant 2 : index
    %c16_138 = arith.constant 16 : index
    %271 = vector.load %arg14[%c2_137, %c16_138] : memref<24x192xf32, #tpu.memory_space<vmem>>, vector<16x128xf32>
    %c6_139 = arith.constant 6 : index
    %c0_140 = arith.constant 0 : index
    %272 = vector.load %arg2[%c6_139, %c0_140] : memref<25x128xf32, #tpu.memory_space<vmem>>, vector<1x128xf32>
    %273 = vector.broadcast %272 : vector<1x128xf32> to vector<16x128xf32>
    %274 = arith.mulf %271, %273 : vector<16x128xf32>
    %275 = arith.addf %270, %274 : vector<16x128xf32>
    %c2_141 = arith.constant 2 : index
    %c32_142 = arith.constant 32 : index
    %276 = vector.load %arg14[%c2_141, %c32_142] : memref<24x192xf32, #tpu.memory_space<vmem>>, vector<16x128xf32>
    %c7_143 = arith.constant 7 : index
    %c0_144 = arith.constant 0 : index
    %277 = vector.load %arg2[%c7_143, %c0_144] : memref<25x128xf32, #tpu.memory_space<vmem>>, vector<1x128xf32>
    %278 = vector.broadcast %277 : vector<1x128xf32> to vector<16x128xf32>
    %279 = arith.mulf %276, %278 : vector<16x128xf32>
    %280 = arith.addf %275, %279 : vector<16x128xf32>
    %c2_145 = arith.constant 2 : index
    %c48_146 = arith.constant 48 : index
    %281 = vector.load %arg14[%c2_145, %c48_146] : memref<24x192xf32, #tpu.memory_space<vmem>>, vector<16x128xf32>
    %c8_147 = arith.constant 8 : index
    %c0_148 = arith.constant 0 : index
    %282 = vector.load %arg2[%c8_147, %c0_148] : memref<25x128xf32, #tpu.memory_space<vmem>>, vector<1x128xf32>
    %283 = vector.broadcast %282 : vector<1x128xf32> to vector<16x128xf32>
    %284 = arith.mulf %281, %283 : vector<16x128xf32>
    %285 = arith.addf %280, %284 : vector<16x128xf32>
    %c2_149 = arith.constant 2 : index
    %c64_150 = arith.constant 64 : index
    %286 = vector.load %arg14[%c2_149, %c64_150] : memref<24x192xf32, #tpu.memory_space<vmem>>, vector<16x128xf32>
    %c9_151 = arith.constant 9 : index
    %c0_152 = arith.constant 0 : index
    %287 = vector.load %arg2[%c9_151, %c0_152] : memref<25x128xf32, #tpu.memory_space<vmem>>, vector<1x128xf32>
    %288 = vector.broadcast %287 : vector<1x128xf32> to vector<16x128xf32>
    %289 = arith.mulf %286, %288 : vector<16x128xf32>
    %290 = arith.addf %285, %289 : vector<16x128xf32>
    %c4_153 = arith.constant 4 : index
    %c0_154 = arith.constant 0 : index
    %291 = vector.load %arg14[%c4_153, %c0_154] : memref<24x192xf32, #tpu.memory_space<vmem>>, vector<16x128xf32>
    %c10_155 = arith.constant 10 : index
    %c0_156 = arith.constant 0 : index
    %292 = vector.load %arg2[%c10_155, %c0_156] : memref<25x128xf32, #tpu.memory_space<vmem>>, vector<1x128xf32>
    %293 = vector.broadcast %292 : vector<1x128xf32> to vector<16x128xf32>
    %294 = arith.mulf %291, %293 : vector<16x128xf32>
    %295 = arith.addf %290, %294 : vector<16x128xf32>
    %c4_157 = arith.constant 4 : index
    %c16_158 = arith.constant 16 : index
    %296 = vector.load %arg14[%c4_157, %c16_158] : memref<24x192xf32, #tpu.memory_space<vmem>>, vector<16x128xf32>
    %c11_159 = arith.constant 11 : index
    %c0_160 = arith.constant 0 : index
    %297 = vector.load %arg2[%c11_159, %c0_160] : memref<25x128xf32, #tpu.memory_space<vmem>>, vector<1x128xf32>
    %298 = vector.broadcast %297 : vector<1x128xf32> to vector<16x128xf32>
    %299 = arith.mulf %296, %298 : vector<16x128xf32>
    %300 = arith.addf %295, %299 : vector<16x128xf32>
    %c4_161 = arith.constant 4 : index
    %c32_162 = arith.constant 32 : index
    %301 = vector.load %arg14[%c4_161, %c32_162] : memref<24x192xf32, #tpu.memory_space<vmem>>, vector<16x128xf32>
    %c12_163 = arith.constant 12 : index
    %c0_164 = arith.constant 0 : index
    %302 = vector.load %arg2[%c12_163, %c0_164] : memref<25x128xf32, #tpu.memory_space<vmem>>, vector<1x128xf32>
    %303 = vector.broadcast %302 : vector<1x128xf32> to vector<16x128xf32>
    %304 = arith.mulf %301, %303 : vector<16x128xf32>
    %305 = arith.addf %300, %304 : vector<16x128xf32>
    %c4_165 = arith.constant 4 : index
    %c48_166 = arith.constant 48 : index
    %306 = vector.load %arg14[%c4_165, %c48_166] : memref<24x192xf32, #tpu.memory_space<vmem>>, vector<16x128xf32>
    %c13_167 = arith.constant 13 : index
    %c0_168 = arith.constant 0 : index
    %307 = vector.load %arg2[%c13_167, %c0_168] : memref<25x128xf32, #tpu.memory_space<vmem>>, vector<1x128xf32>
    %308 = vector.broadcast %307 : vector<1x128xf32> to vector<16x128xf32>
    %309 = arith.mulf %306, %308 : vector<16x128xf32>
    %310 = arith.addf %305, %309 : vector<16x128xf32>
    %c4_169 = arith.constant 4 : index
    %c64_170 = arith.constant 64 : index
    %311 = vector.load %arg14[%c4_169, %c64_170] : memref<24x192xf32, #tpu.memory_space<vmem>>, vector<16x128xf32>
    %c14_171 = arith.constant 14 : index
    %c0_172 = arith.constant 0 : index
    %312 = vector.load %arg2[%c14_171, %c0_172] : memref<25x128xf32, #tpu.memory_space<vmem>>, vector<1x128xf32>
    %313 = vector.broadcast %312 : vector<1x128xf32> to vector<16x128xf32>
    %314 = arith.mulf %311, %313 : vector<16x128xf32>
    %315 = arith.addf %310, %314 : vector<16x128xf32>
    %c6_173 = arith.constant 6 : index
    %c0_174 = arith.constant 0 : index
    %316 = vector.load %arg14[%c6_173, %c0_174] : memref<24x192xf32, #tpu.memory_space<vmem>>, vector<16x128xf32>
    %c15_175 = arith.constant 15 : index
    %c0_176 = arith.constant 0 : index
    %317 = vector.load %arg2[%c15_175, %c0_176] : memref<25x128xf32, #tpu.memory_space<vmem>>, vector<1x128xf32>
    %318 = vector.broadcast %317 : vector<1x128xf32> to vector<16x128xf32>
    %319 = arith.mulf %316, %318 : vector<16x128xf32>
    %320 = arith.addf %315, %319 : vector<16x128xf32>
    %c6_177 = arith.constant 6 : index
    %c16_178 = arith.constant 16 : index
    %321 = vector.load %arg14[%c6_177, %c16_178] : memref<24x192xf32, #tpu.memory_space<vmem>>, vector<16x128xf32>
    %c16_179 = arith.constant 16 : index
    %c0_180 = arith.constant 0 : index
    %322 = vector.load %arg2[%c16_179, %c0_180] : memref<25x128xf32, #tpu.memory_space<vmem>>, vector<1x128xf32>
    %323 = vector.broadcast %322 : vector<1x128xf32> to vector<16x128xf32>
    %324 = arith.mulf %321, %323 : vector<16x128xf32>
    %325 = arith.addf %320, %324 : vector<16x128xf32>
    %c6_181 = arith.constant 6 : index
    %c32_182 = arith.constant 32 : index
    %326 = vector.load %arg14[%c6_181, %c32_182] : memref<24x192xf32, #tpu.memory_space<vmem>>, vector<16x128xf32>
    %c17_183 = arith.constant 17 : index
    %c0_184 = arith.constant 0 : index
    %327 = vector.load %arg2[%c17_183, %c0_184] : memref<25x128xf32, #tpu.memory_space<vmem>>, vector<1x128xf32>
    %328 = vector.broadcast %327 : vector<1x128xf32> to vector<16x128xf32>
    %329 = arith.mulf %326, %328 : vector<16x128xf32>
    %330 = arith.addf %325, %329 : vector<16x128xf32>
    %c6_185 = arith.constant 6 : index
    %c48_186 = arith.constant 48 : index
    %331 = vector.load %arg14[%c6_185, %c48_186] : memref<24x192xf32, #tpu.memory_space<vmem>>, vector<16x128xf32>
    %c18_187 = arith.constant 18 : index
    %c0_188 = arith.constant 0 : index
    %332 = vector.load %arg2[%c18_187, %c0_188] : memref<25x128xf32, #tpu.memory_space<vmem>>, vector<1x128xf32>
    %333 = vector.broadcast %332 : vector<1x128xf32> to vector<16x128xf32>
    %334 = arith.mulf %331, %333 : vector<16x128xf32>
    %335 = arith.addf %330, %334 : vector<16x128xf32>
    %c6_189 = arith.constant 6 : index
    %c64_190 = arith.constant 64 : index
    %336 = vector.load %arg14[%c6_189, %c64_190] : memref<24x192xf32, #tpu.memory_space<vmem>>, vector<16x128xf32>
    %c19 = arith.constant 19 : index
    %c0_191 = arith.constant 0 : index
    %337 = vector.load %arg2[%c19, %c0_191] : memref<25x128xf32, #tpu.memory_space<vmem>>, vector<1x128xf32>
    %338 = vector.broadcast %337 : vector<1x128xf32> to vector<16x128xf32>
    %339 = arith.mulf %336, %338 : vector<16x128xf32>
    %340 = arith.addf %335, %339 : vector<16x128xf32>
    %c8_192 = arith.constant 8 : index
    %c0_193 = arith.constant 0 : index
    %341 = vector.load %arg14[%c8_192, %c0_193] : memref<24x192xf32, #tpu.memory_space<vmem>>, vector<16x128xf32>
    %c20_194 = arith.constant 20 : index
    %c0_195 = arith.constant 0 : index
    %342 = vector.load %arg2[%c20_194, %c0_195] : memref<25x128xf32, #tpu.memory_space<vmem>>, vector<1x128xf32>
    %343 = vector.broadcast %342 : vector<1x128xf32> to vector<16x128xf32>
    %344 = arith.mulf %341, %343 : vector<16x128xf32>
    %345 = arith.addf %340, %344 : vector<16x128xf32>
    %c8_196 = arith.constant 8 : index
    %c16_197 = arith.constant 16 : index
    %346 = vector.load %arg14[%c8_196, %c16_197] : memref<24x192xf32, #tpu.memory_space<vmem>>, vector<16x128xf32>
    %c21 = arith.constant 21 : index
    %c0_198 = arith.constant 0 : index
    %347 = vector.load %arg2[%c21, %c0_198] : memref<25x128xf32, #tpu.memory_space<vmem>>, vector<1x128xf32>
    %348 = vector.broadcast %347 : vector<1x128xf32> to vector<16x128xf32>
    %349 = arith.mulf %346, %348 : vector<16x128xf32>
    %350 = arith.addf %345, %349 : vector<16x128xf32>
    %c8_199 = arith.constant 8 : index
    %c32_200 = arith.constant 32 : index
    %351 = vector.load %arg14[%c8_199, %c32_200] : memref<24x192xf32, #tpu.memory_space<vmem>>, vector<16x128xf32>
    %c22 = arith.constant 22 : index
    %c0_201 = arith.constant 0 : index
    %352 = vector.load %arg2[%c22, %c0_201] : memref<25x128xf32, #tpu.memory_space<vmem>>, vector<1x128xf32>
    %353 = vector.broadcast %352 : vector<1x128xf32> to vector<16x128xf32>
    %354 = arith.mulf %351, %353 : vector<16x128xf32>
    %355 = arith.addf %350, %354 : vector<16x128xf32>
    %c8_202 = arith.constant 8 : index
    %c48_203 = arith.constant 48 : index
    %356 = vector.load %arg14[%c8_202, %c48_203] : memref<24x192xf32, #tpu.memory_space<vmem>>, vector<16x128xf32>
    %c23 = arith.constant 23 : index
    %c0_204 = arith.constant 0 : index
    %357 = vector.load %arg2[%c23, %c0_204] : memref<25x128xf32, #tpu.memory_space<vmem>>, vector<1x128xf32>
    %358 = vector.broadcast %357 : vector<1x128xf32> to vector<16x128xf32>
    %359 = arith.mulf %356, %358 : vector<16x128xf32>
    %360 = arith.addf %355, %359 : vector<16x128xf32>
    %c8_205 = arith.constant 8 : index
    %c64_206 = arith.constant 64 : index
    %361 = vector.load %arg14[%c8_205, %c64_206] : memref<24x192xf32, #tpu.memory_space<vmem>>, vector<16x128xf32>
    %c24 = arith.constant 24 : index
    %c0_207 = arith.constant 0 : index
    %362 = vector.load %arg2[%c24, %c0_207] : memref<25x128xf32, #tpu.memory_space<vmem>>, vector<1x128xf32>
    %363 = vector.broadcast %362 : vector<1x128xf32> to vector<16x128xf32>
    %364 = arith.mulf %361, %363 : vector<16x128xf32>
    %365 = arith.addf %360, %364 : vector<16x128xf32>
    %c0_208 = arith.constant 0 : index
    %c0_209 = arith.constant 0 : index
    %366 = vector.load %arg3[%c0_208, %c0_209] : memref<1x128xf32, #tpu.memory_space<vmem>>, vector<1x128xf32>
    %367 = vector.broadcast %366 : vector<1x128xf32> to vector<16x128xf32>
    %368 = arith.addf %365, %367 : vector<16x128xf32>
    %cst_210 = arith.constant 0.000000e+00 : f32
    %369 = vector.broadcast %cst_210 : f32 to vector<9x272xf32>
    %c0_211 = arith.constant 0 : index
    %c0_212 = arith.constant 0 : index
    %370 = vector.load %arg15[%c0_211, %c0_212] : memref<34x272xf32, #tpu.memory_space<vmem>>, vector<9x272xf32>
    tpu.vector_store %arg15[%c0_211, %c0_212], %369 {strides = array<i32>} : memref<34x272xf32, #tpu.memory_space<vmem>>, vector<9x272xf32>,
    %cst_213 = arith.constant 0.000000e+00 : f32
    %371 = vector.broadcast %cst_213 : f32 to vector<9x272xf32>
    %c25_214 = arith.constant 25 : index
    %c0_215 = arith.constant 0 : index
    %372 = vector.load %arg15[%c25_214, %c0_215] : memref<34x272xf32, #tpu.memory_space<vmem>>, vector<9x272xf32>
    tpu.vector_store %arg15[%c25_214, %c0_215], %371 {strides = array<i32>} : memref<34x272xf32, #tpu.memory_space<vmem>>, vector<9x272xf32>,
    %cst_216 = arith.constant 0.000000e+00 : f32
    %373 = vector.broadcast %cst_216 : f32 to vector<16x72xf32>
    %c9_217 = arith.constant 9 : index
    %c0_218 = arith.constant 0 : index
    %374 = vector.load %arg15[%c9_217, %c0_218] : memref<34x272xf32, #tpu.memory_space<vmem>>, vector<16x72xf32>
    tpu.vector_store %arg15[%c9_217, %c0_218], %373 {strides = array<i32>} : memref<34x272xf32, #tpu.memory_space<vmem>>, vector<16x72xf32>,
    %cst_219 = arith.constant 0.000000e+00 : f32
    %375 = vector.broadcast %cst_219 : f32 to vector<16x72xf32>
    %c9_220 = arith.constant 9 : index
    %c200 = arith.constant 200 : index
    %376 = vector.load %arg15[%c9_220, %c200] : memref<34x272xf32, #tpu.memory_space<vmem>>, vector<16x72xf32>
    tpu.vector_store %arg15[%c9_220, %c200], %375 {strides = array<i32>} : memref<34x272xf32, #tpu.memory_space<vmem>>, vector<16x72xf32>,
    %c9_221 = arith.constant 9 : index
    %c72 = arith.constant 72 : index
    %377 = vector.load %arg15[%c9_221, %c72] : memref<34x272xf32, #tpu.memory_space<vmem>>, vector<16x128xf32>
    tpu.vector_store %arg15[%c9_221, %c72], %368 {strides = array<i32>} : memref<34x272xf32, #tpu.memory_space<vmem>>, vector<16x128xf32>,
    %cst_222 = arith.constant 0.000000e+00 : f32
    %378 = vector.broadcast %cst_222 : f32 to vector<16x128xf32>
    %c0_223 = arith.constant 0 : index
    %c0_224 = arith.constant 0 : index
    %379 = vector.load %arg15[%c0_223, %c0_224] : memref<34x272xf32, #tpu.memory_space<vmem>>, vector<16x128xf32>
    %c0_225 = arith.constant 0 : index
    %c0_226 = arith.constant 0 : index
    %380 = vector.load %arg4[%c0_225, %c0_226] : memref<49x128xf32, #tpu.memory_space<vmem>>, vector<1x128xf32>
    %381 = vector.broadcast %380 : vector<1x128xf32> to vector<16x128xf32>
    %382 = arith.mulf %379, %381 : vector<16x128xf32>
    %383 = arith.addf %378, %382 : vector<16x128xf32>
    %c0_227 = arith.constant 0 : index
    %c24_228 = arith.constant 24 : index
    %384 = vector.load %arg15[%c0_227, %c24_228] : memref<34x272xf32, #tpu.memory_space<vmem>>, vector<16x128xf32>
    %c1_229 = arith.constant 1 : index
    %c0_230 = arith.constant 0 : index
    %385 = vector.load %arg4[%c1_229, %c0_230] : memref<49x128xf32, #tpu.memory_space<vmem>>, vector<1x128xf32>
    %386 = vector.broadcast %385 : vector<1x128xf32> to vector<16x128xf32>
    %387 = arith.mulf %384, %386 : vector<16x128xf32>
    %388 = arith.addf %383, %387 : vector<16x128xf32>
    %c0_231 = arith.constant 0 : index
    %c48_232 = arith.constant 48 : index
    %389 = vector.load %arg15[%c0_231, %c48_232] : memref<34x272xf32, #tpu.memory_space<vmem>>, vector<16x128xf32>
    %c2_233 = arith.constant 2 : index
    %c0_234 = arith.constant 0 : index
    %390 = vector.load %arg4[%c2_233, %c0_234] : memref<49x128xf32, #tpu.memory_space<vmem>>, vector<1x128xf32>
    %391 = vector.broadcast %390 : vector<1x128xf32> to vector<16x128xf32>
    %392 = arith.mulf %389, %391 : vector<16x128xf32>
    %393 = arith.addf %388, %392 : vector<16x128xf32>
    %c0_235 = arith.constant 0 : index
    %c72_236 = arith.constant 72 : index
    %394 = vector.load %arg15[%c0_235, %c72_236] : memref<34x272xf32, #tpu.memory_space<vmem>>, vector<16x128xf32>
    %c3_237 = arith.constant 3 : index
    %c0_238 = arith.constant 0 : index
    %395 = vector.load %arg4[%c3_237, %c0_238] : memref<49x128xf32, #tpu.memory_space<vmem>>, vector<1x128xf32>
    %396 = vector.broadcast %395 : vector<1x128xf32> to vector<16x128xf32>
    %397 = arith.mulf %394, %396 : vector<16x128xf32>
    %398 = arith.addf %393, %397 : vector<16x128xf32>
    %c0_239 = arith.constant 0 : index
    %c96 = arith.constant 96 : index
    %399 = vector.load %arg15[%c0_239, %c96] : memref<34x272xf32, #tpu.memory_space<vmem>>, vector<16x128xf32>
    %c4_240 = arith.constant 4 : index
    %c0_241 = arith.constant 0 : index
    %400 = vector.load %arg4[%c4_240, %c0_241] : memref<49x128xf32, #tpu.memory_space<vmem>>, vector<1x128xf32>
    %401 = vector.broadcast %400 : vector<1x128xf32> to vector<16x128xf32>
    %402 = arith.mulf %399, %401 : vector<16x128xf32>
    %403 = arith.addf %398, %402 : vector<16x128xf32>
    %c0_242 = arith.constant 0 : index
    %c120 = arith.constant 120 : index
    %404 = vector.load %arg15[%c0_242, %c120] : memref<34x272xf32, #tpu.memory_space<vmem>>, vector<16x128xf32>
    %c5_243 = arith.constant 5 : index
    %c0_244 = arith.constant 0 : index
    %405 = vector.load %arg4[%c5_243, %c0_244] : memref<49x128xf32, #tpu.memory_space<vmem>>, vector<1x128xf32>
    %406 = vector.broadcast %405 : vector<1x128xf32> to vector<16x128xf32>
    %407 = arith.mulf %404, %406 : vector<16x128xf32>
    %408 = arith.addf %403, %407 : vector<16x128xf32>
    %c0_245 = arith.constant 0 : index
    %c144 = arith.constant 144 : index
    %409 = vector.load %arg15[%c0_245, %c144] : memref<34x272xf32, #tpu.memory_space<vmem>>, vector<16x128xf32>
    %c6_246 = arith.constant 6 : index
    %c0_247 = arith.constant 0 : index
    %410 = vector.load %arg4[%c6_246, %c0_247] : memref<49x128xf32, #tpu.memory_space<vmem>>, vector<1x128xf32>
    %411 = vector.broadcast %410 : vector<1x128xf32> to vector<16x128xf32>
    %412 = arith.mulf %409, %411 : vector<16x128xf32>
    %413 = arith.addf %408, %412 : vector<16x128xf32>
    %c3_248 = arith.constant 3 : index
    %c0_249 = arith.constant 0 : index
    %414 = vector.load %arg15[%c3_248, %c0_249] : memref<34x272xf32, #tpu.memory_space<vmem>>, vector<16x128xf32>
    %c7_250 = arith.constant 7 : index
    %c0_251 = arith.constant 0 : index
    %415 = vector.load %arg4[%c7_250, %c0_251] : memref<49x128xf32, #tpu.memory_space<vmem>>, vector<1x128xf32>
    %416 = vector.broadcast %415 : vector<1x128xf32> to vector<16x128xf32>
    %417 = arith.mulf %414, %416 : vector<16x128xf32>
    %418 = arith.addf %413, %417 : vector<16x128xf32>
    %c3_252 = arith.constant 3 : index
    %c24_253 = arith.constant 24 : index
    %419 = vector.load %arg15[%c3_252, %c24_253] : memref<34x272xf32, #tpu.memory_space<vmem>>, vector<16x128xf32>
    %c8_254 = arith.constant 8 : index
    %c0_255 = arith.constant 0 : index
    %420 = vector.load %arg4[%c8_254, %c0_255] : memref<49x128xf32, #tpu.memory_space<vmem>>, vector<1x128xf32>
    %421 = vector.broadcast %420 : vector<1x128xf32> to vector<16x128xf32>
    %422 = arith.mulf %419, %421 : vector<16x128xf32>
    %423 = arith.addf %418, %422 : vector<16x128xf32>
    %c3_256 = arith.constant 3 : index
    %c48_257 = arith.constant 48 : index
    %424 = vector.load %arg15[%c3_256, %c48_257] : memref<34x272xf32, #tpu.memory_space<vmem>>, vector<16x128xf32>
    %c9_258 = arith.constant 9 : index
    %c0_259 = arith.constant 0 : index
    %425 = vector.load %arg4[%c9_258, %c0_259] : memref<49x128xf32, #tpu.memory_space<vmem>>, vector<1x128xf32>
    %426 = vector.broadcast %425 : vector<1x128xf32> to vector<16x128xf32>
    %427 = arith.mulf %424, %426 : vector<16x128xf32>
    %428 = arith.addf %423, %427 : vector<16x128xf32>
    %c3_260 = arith.constant 3 : index
    %c72_261 = arith.constant 72 : index
    %429 = vector.load %arg15[%c3_260, %c72_261] : memref<34x272xf32, #tpu.memory_space<vmem>>, vector<16x128xf32>
    %c10_262 = arith.constant 10 : index
    %c0_263 = arith.constant 0 : index
    %430 = vector.load %arg4[%c10_262, %c0_263] : memref<49x128xf32, #tpu.memory_space<vmem>>, vector<1x128xf32>
    %431 = vector.broadcast %430 : vector<1x128xf32> to vector<16x128xf32>
    %432 = arith.mulf %429, %431 : vector<16x128xf32>
    %433 = arith.addf %428, %432 : vector<16x128xf32>
    %c3_264 = arith.constant 3 : index
    %c96_265 = arith.constant 96 : index
    %434 = vector.load %arg15[%c3_264, %c96_265] : memref<34x272xf32, #tpu.memory_space<vmem>>, vector<16x128xf32>
    %c11_266 = arith.constant 11 : index
    %c0_267 = arith.constant 0 : index
    %435 = vector.load %arg4[%c11_266, %c0_267] : memref<49x128xf32, #tpu.memory_space<vmem>>, vector<1x128xf32>
    %436 = vector.broadcast %435 : vector<1x128xf32> to vector<16x128xf32>
    %437 = arith.mulf %434, %436 : vector<16x128xf32>
    %438 = arith.addf %433, %437 : vector<16x128xf32>
    %c3_268 = arith.constant 3 : index
    %c120_269 = arith.constant 120 : index
    %439 = vector.load %arg15[%c3_268, %c120_269] : memref<34x272xf32, #tpu.memory_space<vmem>>, vector<16x128xf32>
    %c12_270 = arith.constant 12 : index
    %c0_271 = arith.constant 0 : index
    %440 = vector.load %arg4[%c12_270, %c0_271] : memref<49x128xf32, #tpu.memory_space<vmem>>, vector<1x128xf32>
    %441 = vector.broadcast %440 : vector<1x128xf32> to vector<16x128xf32>
    %442 = arith.mulf %439, %441 : vector<16x128xf32>
    %443 = arith.addf %438, %442 : vector<16x128xf32>
    %c3_272 = arith.constant 3 : index
    %c144_273 = arith.constant 144 : index
    %444 = vector.load %arg15[%c3_272, %c144_273] : memref<34x272xf32, #tpu.memory_space<vmem>>, vector<16x128xf32>
    %c13_274 = arith.constant 13 : index
    %c0_275 = arith.constant 0 : index
    %445 = vector.load %arg4[%c13_274, %c0_275] : memref<49x128xf32, #tpu.memory_space<vmem>>, vector<1x128xf32>
    %446 = vector.broadcast %445 : vector<1x128xf32> to vector<16x128xf32>
    %447 = arith.mulf %444, %446 : vector<16x128xf32>
    %448 = arith.addf %443, %447 : vector<16x128xf32>
    %c6_276 = arith.constant 6 : index
    %c0_277 = arith.constant 0 : index
    %449 = vector.load %arg15[%c6_276, %c0_277] : memref<34x272xf32, #tpu.memory_space<vmem>>, vector<16x128xf32>
    %c14_278 = arith.constant 14 : index
    %c0_279 = arith.constant 0 : index
    %450 = vector.load %arg4[%c14_278, %c0_279] : memref<49x128xf32, #tpu.memory_space<vmem>>, vector<1x128xf32>
    %451 = vector.broadcast %450 : vector<1x128xf32> to vector<16x128xf32>
    %452 = arith.mulf %449, %451 : vector<16x128xf32>
    %453 = arith.addf %448, %452 : vector<16x128xf32>
    %c6_280 = arith.constant 6 : index
    %c24_281 = arith.constant 24 : index
    %454 = vector.load %arg15[%c6_280, %c24_281] : memref<34x272xf32, #tpu.memory_space<vmem>>, vector<16x128xf32>
    %c15_282 = arith.constant 15 : index
    %c0_283 = arith.constant 0 : index
    %455 = vector.load %arg4[%c15_282, %c0_283] : memref<49x128xf32, #tpu.memory_space<vmem>>, vector<1x128xf32>
    %456 = vector.broadcast %455 : vector<1x128xf32> to vector<16x128xf32>
    %457 = arith.mulf %454, %456 : vector<16x128xf32>
    %458 = arith.addf %453, %457 : vector<16x128xf32>
    %c6_284 = arith.constant 6 : index
    %c48_285 = arith.constant 48 : index
    %459 = vector.load %arg15[%c6_284, %c48_285] : memref<34x272xf32, #tpu.memory_space<vmem>>, vector<16x128xf32>
    %c16_286 = arith.constant 16 : index
    %c0_287 = arith.constant 0 : index
    %460 = vector.load %arg4[%c16_286, %c0_287] : memref<49x128xf32, #tpu.memory_space<vmem>>, vector<1x128xf32>
    %461 = vector.broadcast %460 : vector<1x128xf32> to vector<16x128xf32>
    %462 = arith.mulf %459, %461 : vector<16x128xf32>
    %463 = arith.addf %458, %462 : vector<16x128xf32>
    %c6_288 = arith.constant 6 : index
    %c72_289 = arith.constant 72 : index
    %464 = vector.load %arg15[%c6_288, %c72_289] : memref<34x272xf32, #tpu.memory_space<vmem>>, vector<16x128xf32>
    %c17_290 = arith.constant 17 : index
    %c0_291 = arith.constant 0 : index
    %465 = vector.load %arg4[%c17_290, %c0_291] : memref<49x128xf32, #tpu.memory_space<vmem>>, vector<1x128xf32>
    %466 = vector.broadcast %465 : vector<1x128xf32> to vector<16x128xf32>
    %467 = arith.mulf %464, %466 : vector<16x128xf32>
    %468 = arith.addf %463, %467 : vector<16x128xf32>
    %c6_292 = arith.constant 6 : index
    %c96_293 = arith.constant 96 : index
    %469 = vector.load %arg15[%c6_292, %c96_293] : memref<34x272xf32, #tpu.memory_space<vmem>>, vector<16x128xf32>
    %c18_294 = arith.constant 18 : index
    %c0_295 = arith.constant 0 : index
    %470 = vector.load %arg4[%c18_294, %c0_295] : memref<49x128xf32, #tpu.memory_space<vmem>>, vector<1x128xf32>
    %471 = vector.broadcast %470 : vector<1x128xf32> to vector<16x128xf32>
    %472 = arith.mulf %469, %471 : vector<16x128xf32>
    %473 = arith.addf %468, %472 : vector<16x128xf32>
    %c6_296 = arith.constant 6 : index
    %c120_297 = arith.constant 120 : index
    %474 = vector.load %arg15[%c6_296, %c120_297] : memref<34x272xf32, #tpu.memory_space<vmem>>, vector<16x128xf32>
    %c19_298 = arith.constant 19 : index
    %c0_299 = arith.constant 0 : index
    %475 = vector.load %arg4[%c19_298, %c0_299] : memref<49x128xf32, #tpu.memory_space<vmem>>, vector<1x128xf32>
    %476 = vector.broadcast %475 : vector<1x128xf32> to vector<16x128xf32>
    %477 = arith.mulf %474, %476 : vector<16x128xf32>
    %478 = arith.addf %473, %477 : vector<16x128xf32>
    %c6_300 = arith.constant 6 : index
    %c144_301 = arith.constant 144 : index
    %479 = vector.load %arg15[%c6_300, %c144_301] : memref<34x272xf32, #tpu.memory_space<vmem>>, vector<16x128xf32>
    %c20_302 = arith.constant 20 : index
    %c0_303 = arith.constant 0 : index
    %480 = vector.load %arg4[%c20_302, %c0_303] : memref<49x128xf32, #tpu.memory_space<vmem>>, vector<1x128xf32>
    %481 = vector.broadcast %480 : vector<1x128xf32> to vector<16x128xf32>
    %482 = arith.mulf %479, %481 : vector<16x128xf32>
    %483 = arith.addf %478, %482 : vector<16x128xf32>
    %c9_304 = arith.constant 9 : index
    %c0_305 = arith.constant 0 : index
    %484 = vector.load %arg15[%c9_304, %c0_305] : memref<34x272xf32, #tpu.memory_space<vmem>>, vector<16x128xf32>
    %c21_306 = arith.constant 21 : index
    %c0_307 = arith.constant 0 : index
    %485 = vector.load %arg4[%c21_306, %c0_307] : memref<49x128xf32, #tpu.memory_space<vmem>>, vector<1x128xf32>
    %486 = vector.broadcast %485 : vector<1x128xf32> to vector<16x128xf32>
    %487 = arith.mulf %484, %486 : vector<16x128xf32>
    %488 = arith.addf %483, %487 : vector<16x128xf32>
    %c9_308 = arith.constant 9 : index
    %c24_309 = arith.constant 24 : index
    %489 = vector.load %arg15[%c9_308, %c24_309] : memref<34x272xf32, #tpu.memory_space<vmem>>, vector<16x128xf32>
    %c22_310 = arith.constant 22 : index
    %c0_311 = arith.constant 0 : index
    %490 = vector.load %arg4[%c22_310, %c0_311] : memref<49x128xf32, #tpu.memory_space<vmem>>, vector<1x128xf32>
    %491 = vector.broadcast %490 : vector<1x128xf32> to vector<16x128xf32>
    %492 = arith.mulf %489, %491 : vector<16x128xf32>
    %493 = arith.addf %488, %492 : vector<16x128xf32>
    %c9_312 = arith.constant 9 : index
    %c48_313 = arith.constant 48 : index
    %494 = vector.load %arg15[%c9_312, %c48_313] : memref<34x272xf32, #tpu.memory_space<vmem>>, vector<16x128xf32>
    %c23_314 = arith.constant 23 : index
    %c0_315 = arith.constant 0 : index
    %495 = vector.load %arg4[%c23_314, %c0_315] : memref<49x128xf32, #tpu.memory_space<vmem>>, vector<1x128xf32>
    %496 = vector.broadcast %495 : vector<1x128xf32> to vector<16x128xf32>
    %497 = arith.mulf %494, %496 : vector<16x128xf32>
    %498 = arith.addf %493, %497 : vector<16x128xf32>
    %c9_316 = arith.constant 9 : index
    %c72_317 = arith.constant 72 : index
    %499 = vector.load %arg15[%c9_316, %c72_317] : memref<34x272xf32, #tpu.memory_space<vmem>>, vector<16x128xf32>
    %c24_318 = arith.constant 24 : index
    %c0_319 = arith.constant 0 : index
    %500 = vector.load %arg4[%c24_318, %c0_319] : memref<49x128xf32, #tpu.memory_space<vmem>>, vector<1x128xf32>
    %501 = vector.broadcast %500 : vector<1x128xf32> to vector<16x128xf32>
    %502 = arith.mulf %499, %501 : vector<16x128xf32>
    %503 = arith.addf %498, %502 : vector<16x128xf32>
    %c9_320 = arith.constant 9 : index
    %c96_321 = arith.constant 96 : index
    %504 = vector.load %arg15[%c9_320, %c96_321] : memref<34x272xf32, #tpu.memory_space<vmem>>, vector<16x128xf32>
    %c25_322 = arith.constant 25 : index
    %c0_323 = arith.constant 0 : index
    %505 = vector.load %arg4[%c25_322, %c0_323] : memref<49x128xf32, #tpu.memory_space<vmem>>, vector<1x128xf32>
    %506 = vector.broadcast %505 : vector<1x128xf32> to vector<16x128xf32>
    %507 = arith.mulf %504, %506 : vector<16x128xf32>
    %508 = arith.addf %503, %507 : vector<16x128xf32>
    %c9_324 = arith.constant 9 : index
    %c120_325 = arith.constant 120 : index
    %509 = vector.load %arg15[%c9_324, %c120_325] : memref<34x272xf32, #tpu.memory_space<vmem>>, vector<16x128xf32>
    %c26_326 = arith.constant 26 : index
    %c0_327 = arith.constant 0 : index
    %510 = vector.load %arg4[%c26_326, %c0_327] : memref<49x128xf32, #tpu.memory_space<vmem>>, vector<1x128xf32>
    %511 = vector.broadcast %510 : vector<1x128xf32> to vector<16x128xf32>
    %512 = arith.mulf %509, %511 : vector<16x128xf32>
    %513 = arith.addf %508, %512 : vector<16x128xf32>
    %c9_328 = arith.constant 9 : index
    %c144_329 = arith.constant 144 : index
    %514 = vector.load %arg15[%c9_328, %c144_329] : memref<34x272xf32, #tpu.memory_space<vmem>>, vector<16x128xf32>
    %c27_330 = arith.constant 27 : index
    %c0_331 = arith.constant 0 : index
    %515 = vector.load %arg4[%c27_330, %c0_331] : memref<49x128xf32, #tpu.memory_space<vmem>>, vector<1x128xf32>
    %516 = vector.broadcast %515 : vector<1x128xf32> to vector<16x128xf32>
    %517 = arith.mulf %514, %516 : vector<16x128xf32>
    %518 = arith.addf %513, %517 : vector<16x128xf32>
    %c12_332 = arith.constant 12 : index
    %c0_333 = arith.constant 0 : index
    %519 = vector.load %arg15[%c12_332, %c0_333] : memref<34x272xf32, #tpu.memory_space<vmem>>, vector<16x128xf32>
    %c28_334 = arith.constant 28 : index
    %c0_335 = arith.constant 0 : index
    %520 = vector.load %arg4[%c28_334, %c0_335] : memref<49x128xf32, #tpu.memory_space<vmem>>, vector<1x128xf32>
    %521 = vector.broadcast %520 : vector<1x128xf32> to vector<16x128xf32>
    %522 = arith.mulf %519, %521 : vector<16x128xf32>
    %523 = arith.addf %518, %522 : vector<16x128xf32>
    %c12_336 = arith.constant 12 : index
    %c24_337 = arith.constant 24 : index
    %524 = vector.load %arg15[%c12_336, %c24_337] : memref<34x272xf32, #tpu.memory_space<vmem>>, vector<16x128xf32>
    %c29_338 = arith.constant 29 : index
    %c0_339 = arith.constant 0 : index
    %525 = vector.load %arg4[%c29_338, %c0_339] : memref<49x128xf32, #tpu.memory_space<vmem>>, vector<1x128xf32>
    %526 = vector.broadcast %525 : vector<1x128xf32> to vector<16x128xf32>
    %527 = arith.mulf %524, %526 : vector<16x128xf32>
    %528 = arith.addf %523, %527 : vector<16x128xf32>
    %c12_340 = arith.constant 12 : index
    %c48_341 = arith.constant 48 : index
    %529 = vector.load %arg15[%c12_340, %c48_341] : memref<34x272xf32, #tpu.memory_space<vmem>>, vector<16x128xf32>
    %c30_342 = arith.constant 30 : index
    %c0_343 = arith.constant 0 : index
    %530 = vector.load %arg4[%c30_342, %c0_343] : memref<49x128xf32, #tpu.memory_space<vmem>>, vector<1x128xf32>
    %531 = vector.broadcast %530 : vector<1x128xf32> to vector<16x128xf32>
    %532 = arith.mulf %529, %531 : vector<16x128xf32>
    %533 = arith.addf %528, %532 : vector<16x128xf32>
    %c12_344 = arith.constant 12 : index
    %c72_345 = arith.constant 72 : index
    %534 = vector.load %arg15[%c12_344, %c72_345] : memref<34x272xf32, #tpu.memory_space<vmem>>, vector<16x128xf32>
    %c31_346 = arith.constant 31 : index
    %c0_347 = arith.constant 0 : index
    %535 = vector.load %arg4[%c31_346, %c0_347] : memref<49x128xf32, #tpu.memory_space<vmem>>, vector<1x128xf32>
    %536 = vector.broadcast %535 : vector<1x128xf32> to vector<16x128xf32>
    %537 = arith.mulf %534, %536 : vector<16x128xf32>
    %538 = arith.addf %533, %537 : vector<16x128xf32>
    %c12_348 = arith.constant 12 : index
    %c96_349 = arith.constant 96 : index
    %539 = vector.load %arg15[%c12_348, %c96_349] : memref<34x272xf32, #tpu.memory_space<vmem>>, vector<16x128xf32>
    %c32_350 = arith.constant 32 : index
    %c0_351 = arith.constant 0 : index
    %540 = vector.load %arg4[%c32_350, %c0_351] : memref<49x128xf32, #tpu.memory_space<vmem>>, vector<1x128xf32>
    %541 = vector.broadcast %540 : vector<1x128xf32> to vector<16x128xf32>
    %542 = arith.mulf %539, %541 : vector<16x128xf32>
    %543 = arith.addf %538, %542 : vector<16x128xf32>
    %c12_352 = arith.constant 12 : index
    %c120_353 = arith.constant 120 : index
    %544 = vector.load %arg15[%c12_352, %c120_353] : memref<34x272xf32, #tpu.memory_space<vmem>>, vector<16x128xf32>
    %c33_354 = arith.constant 33 : index
    %c0_355 = arith.constant 0 : index
    %545 = vector.load %arg4[%c33_354, %c0_355] : memref<49x128xf32, #tpu.memory_space<vmem>>, vector<1x128xf32>
    %546 = vector.broadcast %545 : vector<1x128xf32> to vector<16x128xf32>
    %547 = arith.mulf %544, %546 : vector<16x128xf32>
    %548 = arith.addf %543, %547 : vector<16x128xf32>
    %c12_356 = arith.constant 12 : index
    %c144_357 = arith.constant 144 : index
    %549 = vector.load %arg15[%c12_356, %c144_357] : memref<34x272xf32, #tpu.memory_space<vmem>>, vector<16x128xf32>
    %c34_358 = arith.constant 34 : index
    %c0_359 = arith.constant 0 : index
    %550 = vector.load %arg4[%c34_358, %c0_359] : memref<49x128xf32, #tpu.memory_space<vmem>>, vector<1x128xf32>
    %551 = vector.broadcast %550 : vector<1x128xf32> to vector<16x128xf32>
    %552 = arith.mulf %549, %551 : vector<16x128xf32>
    %553 = arith.addf %548, %552 : vector<16x128xf32>
    %c15_360 = arith.constant 15 : index
    %c0_361 = arith.constant 0 : index
    %554 = vector.load %arg15[%c15_360, %c0_361] : memref<34x272xf32, #tpu.memory_space<vmem>>, vector<16x128xf32>
    %c35_362 = arith.constant 35 : index
    %c0_363 = arith.constant 0 : index
    %555 = vector.load %arg4[%c35_362, %c0_363] : memref<49x128xf32, #tpu.memory_space<vmem>>, vector<1x128xf32>
    %556 = vector.broadcast %555 : vector<1x128xf32> to vector<16x128xf32>
    %557 = arith.mulf %554, %556 : vector<16x128xf32>
    %558 = arith.addf %553, %557 : vector<16x128xf32>
    %c15_364 = arith.constant 15 : index
    %c24_365 = arith.constant 24 : index
    %559 = vector.load %arg15[%c15_364, %c24_365] : memref<34x272xf32, #tpu.memory_space<vmem>>, vector<16x128xf32>
    %c36_366 = arith.constant 36 : index
    %c0_367 = arith.constant 0 : index
    %560 = vector.load %arg4[%c36_366, %c0_367] : memref<49x128xf32, #tpu.memory_space<vmem>>, vector<1x128xf32>
    %561 = vector.broadcast %560 : vector<1x128xf32> to vector<16x128xf32>
    %562 = arith.mulf %559, %561 : vector<16x128xf32>
    %563 = arith.addf %558, %562 : vector<16x128xf32>
    %c15_368 = arith.constant 15 : index
    %c48_369 = arith.constant 48 : index
    %564 = vector.load %arg15[%c15_368, %c48_369] : memref<34x272xf32, #tpu.memory_space<vmem>>, vector<16x128xf32>
    %c37_370 = arith.constant 37 : index
    %c0_371 = arith.constant 0 : index
    %565 = vector.load %arg4[%c37_370, %c0_371] : memref<49x128xf32, #tpu.memory_space<vmem>>, vector<1x128xf32>
    %566 = vector.broadcast %565 : vector<1x128xf32> to vector<16x128xf32>
    %567 = arith.mulf %564, %566 : vector<16x128xf32>
    %568 = arith.addf %563, %567 : vector<16x128xf32>
    %c15_372 = arith.constant 15 : index
    %c72_373 = arith.constant 72 : index
    %569 = vector.load %arg15[%c15_372, %c72_373] : memref<34x272xf32, #tpu.memory_space<vmem>>, vector<16x128xf32>
    %c38_374 = arith.constant 38 : index
    %c0_375 = arith.constant 0 : index
    %570 = vector.load %arg4[%c38_374, %c0_375] : memref<49x128xf32, #tpu.memory_space<vmem>>, vector<1x128xf32>
    %571 = vector.broadcast %570 : vector<1x128xf32> to vector<16x128xf32>
    %572 = arith.mulf %569, %571 : vector<16x128xf32>
    %573 = arith.addf %568, %572 : vector<16x128xf32>
    %c15_376 = arith.constant 15 : index
    %c96_377 = arith.constant 96 : index
    %574 = vector.load %arg15[%c15_376, %c96_377] : memref<34x272xf32, #tpu.memory_space<vmem>>, vector<16x128xf32>
    %c39_378 = arith.constant 39 : index
    %c0_379 = arith.constant 0 : index
    %575 = vector.load %arg4[%c39_378, %c0_379] : memref<49x128xf32, #tpu.memory_space<vmem>>, vector<1x128xf32>
    %576 = vector.broadcast %575 : vector<1x128xf32> to vector<16x128xf32>
    %577 = arith.mulf %574, %576 : vector<16x128xf32>
    %578 = arith.addf %573, %577 : vector<16x128xf32>
    %c15_380 = arith.constant 15 : index
    %c120_381 = arith.constant 120 : index
    %579 = vector.load %arg15[%c15_380, %c120_381] : memref<34x272xf32, #tpu.memory_space<vmem>>, vector<16x128xf32>
    %c40 = arith.constant 40 : index
    %c0_382 = arith.constant 0 : index
    %580 = vector.load %arg4[%c40, %c0_382] : memref<49x128xf32, #tpu.memory_space<vmem>>, vector<1x128xf32>
    %581 = vector.broadcast %580 : vector<1x128xf32> to vector<16x128xf32>
    %582 = arith.mulf %579, %581 : vector<16x128xf32>
    %583 = arith.addf %578, %582 : vector<16x128xf32>
    %c15_383 = arith.constant 15 : index
    %c144_384 = arith.constant 144 : index
    %584 = vector.load %arg15[%c15_383, %c144_384] : memref<34x272xf32, #tpu.memory_space<vmem>>, vector<16x128xf32>
    %c41 = arith.constant 41 : index
    %c0_385 = arith.constant 0 : index
    %585 = vector.load %arg4[%c41, %c0_385] : memref<49x128xf32, #tpu.memory_space<vmem>>, vector<1x128xf32>
    %586 = vector.broadcast %585 : vector<1x128xf32> to vector<16x128xf32>
    %587 = arith.mulf %584, %586 : vector<16x128xf32>
    %588 = arith.addf %583, %587 : vector<16x128xf32>
    %c18_386 = arith.constant 18 : index
    %c0_387 = arith.constant 0 : index
    %589 = vector.load %arg15[%c18_386, %c0_387] : memref<34x272xf32, #tpu.memory_space<vmem>>, vector<16x128xf32>
    %c42 = arith.constant 42 : index
    %c0_388 = arith.constant 0 : index
    %590 = vector.load %arg4[%c42, %c0_388] : memref<49x128xf32, #tpu.memory_space<vmem>>, vector<1x128xf32>
    %591 = vector.broadcast %590 : vector<1x128xf32> to vector<16x128xf32>
    %592 = arith.mulf %589, %591 : vector<16x128xf32>
    %593 = arith.addf %588, %592 : vector<16x128xf32>
    %c18_389 = arith.constant 18 : index
    %c24_390 = arith.constant 24 : index
    %594 = vector.load %arg15[%c18_389, %c24_390] : memref<34x272xf32, #tpu.memory_space<vmem>>, vector<16x128xf32>
    %c43 = arith.constant 43 : index
    %c0_391 = arith.constant 0 : index
    %595 = vector.load %arg4[%c43, %c0_391] : memref<49x128xf32, #tpu.memory_space<vmem>>, vector<1x128xf32>
    %596 = vector.broadcast %595 : vector<1x128xf32> to vector<16x128xf32>
    %597 = arith.mulf %594, %596 : vector<16x128xf32>
    %598 = arith.addf %593, %597 : vector<16x128xf32>
    %c18_392 = arith.constant 18 : index
    %c48_393 = arith.constant 48 : index
    %599 = vector.load %arg15[%c18_392, %c48_393] : memref<34x272xf32, #tpu.memory_space<vmem>>, vector<16x128xf32>
    %c44 = arith.constant 44 : index
    %c0_394 = arith.constant 0 : index
    %600 = vector.load %arg4[%c44, %c0_394] : memref<49x128xf32, #tpu.memory_space<vmem>>, vector<1x128xf32>
    %601 = vector.broadcast %600 : vector<1x128xf32> to vector<16x128xf32>
    %602 = arith.mulf %599, %601 : vector<16x128xf32>
    %603 = arith.addf %598, %602 : vector<16x128xf32>
    %c18_395 = arith.constant 18 : index
    %c72_396 = arith.constant 72 : index
    %604 = vector.load %arg15[%c18_395, %c72_396] : memref<34x272xf32, #tpu.memory_space<vmem>>, vector<16x128xf32>
    %c45 = arith.constant 45 : index
    %c0_397 = arith.constant 0 : index
    %605 = vector.load %arg4[%c45, %c0_397] : memref<49x128xf32, #tpu.memory_space<vmem>>, vector<1x128xf32>
    %606 = vector.broadcast %605 : vector<1x128xf32> to vector<16x128xf32>
    %607 = arith.mulf %604, %606 : vector<16x128xf32>
    %608 = arith.addf %603, %607 : vector<16x128xf32>
    %c18_398 = arith.constant 18 : index
    %c96_399 = arith.constant 96 : index
    %609 = vector.load %arg15[%c18_398, %c96_399] : memref<34x272xf32, #tpu.memory_space<vmem>>, vector<16x128xf32>
    %c46 = arith.constant 46 : index
    %c0_400 = arith.constant 0 : index
    %610 = vector.load %arg4[%c46, %c0_400] : memref<49x128xf32, #tpu.memory_space<vmem>>, vector<1x128xf32>
    %611 = vector.broadcast %610 : vector<1x128xf32> to vector<16x128xf32>
    %612 = arith.mulf %609, %611 : vector<16x128xf32>
    %613 = arith.addf %608, %612 : vector<16x128xf32>
    %c18_401 = arith.constant 18 : index
    %c120_402 = arith.constant 120 : index
    %614 = vector.load %arg15[%c18_401, %c120_402] : memref<34x272xf32, #tpu.memory_space<vmem>>, vector<16x128xf32>
    %c47 = arith.constant 47 : index
    %c0_403 = arith.constant 0 : index
    %615 = vector.load %arg4[%c47, %c0_403] : memref<49x128xf32, #tpu.memory_space<vmem>>, vector<1x128xf32>
    %616 = vector.broadcast %615 : vector<1x128xf32> to vector<16x128xf32>
    %617 = arith.mulf %614, %616 : vector<16x128xf32>
    %618 = arith.addf %613, %617 : vector<16x128xf32>
    %c18_404 = arith.constant 18 : index
    %c144_405 = arith.constant 144 : index
    %619 = vector.load %arg15[%c18_404, %c144_405] : memref<34x272xf32, #tpu.memory_space<vmem>>, vector<16x128xf32>
    %c48_406 = arith.constant 48 : index
    %c0_407 = arith.constant 0 : index
    %620 = vector.load %arg4[%c48_406, %c0_407] : memref<49x128xf32, #tpu.memory_space<vmem>>, vector<1x128xf32>
    %621 = vector.broadcast %620 : vector<1x128xf32> to vector<16x128xf32>
    %622 = arith.mulf %619, %621 : vector<16x128xf32>
    %623 = arith.addf %618, %622 : vector<16x128xf32>
    %c0_408 = arith.constant 0 : index
    %c0_409 = arith.constant 0 : index
    %624 = vector.load %arg5[%c0_408, %c0_409] : memref<1x128xf32, #tpu.memory_space<vmem>>, vector<1x128xf32>
    %625 = vector.broadcast %624 : vector<1x128xf32> to vector<16x128xf32>
    %626 = arith.addf %623, %625 : vector<16x128xf32>
    %cst_410 = arith.constant 0.000000e+00 : f32
    %627 = vector.broadcast %cst_410 : f32 to vector<16x128xf32>
    %c3_411 = arith.constant 3 : index
    %c24_412 = arith.constant 24 : index
    %628 = vector.load %arg14[%c3_411, %c24_412] : memref<24x192xf32, #tpu.memory_space<vmem>>, vector<16x128xf32>
    %c0_413 = arith.constant 0 : index
    %c0_414 = arith.constant 0 : index
    %629 = vector.load %arg6[%c0_413, %c0_414] : memref<9x128xf32, #tpu.memory_space<vmem>>, vector<1x128xf32>
    %630 = vector.broadcast %629 : vector<1x128xf32> to vector<16x128xf32>
    %631 = arith.mulf %628, %630 : vector<16x128xf32>
    %632 = arith.addf %627, %631 : vector<16x128xf32>
    %c3_415 = arith.constant 3 : index
    %c32_416 = arith.constant 32 : index
    %633 = vector.load %arg14[%c3_415, %c32_416] : memref<24x192xf32, #tpu.memory_space<vmem>>, vector<16x128xf32>
    %c1_417 = arith.constant 1 : index
    %c0_418 = arith.constant 0 : index
    %634 = vector.load %arg6[%c1_417, %c0_418] : memref<9x128xf32, #tpu.memory_space<vmem>>, vector<1x128xf32>
    %635 = vector.broadcast %634 : vector<1x128xf32> to vector<16x128xf32>
    %636 = arith.mulf %633, %635 : vector<16x128xf32>
    %637 = arith.addf %632, %636 : vector<16x128xf32>
    %c3_419 = arith.constant 3 : index
    %c40_420 = arith.constant 40 : index
    %638 = vector.load %arg14[%c3_419, %c40_420] : memref<24x192xf32, #tpu.memory_space<vmem>>, vector<16x128xf32>
    %c2_421 = arith.constant 2 : index
    %c0_422 = arith.constant 0 : index
    %639 = vector.load %arg6[%c2_421, %c0_422] : memref<9x128xf32, #tpu.memory_space<vmem>>, vector<1x128xf32>
    %640 = vector.broadcast %639 : vector<1x128xf32> to vector<16x128xf32>
    %641 = arith.mulf %638, %640 : vector<16x128xf32>
    %642 = arith.addf %637, %641 : vector<16x128xf32>
    %c4_423 = arith.constant 4 : index
    %c24_424 = arith.constant 24 : index
    %643 = vector.load %arg14[%c4_423, %c24_424] : memref<24x192xf32, #tpu.memory_space<vmem>>, vector<16x128xf32>
    %c3_425 = arith.constant 3 : index
    %c0_426 = arith.constant 0 : index
    %644 = vector.load %arg6[%c3_425, %c0_426] : memref<9x128xf32, #tpu.memory_space<vmem>>, vector<1x128xf32>
    %645 = vector.broadcast %644 : vector<1x128xf32> to vector<16x128xf32>
    %646 = arith.mulf %643, %645 : vector<16x128xf32>
    %647 = arith.addf %642, %646 : vector<16x128xf32>
    %c4_427 = arith.constant 4 : index
    %c32_428 = arith.constant 32 : index
    %648 = vector.load %arg14[%c4_427, %c32_428] : memref<24x192xf32, #tpu.memory_space<vmem>>, vector<16x128xf32>
    %c4_429 = arith.constant 4 : index
    %c0_430 = arith.constant 0 : index
    %649 = vector.load %arg6[%c4_429, %c0_430] : memref<9x128xf32, #tpu.memory_space<vmem>>, vector<1x128xf32>
    %650 = vector.broadcast %649 : vector<1x128xf32> to vector<16x128xf32>
    %651 = arith.mulf %648, %650 : vector<16x128xf32>
    %652 = arith.addf %647, %651 : vector<16x128xf32>
    %c4_431 = arith.constant 4 : index
    %c40_432 = arith.constant 40 : index
    %653 = vector.load %arg14[%c4_431, %c40_432] : memref<24x192xf32, #tpu.memory_space<vmem>>, vector<16x128xf32>
    %c5_433 = arith.constant 5 : index
    %c0_434 = arith.constant 0 : index
    %654 = vector.load %arg6[%c5_433, %c0_434] : memref<9x128xf32, #tpu.memory_space<vmem>>, vector<1x128xf32>
    %655 = vector.broadcast %654 : vector<1x128xf32> to vector<16x128xf32>
    %656 = arith.mulf %653, %655 : vector<16x128xf32>
    %657 = arith.addf %652, %656 : vector<16x128xf32>
    %c5_435 = arith.constant 5 : index
    %c24_436 = arith.constant 24 : index
    %658 = vector.load %arg14[%c5_435, %c24_436] : memref<24x192xf32, #tpu.memory_space<vmem>>, vector<16x128xf32>
    %c6_437 = arith.constant 6 : index
    %c0_438 = arith.constant 0 : index
    %659 = vector.load %arg6[%c6_437, %c0_438] : memref<9x128xf32, #tpu.memory_space<vmem>>, vector<1x128xf32>
    %660 = vector.broadcast %659 : vector<1x128xf32> to vector<16x128xf32>
    %661 = arith.mulf %658, %660 : vector<16x128xf32>
    %662 = arith.addf %657, %661 : vector<16x128xf32>
    %c5_439 = arith.constant 5 : index
    %c32_440 = arith.constant 32 : index
    %663 = vector.load %arg14[%c5_439, %c32_440] : memref<24x192xf32, #tpu.memory_space<vmem>>, vector<16x128xf32>
    %c7_441 = arith.constant 7 : index
    %c0_442 = arith.constant 0 : index
    %664 = vector.load %arg6[%c7_441, %c0_442] : memref<9x128xf32, #tpu.memory_space<vmem>>, vector<1x128xf32>
    %665 = vector.broadcast %664 : vector<1x128xf32> to vector<16x128xf32>
    %666 = arith.mulf %663, %665 : vector<16x128xf32>
    %667 = arith.addf %662, %666 : vector<16x128xf32>
    %c5_443 = arith.constant 5 : index
    %c40_444 = arith.constant 40 : index
    %668 = vector.load %arg14[%c5_443, %c40_444] : memref<24x192xf32, #tpu.memory_space<vmem>>, vector<16x128xf32>
    %c8_445 = arith.constant 8 : index
    %c0_446 = arith.constant 0 : index
    %669 = vector.load %arg6[%c8_445, %c0_446] : memref<9x128xf32, #tpu.memory_space<vmem>>, vector<1x128xf32>
    %670 = vector.broadcast %669 : vector<1x128xf32> to vector<16x128xf32>
    %671 = arith.mulf %668, %670 : vector<16x128xf32>
    %672 = arith.addf %667, %671 : vector<16x128xf32>
    %c0_447 = arith.constant 0 : index
    %c0_448 = arith.constant 0 : index
    %673 = vector.load %arg7[%c0_447, %c0_448] : memref<1x128xf32, #tpu.memory_space<vmem>>, vector<1x128xf32>
    %674 = vector.broadcast %673 : vector<1x128xf32> to vector<16x128xf32>
    %675 = arith.addf %672, %674 : vector<16x128xf32>
    %676 = arith.mulf %626, %239 : vector<16x128xf32>
    %677 = arith.addf %676, %675 : vector<16x128xf32>
    %cst_449 = arith.constant dense<0.000000e+00> : vector<128xf32>
    %678 = vector.multi_reduction <add>, %677, %cst_449 [0] : vector<16x128xf32> to vector<128xf32>
    %679 = vector.shape_cast %678 : vector<128xf32> to vector<1x128xf32>
    %c8_i32 = arith.constant 8 : i32
    %680 = tpu.dynamic_rotate %679 by %c8_i32 dim 1 : vector<1x128xf32>, i32 -> vector<1x128xf32>
    %681 = arith.addf %679, %680 : vector<1x128xf32>
    %c16_i32 = arith.constant 16 : i32
    %682 = tpu.dynamic_rotate %681 by %c16_i32 dim 1 : vector<1x128xf32>, i32 -> vector<1x128xf32>
    %683 = arith.addf %681, %682 : vector<1x128xf32>
    %c32_i32 = arith.constant 32 : i32
    %684 = tpu.dynamic_rotate %683 by %c32_i32 dim 1 : vector<1x128xf32>, i32 -> vector<1x128xf32>
    %685 = arith.addf %683, %684 : vector<1x128xf32>
    %c64_i32 = arith.constant 64 : i32
    %686 = tpu.dynamic_rotate %685 by %c64_i32 dim 1 : vector<1x128xf32>, i32 -> vector<1x128xf32>
    %687 = arith.addf %685, %686 : vector<1x128xf32>
    %cst_450 = arith.constant 3.906250e-03 : f32
    %688 = vector.broadcast %cst_450 : f32 to vector<1x128xf32>
    %689 = arith.mulf %687, %688 : vector<1x128xf32>
    %c0_451 = arith.constant 0 : index
    %c0_452 = arith.constant 0 : index
    %690 = vector.load %arg9[%c0_451, %c0_452] : memref<1x128xf32, #tpu.memory_space<vmem>>, vector<1x128xf32>
    %691 = vector.broadcast %689 : vector<1x128xf32> to vector<16x128xf32>
    %692 = arith.subf %677, %691 : vector<16x128xf32>
    %693 = vector.broadcast %690 : vector<1x128xf32> to vector<16x128xf32>
    %694 = arith.mulf %693, %692 : vector<16x128xf32>
    %695 = arith.mulf %694, %677 : vector<16x128xf32>
    %c0_453 = arith.constant 0 : index
    %c0_454 = arith.constant 0 : index
    %696 = vector.load %arg10[%c0_453, %c0_454] : memref<1x128xf32, #tpu.memory_space<vmem>>, vector<1x128xf32>
    %697 = vector.broadcast %696 : vector<1x128xf32> to vector<16x128xf32>
    %698 = arith.mulf %697, %677 : vector<16x128xf32>
    %699 = arith.addf %695, %698 : vector<16x128xf32>
    %c0_455 = arith.constant 0 : index
    %c0_456 = arith.constant 0 : index
    %700 = vector.load %arg11[%c0_455, %c0_456] : memref<1x128xf32, #tpu.memory_space<vmem>>, vector<1x128xf32>
    %701 = vector.broadcast %700 : vector<1x128xf32> to vector<16x128xf32>
    %702 = arith.mulf %701, %699 : vector<16x128xf32>
    %c0_457 = arith.constant 0 : index
    %c0_458 = arith.constant 0 : index
    %703 = vector.load %arg12[%c0_457, %c0_458] : memref<1x128xf32, #tpu.memory_space<vmem>>, vector<1x128xf32>
    %704 = vector.broadcast %703 : vector<1x128xf32> to vector<16x128xf32>
    %705 = arith.mulf %704, %1 : vector<16x128xf32>
    %706 = arith.addf %702, %705 : vector<16x128xf32>
    %c0_459 = arith.constant 0 : index
    %c0_460 = arith.constant 0 : index
    %c0_461 = arith.constant 0 : index
    %707 = vector.load %arg13[%c0_459, %c0_460, %c0_461] : memref<1x16x128xf32, #tpu.memory_space<vmem>>, vector<1x16x128xf32>
    %708 = vector.shape_cast %707 : vector<1x16x128xf32> to vector<16x128xf32>
    %709 = vector.shape_cast %706 : vector<16x128xf32> to vector<1x16x128xf32>
    tpu.vector_store %arg13[%c0_459, %c0_460, %c0_461], %709 {strides = array<i32>} : memref<1x16x128xf32, #tpu.memory_space<vmem>>, vector<1x16x128xf32>,
    return
  }
  func.func @transform_0(%arg0: i32) -> (i32, i32, i32) {
    %c0_i32 = arith.constant 0 : i32
    %c0_i32_0 = arith.constant 0 : i32
    %c0_i32_1 = arith.constant 0 : i32
    return %arg0, %c0_i32, %c0_i32_0 : i32, i32, i32
  }
  func.func @transform_1(%arg0: i32) -> (i32, i32) {
    %c0_i32 = arith.constant 0 : i32
    %c0_i32_0 = arith.constant 0 : i32
    %c0_i32_1 = arith.constant 0 : i32
    return %c0_i32, %c0_i32_0 : i32, i32
  }
  func.func @transform_2(%arg0: i32) -> (i32, i32) {
    %c0_i32 = arith.constant 0 : i32
    %c0_i32_0 = arith.constant 0 : i32
    %c0_i32_1 = arith.constant 0 : i32
    return %c0_i32, %c0_i32_0 : i32, i32
  }
  func.func @transform_3(%arg0: i32) -> (i32, i32) {
    %c0_i32 = arith.constant 0 : i32
    %c0_i32_0 = arith.constant 0 : i32
    %c0_i32_1 = arith.constant 0 : i32
    return %c0_i32, %c0_i32_0 : i32, i32
  }
  func.func @transform_4(%arg0: i32) -> (i32, i32) {
    %c0_i32 = arith.constant 0 : i32
    %c0_i32_0 = arith.constant 0 : i32
    %c0_i32_1 = arith.constant 0 : i32
    return %c0_i32, %c0_i32_0 : i32, i32
  }
  func.func @transform_5(%arg0: i32) -> (i32, i32) {
    %c0_i32 = arith.constant 0 : i32
    %c0_i32_0 = arith.constant 0 : i32
    %c0_i32_1 = arith.constant 0 : i32
    return %c0_i32, %c0_i32_0 : i32, i32
  }
  func.func @transform_6(%arg0: i32) -> (i32, i32) {
    %c0_i32 = arith.constant 0 : i32
    %c0_i32_0 = arith.constant 0 : i32
    %c0_i32_1 = arith.constant 0 : i32
    return %c0_i32, %c0_i32_0 : i32, i32
  }
  func.func @transform_7(%arg0: i32) -> i32 {
    %c0_i32 = arith.constant 0 : i32
    %c0_i32_0 = arith.constant 0 : i32
    return %c0_i32 : i32
  }
  func.func @transform_8(%arg0: i32) -> (i32, i32) {
    %c0_i32 = arith.constant 0 : i32
    %c0_i32_0 = arith.constant 0 : i32
    %c0_i32_1 = arith.constant 0 : i32
    return %c0_i32, %c0_i32_0 : i32, i32
  }
  func.func @transform_9(%arg0: i32) -> (i32, i32) {
    %c0_i32 = arith.constant 0 : i32
    %c0_i32_0 = arith.constant 0 : i32
    %c0_i32_1 = arith.constant 0 : i32
    return %c0_i32, %c0_i32_0 : i32, i32
  }
  func.func @transform_10(%arg0: i32) -> (i32, i32) {
    %c0_i32 = arith.constant 0 : i32
    %c0_i32_0 = arith.constant 0 : i32
    %c0_i32_1 = arith.constant 0 : i32
    return %c0_i32, %c0_i32_0 : i32, i32
  }
  func.func @transform_11(%arg0: i32) -> (i32, i32) {
    %c0_i32 = arith.constant 0 : i32
    %c0_i32_0 = arith.constant 0 : i32
    %c0_i32_1 = arith.constant 0 : i32
    return %c0_i32, %c0_i32_0 : i32, i32
  }
  func.func @transform_12(%arg0: i32) -> (i32, i32, i32) {
    %c0_i32 = arith.constant 0 : i32
    %c0_i32_0 = arith.constant 0 : i32
    %c0_i32_1 = arith.constant 0 : i32
    return %arg0, %c0_i32, %c0_i32_0 : i32, i32, i32
  }
}

</mosaic_0001>

<llo_original>
// kernel: tpu_custom_call.1
$region0: #{tpu_custom_call.1}
  #allocation0 [shape = 'u32[]', space=smem, size = 0x4, offset = 0x4, fixed_abs, tag = 'smem constant byte address 0x4 - core index']
  #allocation1 [shape = 'u32[144,128]{1,0:T(1,128)}', space=vmem, size = 0x12000, scoped, tag = 'internal scratch']
  #allocation2 [shape = 'f32[24,192]{1,0:T(8,128)}', space=vmem, size = 0x6000, scoped, tag = 'scratch operand']
  #allocation3 [shape = 'f32[34,272]{1,0:T(8,128)}', space=vmem, size = 0xf000, scoped, tag = 'scratch operand']
  #allocation4 [shape = 'f32[18,144]{1,0:T(8,128)}', space=vmem, size = 0x6000, scoped, tag = 'scratch operand']
  #allocation5 [shape = 'f32[18,144]{1,0:T(8,128)}', space=vmem, size = 0x6000, scoped, tag = 'scratch operand']
  %s0 = inlined_call_operand.hbm [shape: f32[2,16,128], index: 0, kind: input, shape index: {}]
  %s1 = inlined_call_operand.hbm [shape: f32[25,128], index: 1, kind: input, shape index: {}]
  %s2 = inlined_call_operand.vmem [shape: f32[1,128], index: 2, kind: input, shape index: {}]
  %s3 = inlined_call_operand.hbm [shape: f32[49,128], index: 3, kind: input, shape index: {}]
  %s4 = inlined_call_operand.vmem [shape: f32[1,128], index: 4, kind: input, shape index: {}]
  %s5 = inlined_call_operand.vmem [shape: f32[9,128], index: 5, kind: input, shape index: {}]
  %s6 = inlined_call_operand.vmem [shape: f32[1,128], index: 6, kind: input, shape index: {}]
  %s7 = inlined_call_operand.vmem [shape: f32[19], index: 7, kind: input, shape index: {}]
  %s8 = inlined_call_operand.vmem [shape: f32[1,128], index: 8, kind: input, shape index: {}]
  %s9 = inlined_call_operand.vmem [shape: f32[1,128], index: 9, kind: input, shape index: {}]
  %s10 = inlined_call_operand.vmem [shape: f32[1,128], index: 10, kind: input, shape index: {}]
  %s11 = inlined_call_operand.vmem [shape: f32[1,128], index: 11, kind: input, shape index: {}]
  %s12 = inlined_call_operand.hbm [shape: f32[2,16,128], index: 12, kind: output, shape index: {}]
  %s13 = sld [smem:[#allocation0]]
  $region97: #{tpu_custom_call.1} parent=0
    _
  %s15 = ssub.s32 1, %s13
  %s16 = scalar_select 0, %s15, %s13
  $region1: #{tpu_custom_call.1} parent=0
    #allocation6 [shape = 'u8[16384]{0}', space=vmem, size = 0x4000, scoped, tag = 'input window, operand 0']
    #allocation7 [shape = 's32[2]{0}', space=sflag, size = 0x8, scoped, tag = 'scoped memory for tpu_custom_call.1']
    #allocation8 [shape = 's32[2]{0}', space=sflag, size = 0x8, scoped, tag = 'scoped memory for tpu_custom_call.1']
    #allocation9 [shape = 's32[2]{0}', space=sflag, size = 0x8, scoped, tag = 'scoped memory for tpu_custom_call.1']
    #allocation10 [shape = 'u8[16384]{0}', space=vmem, size = 0x4000, scoped, tag = 'input window, operand 1, single buffered']
    #allocation11 [shape = 's32[1]{0}', space=sflag, size = 0x4, scoped, tag = 'scoped memory for tpu_custom_call.1']
    #allocation12 [shape = 'u8[28672]{0}', space=vmem, size = 0x7000, scoped, tag = 'input window, operand 3, single buffered']
    #allocation13 [shape = 'u8[512]{0}', space=smem, size = 0x200, scoped, tag = 'input window, operand 7, single buffered']
    #allocation14 [shape = 'u8[16384]{0}', space=vmem, size = 0x4000, scoped, tag = 'output window, operand 0']
    %17 = vsyncpa [#allocation7], 0
    %s18 = scalar_lea.sflag [#allocation7], 1
    %19 = vsyncpa %s18, 0
    %20 = vsyncpa [#allocation11], 0
    %21 = vsyncpa [#allocation9], 0
    %22 = vsyncpa [#allocation8], 0
    %s23 = scalar_lea.sflag [#allocation8], 1
    %24 = vsyncpa %s23, 0
    loop: start=0, step=1, limit=4
    $region2: #{tpu_custom_call.1} parent=1 // loop_pre_header
      _
    $region3: #{tpu_custom_call.1} parent=1 // loop_header
      %s26 = sphi 0, %s30
      %p27 = scmp.ge.s32.totalorder %s26, 4
      %s36 = sphi 0, %s38
      %s39 = sphi 0, %s36
      %s40 = sphi 0, %s39
      %s56 = sphi 0, %s40
      %s60 = sphi 0, %s60
      %s62 = sphi 0, %s60
      %s63 = sphi 0, %s62
      %s77 = sphi 0, %s63
      %s81 = sphi 0, %s81
      %s83 = sphi 0, %s81
      %s84 = sphi 0, %s83
      %s98 = sphi 0, %s84
      %s102 = sphi 0, %s102
      %s104 = sphi 0, %s102
      %s105 = sphi 0, %s104
      %s119 = sphi 0, %s105
      %s123 = sphi 0, %s123
      %s125 = sphi 0, %s123
      %s126 = sphi 0, %s125
      %s140 = sphi 0, %s126
      %s144 = sphi 0, %s144
      %s146 = sphi 0, %s144
      %s147 = sphi 0, %s146
      %s161 = sphi 0, %s147
      %s165 = sphi 0, %s165
      %s167 = sphi 0, %s165
      %s168 = sphi 0, %s167
      %s182 = sphi 0, %s168
      %s186 = sphi 0, %s186
      %s188 = sphi 0, %s186
      %s189 = sphi 0, %s188
      %s203 = sphi 0, %s189
      %s207 = sphi 0, %s207
      %s209 = sphi 0, %s207
      %s210 = sphi 0, %s209
      %s224 = sphi 0, %s210
      %s228 = sphi 0, %s228
      %s230 = sphi 0, %s228
      %s231 = sphi 0, %s230
      %s245 = sphi 0, %s231
      %s249 = sphi 0, %s249
      %s251 = sphi 0, %s249
      %s252 = sphi 0, %s251
      %s266 = sphi 0, %s252
      %s270 = sphi 0, %s270
      %s272 = sphi 0, %s270
      %s273 = sphi 0, %s272
      %s287 = sphi 0, %s273
      %s293 = sphi 0, %s295
      %s296 = sphi 0, %s293
      %s297 = sphi 0, %s296
      %s313 = sphi 0, %s297
    $region4: #{tpu_custom_call.1} parent=1 // loop_header_branch
      %29 = sbr.rel (%p27) target = $region8
    $region5: #{tpu_custom_call.1} parent=1 // loop_body
      %s31 = ssub.s32 %s26, 1
      %s32 = ssub.s32 %s26, 2
      %s33 = sadd.s32 %s26, 1
      %s34 = ssub.s32 %s26, %s33
      %p35 = scmp.eq.s32.totalorder %s34, 0
      %s37 = sadd.s32 %s36, 1
      %s38 = scalar_select %p35, %s36, %s37
      %p41 = pneg %p35
      %p42 = scmp.eq.s32.totalorder %s26, 1
      %p43 = por %p41, %p42
      %p44 = scmp.ne.s32.totalorder %s36, %s39
      %p45 = scmp.eq.s32.totalorder %s26, 0
      %p46 = por %p44, %p45
      %p47 = scmp.ne.s32.totalorder %s36, %s39
      %p48 = scmp.eq.s32.totalorder %s31, 1
      %p49 = por %p47, %p48
      %p50 = scmp.ne.s32.totalorder %s39, %s40
      %p51 = scmp.eq.s32.totalorder %s31, 0
      %p52 = por %p50, %p51
      %p53 = scmp.ne.s32.totalorder %s39, %s40
      %p54 = scmp.eq.s32.totalorder %s32, 1
      %p55 = por %p53, %p54
      %p57 = scmp.ne.s32.totalorder %s40, %s56
      %p58 = scmp.eq.s32.totalorder %s32, 0
      %p59 = por %p57, %p58
      %s61 = sadd.s32 %s60, 1
      %p64 = scmp.eq.s32.totalorder %s26, 1
      %p65 = scmp.ne.s32.totalorder %s60, %s62
      %p66 = scmp.eq.s32.totalorder %s26, 0
      %p67 = por %p65, %p66
      %p68 = scmp.ne.s32.totalorder %s60, %s62
      %p69 = scmp.eq.s32.totalorder %s31, 1
      %p70 = por %p68, %p69
      %p71 = scmp.ne.s32.totalorder %s62, %s63
      %p72 = scmp.eq.s32.totalorder %s31, 0
      %p73 = por %p71, %p72
      %p74 = scmp.ne.s32.totalorder %s62, %s63
      %p75 = scmp.eq.s32.totalorder %s32, 1
      %p76 = por %p74, %p75
      %p78 = scmp.ne.s32.totalorder %s63, %s77
      %p79 = scmp.eq.s32.totalorder %s32, 0
      %p80 = por %p78, %p79
      %s82 = sadd.s32 %s81, 1
      %p85 = scmp.eq.s32.totalorder %s26, 1
      %p86 = scmp.ne.s32.totalorder %s81, %s83
      %p87 = scmp.eq.s32.totalorder %s26, 0
      %p88 = por %p86, %p87
      %p89 = scmp.ne.s32.totalorder %s81, %s83
      %p90 = scmp.eq.s32.totalorder %s31, 1
      %p91 = por %p89, %p90
      %p92 = scmp.ne.s32.totalorder %s83, %s84
      %p93 = scmp.eq.s32.totalorder %s31, 0
      %p94 = por %p92, %p93
      %p95 = scmp.ne.s32.totalorder %s83, %s84
      %p96 = scmp.eq.s32.totalorder %s32, 1
      %p97 = por %p95, %p96
      %p99 = scmp.ne.s32.totalorder %s84, %s98
      %p100 = scmp.eq.s32.totalorder %s32, 0
      %p101 = por %p99, %p100
      %s103 = sadd.s32 %s102, 1
      %p106 = scmp.eq.s32.totalorder %s26, 1
      %p107 = scmp.ne.s32.totalorder %s102, %s104
      %p108 = scmp.eq.s32.totalorder %s26, 0
      %p109 = por %p107, %p108
      %p110 = scmp.ne.s32.totalorder %s102, %s104
      %p111 = scmp.eq.s32.totalorder %s31, 1
      %p112 = por %p110, %p111
      %p113 = scmp.ne.s32.totalorder %s104, %s105
      %p114 = scmp.eq.s32.totalorder %s31, 0
      %p115 = por %p113, %p114
      %p116 = scmp.ne.s32.totalorder %s104, %s105
      %p117 = scmp.eq.s32.totalorder %s32, 1
      %p118 = por %p116, %p117
      %p120 = scmp.ne.s32.totalorder %s105, %s119
      %p121 = scmp.eq.s32.totalorder %s32, 0
      %p122 = por %p120, %p121
      %s124 = sadd.s32 %s123, 1
      %p127 = scmp.eq.s32.totalorder %s26, 1
      %p128 = scmp.ne.s32.totalorder %s123, %s125
      %p129 = scmp.eq.s32.totalorder %s26, 0
      %p130 = por %p128, %p129
      %p131 = scmp.ne.s32.totalorder %s123, %s125
      %p132 = scmp.eq.s32.totalorder %s31, 1
      %p133 = por %p131, %p132
      %p134 = scmp.ne.s32.totalorder %s125, %s126
      %p135 = scmp.eq.s32.totalorder %s31, 0
      %p136 = por %p134, %p135
      %p137 = scmp.ne.s32.totalorder %s125, %s126
      %p138 = scmp.eq.s32.totalorder %s32, 1
      %p139 = por %p137, %p138
      %p141 = scmp.ne.s32.totalorder %s126, %s140
      %p142 = scmp.eq.s32.totalorder %s32, 0
      %p143 = por %p141, %p142
      %s145 = sadd.s32 %s144, 1
      %p148 = scmp.eq.s32.totalorder %s26, 1
      %p149 = scmp.ne.s32.totalorder %s144, %s146
      %p150 = scmp.eq.s32.totalorder %s26, 0
      %p151 = por %p149, %p150
      %p152 = scmp.ne.s32.totalorder %s144, %s146
      %p153 = scmp.eq.s32.totalorder %s31, 1
      %p154 = por %p152, %p153
      %p155 = scmp.ne.s32.totalorder %s146, %s147
      %p156 = scmp.eq.s32.totalorder %s31, 0
      %p157 = por %p155, %p156
      %p158 = scmp.ne.s32.totalorder %s146, %s147
      %p159 = scmp.eq.s32.totalorder %s32, 1
      %p160 = por %p158, %p159
      %p162 = scmp.ne.s32.totalorder %s147, %s161
      %p163 = scmp.eq.s32.totalorder %s32, 0
      %p164 = por %p162, %p163
      %s166 = sadd.s32 %s165, 1
      %p169 = scmp.eq.s32.totalorder %s26, 1
      %p170 = scmp.ne.s32.totalorder %s165, %s167
      %p171 = scmp.eq.s32.totalorder %s26, 0
      %p172 = por %p170, %p171
      %p173 = scmp.ne.s32.totalorder %s165, %s167
      %p174 = scmp.eq.s32.totalorder %s31, 1
      %p175 = por %p173, %p174
      %p176 = scmp.ne.s32.totalorder %s167, %s168
      %p177 = scmp.eq.s32.totalorder %s31, 0
      %p178 = por %p176, %p177
      %p179 = scmp.ne.s32.totalorder %s167, %s168
      %p180 = scmp.eq.s32.totalorder %s32, 1
      %p181 = por %p179, %p180
      %p183 = scmp.ne.s32.totalorder %s168, %s182
      %p184 = scmp.eq.s32.totalorder %s32, 0
      %p185 = por %p183, %p184
      %s187 = sadd.s32 %s186, 1
      %p190 = scmp.eq.s32.totalorder %s26, 1
      %p191 = scmp.ne.s32.totalorder %s186, %s188
      %p192 = scmp.eq.s32.totalorder %s26, 0
      %p193 = por %p191, %p192
      %p194 = scmp.ne.s32.totalorder %s186, %s188
      %p195 = scmp.eq.s32.totalorder %s31, 1
      %p196 = por %p194, %p195
      %p197 = scmp.ne.s32.totalorder %s188, %s189
      %p198 = scmp.eq.s32.totalorder %s31, 0
      %p199 = por %p197, %p198
      %p200 = scmp.ne.s32.totalorder %s188, %s189
      %p201 = scmp.eq.s32.totalorder %s32, 1
      %p202 = por %p200, %p201
      %p204 = scmp.ne.s32.totalorder %s189, %s203
      %p205 = scmp.eq.s32.totalorder %s32, 0
      %p206 = por %p204, %p205
      %s208 = sadd.s32 %s207, 1
      %p211 = scmp.eq.s32.totalorder %s26, 1
      %p212 = scmp.ne.s32.totalorder %s207, %s209
      %p213 = scmp.eq.s32.totalorder %s26, 0
      %p214 = por %p212, %p213
      %p215 = scmp.ne.s32.totalorder %s207, %s209
      %p216 = scmp.eq.s32.totalorder %s31, 1
      %p217 = por %p215, %p216
      %p218 = scmp.ne.s32.totalorder %s209, %s210
      %p219 = scmp.eq.s32.totalorder %s31, 0
      %p220 = por %p218, %p219
      %p221 = scmp.ne.s32.totalorder %s209, %s210
      %p222 = scmp.eq.s32.totalorder %s32, 1
      %p223 = por %p221, %p222
      %p225 = scmp.ne.s32.totalorder %s210, %s224
      %p226 = scmp.eq.s32.totalorder %s32, 0
      %p227 = por %p225, %p226
      %s229 = sadd.s32 %s228, 1
      %p232 = scmp.eq.s32.totalorder %s26, 1
      %p233 = scmp.ne.s32.totalorder %s228, %s230
      %p234 = scmp.eq.s32.totalorder %s26, 0
      %p235 = por %p233, %p234
      %p236 = scmp.ne.s32.totalorder %s228, %s230
      %p237 = scmp.eq.s32.totalorder %s31, 1
      %p238 = por %p236, %p237
      %p239 = scmp.ne.s32.totalorder %s230, %s231
      %p240 = scmp.eq.s32.totalorder %s31, 0
      %p241 = por %p239, %p240
      %p242 = scmp.ne.s32.totalorder %s230, %s231
      %p243 = scmp.eq.s32.totalorder %s32, 1
      %p244 = por %p242, %p243
      %p246 = scmp.ne.s32.totalorder %s231, %s245
      %p247 = scmp.eq.s32.totalorder %s32, 0
      %p248 = por %p246, %p247
      %s250 = sadd.s32 %s249, 1
      %p253 = scmp.eq.s32.totalorder %s26, 1
      %p254 = scmp.ne.s32.totalorder %s249, %s251
      %p255 = scmp.eq.s32.totalorder %s26, 0
      %p256 = por %p254, %p255
      %p257 = scmp.ne.s32.totalorder %s249, %s251
      %p258 = scmp.eq.s32.totalorder %s31, 1
      %p259 = por %p257, %p258
      %p260 = scmp.ne.s32.totalorder %s251, %s252
      %p261 = scmp.eq.s32.totalorder %s31, 0
      %p262 = por %p260, %p261
      %p263 = scmp.ne.s32.totalorder %s251, %s252
      %p264 = scmp.eq.s32.totalorder %s32, 1
      %p265 = por %p263, %p264
      %p267 = scmp.ne.s32.totalorder %s252, %s266
      %p268 = scmp.eq.s32.totalorder %s32, 0
      %p269 = por %p267, %p268
      %s271 = sadd.s32 %s270, 1
      %p274 = scmp.eq.s32.totalorder %s26, 1
      %p275 = scmp.ne.s32.totalorder %s270, %s272
      %p276 = scmp.eq.s32.totalorder %s26, 0
      %p277 = por %p275, %p276
      %p278 = scmp.ne.s32.totalorder %s270, %s272
      %p279 = scmp.eq.s32.totalorder %s31, 1
      %p280 = por %p278, %p279
      %p281 = scmp.ne.s32.totalorder %s272, %s273
      %p282 = scmp.eq.s32.totalorder %s31, 0
      %p283 = por %p281, %p282
      %p284 = scmp.ne.s32.totalorder %s272, %s273
      %p285 = scmp.eq.s32.totalorder %s32, 1
      %p286 = por %p284, %p285
      %p288 = scmp.ne.s32.totalorder %s273, %s287
      %p289 = scmp.eq.s32.totalorder %s32, 0
      %p290 = por %p288, %p289
      %s291 = ssub.s32 %s26, %s33
      %p292 = scmp.eq.s32.totalorder %s291, 0
      %s294 = sadd.s32 %s293, 1
      %s295 = scalar_select %p292, %s293, %s294
      %p298 = pneg %p292
      %p299 = scmp.eq.s32.totalorder %s26, 1
      %p300 = por %p298, %p299
      %p301 = scmp.ne.s32.totalorder %s293, %s296
      %p302 = scmp.eq.s32.totalorder %s26, 0
      %p303 = por %p301, %p302
      %p304 = scmp.ne.s32.totalorder %s293, %s296
      %p305 = scmp.eq.s32.totalorder %s31, 1
      %p306 = por %p304, %p305
      %p307 = scmp.ne.s32.totalorder %s296, %s297
      %p308 = scmp.eq.s32.totalorder %s31, 0
      %p309 = por %p307, %p308
      %p310 = scmp.ne.s32.totalorder %s296, %s297
      %p311 = scmp.eq.s32.totalorder %s32, 1
      %p312 = por %p310, %p311
      %p314 = scmp.ne.s32.totalorder %s297, %s313
      %p315 = scmp.eq.s32.totalorder %s32, 0
      %p316 = por %p314, %p315
      %p317 = scmp.le.s32.totalorder 1, %s26
      %p318 = scmp.lt.s32.totalorder %s26, 3
      %p319 = pnand %p317, %p318
      %p320 = pneg %p319
      // Predicated region
      $region9: #{tpu_custom_call.1} parent=5 // pred_check
        _
      $region10: #{tpu_custom_call.1} parent=5 // pred_check_branch
        %322 = sbr.rel (%p319) target = $region12
      $region11: #{tpu_custom_call.1} parent=5 // pred_region
        %s323 = ssub.s32 %s26, 1
        // Predicated region
        $region13: #{tpu_custom_call.1} parent=11 // pred_check
          %p324 = pneg %p73
        $region14: #{tpu_custom_call.1} parent=11 // pred_check_branch
          %326 = sbr.rel (%p324) target = $region16
        $region15: #{tpu_custom_call.1} parent=11 // pred_region
          %s328 = ssub.s32 512, 512
          %329 = vsyncadd [#allocation11], %s328
          %s330 = sshll.u32 [#allocation10], 4
          %s331 = int_to_ptr.vmem [resolvable:$true] %s330
          %336 = dma.hbm_to_vmem [thread:$0]  %s1, 512, %s331, [#allocation11], 128, 128, 8
        $region16: #{tpu_custom_call.1} parent=11 // pred_fallthru
          _
        // Predicated region
        $region17: #{tpu_custom_call.1} parent=11 // pred_check
          %p337 = pneg %p94
        $region18: #{tpu_custom_call.1} parent=11 // pred_check_branch
          %339 = sbr.rel (%p337) target = $region20
        $region19: #{tpu_custom_call.1} parent=11 // pred_region
          _
        $region20: #{tpu_custom_call.1} parent=11 // pred_fallthru
          _
        // Predicated region
        $region21: #{tpu_custom_call.1} parent=11 // pred_check
          %p340 = pneg %p115
        $region22: #{tpu_custom_call.1} parent=11 // pred_check_branch
          %342 = sbr.rel (%p340) target = $region24
        $region23: #{tpu_custom_call.1} parent=11 // pred_region
          %s344 = ssub.s32 896, 896
          %345 = vsyncadd [#allocation11], %s344
          %s346 = sshll.u32 [#allocation12], 4
          %s347 = int_to_ptr.vmem [resolvable:$true] %s346
          %352 = dma.hbm_to_vmem [thread:$0]  %s3, 896, %s347, [#allocation11], 128, 128, 8
        $region24: #{tpu_custom_call.1} parent=11 // pred_fallthru
          _
        // Predicated region
        $region25: #{tpu_custom_call.1} parent=11 // pred_check
          %p353 = pneg %p136
        $region26: #{tpu_custom_call.1} parent=11 // pred_check_branch
          %355 = sbr.rel (%p353) target = $region28
        $region27: #{tpu_custom_call.1} parent=11 // pred_region
          _
        $region28: #{tpu_custom_call.1} parent=11 // pred_fallthru
          _
        // Predicated region
        $region29: #{tpu_custom_call.1} parent=11 // pred_check
          %p356 = pneg %p157
        $region30: #{tpu_custom_call.1} parent=11 // pred_check_branch
          %358 = sbr.rel (%p356) target = $region32
        $region31: #{tpu_custom_call.1} parent=11 // pred_region
          _
        $region32: #{tpu_custom_call.1} parent=11 // pred_fallthru
          _
        // Predicated region
        $region33: #{tpu_custom_call.1} parent=11 // pred_check
          %p359 = pneg %p178
        $region34: #{tpu_custom_call.1} parent=11 // pred_check_branch
          %361 = sbr.rel (%p359) target = $region36
        $region35: #{tpu_custom_call.1} parent=11 // pred_region
          _
        $region36: #{tpu_custom_call.1} parent=11 // pred_fallthru
          _
        // Predicated region
        $region37: #{tpu_custom_call.1} parent=11 // pred_check
          %p362 = pneg %p199
        $region38: #{tpu_custom_call.1} parent=11 // pred_check_branch
          %364 = sbr.rel (%p362) target = $region40
        $region39: #{tpu_custom_call.1} parent=11 // pred_region
          %s366 = ssub.s32 16, 16
          %367 = vsyncadd [#allocation9], %s366
          %s369 = sshll.u32 %s7, 4
          %s370 = int_to_ptr.vmem [resolvable:$true] %s369
          %372 = dma.vmem_to_smem %s370, 16, [#allocation13], [#allocation9]
        $region40: #{tpu_custom_call.1} parent=11 // pred_fallthru
          _
        // Predicated region
        $region41: #{tpu_custom_call.1} parent=11 // pred_check
          %p373 = pneg %p220
        $region42: #{tpu_custom_call.1} parent=11 // pred_check_branch
          %375 = sbr.rel (%p373) target = $region44
        $region43: #{tpu_custom_call.1} parent=11 // pred_region
          _
        $region44: #{tpu_custom_call.1} parent=11 // pred_fallthru
          _
        // Predicated region
        $region45: #{tpu_custom_call.1} parent=11 // pred_check
          %p376 = pneg %p241
        $region46: #{tpu_custom_call.1} parent=11 // pred_check_branch
          %378 = sbr.rel (%p376) target = $region48
        $region47: #{tpu_custom_call.1} parent=11 // pred_region
          _
        $region48: #{tpu_custom_call.1} parent=11 // pred_fallthru
          _
        // Predicated region
        $region49: #{tpu_custom_call.1} parent=11 // pred_check
          %p379 = pneg %p262
        $region50: #{tpu_custom_call.1} parent=11 // pred_check_branch
          %381 = sbr.rel (%p379) target = $region52
        $region51: #{tpu_custom_call.1} parent=11 // pred_region
          _
        $region52: #{tpu_custom_call.1} parent=11 // pred_fallthru
          _
        // Predicated region
        $region53: #{tpu_custom_call.1} parent=11 // pred_check
          %p382 = pneg %p283
        $region54: #{tpu_custom_call.1} parent=11 // pred_check_branch
          %384 = sbr.rel (%p382) target = $region56
        $region55: #{tpu_custom_call.1} parent=11 // pred_region
          _
        $region56: #{tpu_custom_call.1} parent=11 // pred_fallthru
          _
      $region12: #{tpu_custom_call.1} parent=5 // pred_fallthru
        _
      %p385 = scmp.lt.s32.totalorder %s26, 2
      // Predicated region
      $region57: #{tpu_custom_call.1} parent=5 // pred_check
        %p386 = pneg %p385
      $region58: #{tpu_custom_call.1} parent=5 // pred_check_branch
        %388 = sbr.rel (%p386) target = $region60
      $region59: #{tpu_custom_call.1} parent=5 // pred_region
        // Predicated region
        $region61: #{tpu_custom_call.1} parent=59 // pred_check
          %p389 = pneg %p46
        $region62: #{tpu_custom_call.1} parent=59 // pred_check_branch
          %391 = sbr.rel (%p389) target = $region64
        $region63: #{tpu_custom_call.1} parent=59 // pred_region
          %s392 = sand.u32 %s36, 1
          %s393 = scalar_lea.sflag [#allocation7], %s392
          %s394 = sand.u32 %s36, 1
          %s395 = smul.addr %s394, 16
          %s396 = scalar_lea.vmem [#allocation6], %s395
          %s398 = ssub.s32 256, 256
          %399 = vsyncadd %s393, %s398
          %s400 = smul.addr %s26, 2
          %s401 = smul.addr %s400, 128
          %s402 = scalar_lea.hbm %s0, %s401
          %s403 = sshll.u32 %s396, 4
          %s404 = int_to_ptr.vmem [resolvable:$true] %s403
          %409 = dma.hbm_to_vmem [thread:$0]  %s402, 256, %s404, %s393, 128, 128, 8
        $region64: #{tpu_custom_call.1} parent=59 // pred_fallthru
          _
      $region60: #{tpu_custom_call.1} parent=5 // pred_fallthru
        _
      %p410 = scmp.le.s32.totalorder 1, %s26
      %p411 = scmp.lt.s32.totalorder %s26, 3
      %p412 = pnand %p410, %p411
      %p413 = pneg %p412
      // Predicated region
      $region65: #{tpu_custom_call.1} parent=5 // pred_check
        _
      $region66: #{tpu_custom_call.1} parent=5 // pred_check_branch
        %415 = sbr.rel (%p412) target = $region68
      $region67: #{tpu_custom_call.1} parent=5 // pred_region
        %s416 = ssub.s32 %s26, 1
        %s417 = sand.u32 %s39, 1
        %s418 = scalar_lea.sflag [#allocation7], %s417
        %s419 = sand.u32 %s39, 1
        %s420 = smul.addr %s419, 16
        %s421 = scalar_lea.vmem [#allocation6], %s420
        // Predicated region
        $region69: #{tpu_custom_call.1} parent=67 // pred_check
          %p422 = pneg %p52
        $region70: #{tpu_custom_call.1} parent=67 // pred_check_branch
          %424 = sbr.rel (%p422) target = $region72
        $region71: #{tpu_custom_call.1} parent=67 // pred_region
          %425 = dma.done %s418, 256
        $region72: #{tpu_custom_call.1} parent=67 // pred_fallthru
          _
        // Predicated region
        $region73: #{tpu_custom_call.1} parent=67 // pred_check
          %p426 = pneg %p73
        $region74: #{tpu_custom_call.1} parent=67 // pred_check_branch
          %428 = sbr.rel (%p426) target = $region76
        $region75: #{tpu_custom_call.1} parent=67 // pred_region
          %429 = dma.done [#allocation11], 512
        $region76: #{tpu_custom_call.1} parent=67 // pred_fallthru
          _
        // Predicated region
        $region77: #{tpu_custom_call.1} parent=67 // pred_check
          %p430 = pneg %p115
        $region78: #{tpu_custom_call.1} parent=67 // pred_check_branch
          %432 = sbr.rel (%p430) target = $region80
        $region79: #{tpu_custom_call.1} parent=67 // pred_region
          %433 = dma.done [#allocation11], 896
        $region80: #{tpu_custom_call.1} parent=67 // pred_fallthru
          _
        // Predicated region
        $region81: #{tpu_custom_call.1} parent=67 // pred_check
          %p434 = pneg %p199
        $region82: #{tpu_custom_call.1} parent=67 // pred_check_branch
          %436 = sbr.rel (%p434) target = $region84
        $region83: #{tpu_custom_call.1} parent=67 // pred_region
          %437 = dma.done [#allocation9], 16
        $region84: #{tpu_custom_call.1} parent=67 // pred_fallthru
          _
        %438 = sfence
        %s439 = sand.u32 %s39, 1
        %s440 = scalar_lea.sflag [#allocation7], %s439
        %s441 = sand.u32 %s39, 1
        %s442 = smul.addr %s441, 16
        %s443 = scalar_lea.vmem [#allocation6], %s442
        %p444 = pneg %p52
        %p445 = pneg %p49
        %p446 = pneg %p73
        %p447 = pneg %p70
        %p448 = pneg %p94
        %p449 = pneg %p91
        %p450 = pneg %p115
        %p451 = pneg %p112
        %p452 = pneg %p136
        %p453 = pneg %p133
        %p454 = pneg %p157
        %p455 = pneg %p154
        %p456 = pneg %p178
        %p457 = pneg %p175
        %p458 = pneg %p199
        %p459 = pneg %p196
        %p460 = pneg %p220
        %p461 = pneg %p217
        %p462 = pneg %p241
        %p463 = pneg %p238
        %p464 = pneg %p262
        %p465 = pneg %p259
        %p466 = pneg %p283
        %p467 = pneg %p280
        %p468 = pneg %p309
        %p469 = pneg %p306
        %s470 = sand.u32 %s296, 1
        %s471 = scalar_lea.sflag [#allocation8], %s470
        %s472 = sand.u32 %s296, 1
        %s473 = smul.addr %s472, 16
        %s474 = scalar_lea.vmem [#allocation14], %s473
        %v475 = vld [vmem:[%s421] sm:$0xff]
        %v476 = vld [vmem:[%s421 + $0x8] sm:$0xff]
        %477 = vst [vmem:[#allocation2] sm:$0xf] 0.0
        %vm478 = vcmask 519168
        %479 = vst.msk [vmem:[#allocation2 + $0x8] sm:$0xf] %vm478, 0.0
        %480 = vst [vmem:[#allocation2 + $0x20] sm:$0xf0] 0.0
        %vm481 = vcmask 523268
        %482 = vst.msk [vmem:[#allocation2 + $0x28] sm:$0xf0] %vm481, 0.0
        %vm483 = vcmask 261124
        %484 = vst.msk [vmem:[#allocation2] sm:$0xf0] %vm483, 0.0
        %vm485 = vcmask 261120
        %486 = vst.msk [vmem:[#allocation2 + $0x10] sm:$0xff] %vm485, 0.0
        %vm487 = vcmask 257024
        %488 = vst.msk [vmem:[#allocation2 + $0x20] sm:$0xf] %vm487, 0.0
        %vm489 = vcmask 523524
        %490 = vst.msk [vmem:[#allocation2 + $0x8] sm:$0xf0] %vm489, 0.0
        %vm491 = vcmask 523520
        %492 = vst.msk [vmem:[#allocation2 + $0x18] sm:$0xff] %vm491, 0.0
        %vm493 = vcmask 519424
        %494 = vst.msk [vmem:[#allocation2 + $0x28] sm:$0xf] %vm493, 0.0
        %vm497 = vcmask 1043456
        %v498 = vrot.slane %v475, 4
        %v499 = vrot.slane %v476, 4
        %v500 = vsel %vm497, %v498, %v499
        %501 = vrot.lane.b32.xlu0 %v498, 32
        %v502 = vpop.permute.xlu0 %501
        %503 = vrot.lane.b32.xlu0 %v500, 32
        %v504 = vpop.permute.xlu0 %503
        %505 = vrot.lane.b32.xlu0 %v499, 32
        %v506 = vpop.permute.xlu0 %505
        %vm510 = vcmask 1047812
        %511 = vst.msk [vmem:[#allocation2] sm:$0xf0] %vm510, %v502
        %512 = vst.msk [vmem:[#allocation2 + $0x8] sm:$0xf0] %vm483, %v502
        %vm513 = vcmask 1047808
        %514 = vst.msk [vmem:[#allocation2 + $0x10] sm:$0xff] %vm513, %v504
        %515 = vst.msk [vmem:[#allocation2 + $0x18] sm:$0xff] %vm485, %v504
        %vm516 = vcmask 1043712
        %517 = vst.msk [vmem:[#allocation2 + $0x20] sm:$0xf] %vm516, %v506
        %518 = vst.msk [vmem:[#allocation2 + $0x28] sm:$0xf] %vm487, %v506
        %v519 = vlaneseq
        %v520 = vand.u32 %v519, 127
        %v521 = vand.u32 %v520, 7
        %v522 = vld [vmem:[#allocation2] sm:$0xf0]
        %v523 = vld [vmem:[#allocation2 + $0x8] sm:$0xf0]
        %v524 = vld [vmem:[#allocation2 + $0x10] sm:$0xff]
        %v525 = vld [vmem:[#allocation2 + $0x18] sm:$0xff]
        %v526 = vld [vmem:[#allocation2 + $0x20] sm:$0xf]
        %v527 = vld [vmem:[#allocation2 + $0x28] sm:$0xf]
        %vm528 = vcmp.lt.s32.totalorder %v521, 7
        %vm529 = vcmp.ge.s32.totalorder %v521, 1
        %v536 = vrot.slane %v522, 4
        %v537 = vrot.slane %v524, 4
        %v538 = vsel %vm497, %v536, %v537
        %v539 = vrot.slane %v523, 4
        %v540 = vrot.slane %v525, 4
        %v541 = vsel %vm497, %v539, %v540
        %v542 = vrot.slane %v526, 4
        %v543 = vsel %vm497, %v537, %v542
        %v544 = vrot.slane %v527, 4
        %v545 = vsel %vm497, %v540, %v544
        %546 = vrot.lane.b32.xlu0 %v538, 95
        %v547 = vpop.permute.xlu0 %546
        %548 = vrot.lane.b32.xlu0 %v541, 95
        %v549 = vpop.permute.xlu0 %548
        %550 = vrot.lane.b32.xlu0 %v543, 95
        %v551 = vpop.permute.xlu0 %550
        %552 = vrot.lane.b32.xlu0 %v545, 95
        %v553 = vpop.permute.xlu0 %552
        %vm554 = vcmask 777216
        %v555 = vsel %vm554, %v547, %v549
        %v556 = vsel %vm554, %v551, %v553
        %v559 = vmax.f32 %v475, %v555
        %v560 = vmax.f32 %v476, %v556
        %v561 = vsel %vm528, %v559, %v475
        %v562 = vsel %vm528, %v560, %v476
        %563 = vrot.lane.b32.xlu0 %v538, 97
        %v564 = vpop.permute.xlu0 %563
        %565 = vrot.lane.b32.xlu0 %v541, 97
        %v566 = vpop.permute.xlu0 %565
        %567 = vrot.lane.b32.xlu0 %v543, 97
        %v568 = vpop.permute.xlu0 %567
        %569 = vrot.lane.b32.xlu0 %v545, 97
        %v570 = vpop.permute.xlu0 %569
        %vm571 = vcmask 793600
        %v572 = vsel %vm571, %v564, %v566
        %v573 = vsel %vm571, %v568, %v570
        %v576 = vmax.f32 %v561, %v572
        %v577 = vmax.f32 %v562, %v573
        %v578 = vsel %vm529, %v576, %v561
        %v579 = vsel %vm529, %v577, %v562
        %v580 = vsel %vm528, %v555, 0.0
        %v581 = vsel %vm528, %v556, 0.0
        %v582 = vadd.f32 %v475, %v580
        %v583 = vadd.f32 %v476, %v581
        %v584 = vsel %vm529, %v572, 0.0
        %v585 = vsel %vm529, %v573, 0.0
        %v586 = vadd.f32 %v582, %v584
        %v587 = vadd.f32 %v583, %v585
        %vm588 = vcmp.lt.s32.totalorder %v521, 6
        %vm589 = vcmp.ge.s32.totalorder %v521, 2
        %590 = vrot.lane.b32.xlu0 %v538, 94
        %v591 = vpop.permute.xlu0 %590
        %592 = vrot.lane.b32.xlu0 %v541, 94
        %v593 = vpop.permute.xlu0 %592
        %594 = vrot.lane.b32.xlu0 %v543, 94
        %v595 = vpop.permute.xlu0 %594
        %596 = vrot.lane.b32.xlu0 %v545, 94
        %v597 = vpop.permute.xlu0 %596
        %vm598 = vcmask 769024
        %v599 = vsel %vm598, %v591, %v593
        %v600 = vsel %vm598, %v595, %v597
        %v603 = vmax.f32 %v578, %v599
        %v604 = vmax.f32 %v579, %v600
        %v605 = vsel %vm588, %v603, %v578
        %v606 = vsel %vm588, %v604, %v579
        %607 = vrot.lane.b32.xlu0 %v538, 98
        %v608 = vpop.permute.xlu0 %607
        %609 = vrot.lane.b32.xlu0 %v541, 98
        %v610 = vpop.permute.xlu0 %609
        %611 = vrot.lane.b32.xlu0 %v543, 98
        %v612 = vpop.permute.xlu0 %611
        %613 = vrot.lane.b32.xlu0 %v545, 98
        %v614 = vpop.permute.xlu0 %613
        %vm615 = vcmask 801792
        %v616 = vsel %vm615, %v608, %v610
        %v617 = vsel %vm615, %v612, %v614
        %v620 = vmax.f32 %v605, %v616
        %v621 = vmax.f32 %v606, %v617
        %v622 = vsel %vm589, %v620, %v605
        %v623 = vsel %vm589, %v621, %v606
        %v624 = vsel %vm588, %v599, 0.0
        %v625 = vsel %vm588, %v600, 0.0
        %v626 = vadd.f32 %v586, %v624
        %v627 = vadd.f32 %v587, %v625
        %v628 = vsel %vm589, %v616, 0.0
        %v629 = vsel %vm589, %v617, 0.0
        %v630 = vadd.f32 %v626, %v628
        %v631 = vadd.f32 %v627, %v629
        %vm632 = vcmp.lt.s32.totalorder %v521, 5
        %vm633 = vcmp.ge.s32.totalorder %v521, 3
        %634 = vrot.lane.b32.xlu0 %v538, 93
        %v635 = vpop.permute.xlu0 %634
        %636 = vrot.lane.b32.xlu0 %v541, 93
        %v637 = vpop.permute.xlu0 %636
        %638 = vrot.lane.b32.xlu0 %v543, 93
        %v639 = vpop.permute.xlu0 %638
        %640 = vrot.lane.b32.xlu0 %v545, 93
        %v641 = vpop.permute.xlu0 %640
        %vm642 = vcmask 760832
        %v643 = vsel %vm642, %v635, %v637
        %v644 = vsel %vm642, %v639, %v641
        %v647 = vmax.f32 %v622, %v643
        %v648 = vmax.f32 %v623, %v644
        %v649 = vsel %vm632, %v647, %v622
        %v650 = vsel %vm632, %v648, %v623
        %651 = vrot.lane.b32.xlu0 %v538, 99
        %v652 = vpop.permute.xlu0 %651
        %653 = vrot.lane.b32.xlu0 %v541, 99
        %v654 = vpop.permute.xlu0 %653
        %655 = vrot.lane.b32.xlu0 %v543, 99
        %v656 = vpop.permute.xlu0 %655
        %657 = vrot.lane.b32.xlu0 %v545, 99
        %v658 = vpop.permute.xlu0 %657
        %vm659 = vcmask 809984
        %v660 = vsel %vm659, %v652, %v654
        %v661 = vsel %vm659, %v656, %v658
        %v664 = vmax.f32 %v649, %v660
        %v665 = vmax.f32 %v650, %v661
        %v666 = vsel %vm633, %v664, %v649
        %v667 = vsel %vm633, %v665, %v650
        %v668 = vsel %vm632, %v643, 0.0
        %v669 = vsel %vm632, %v644, 0.0
        %v670 = vadd.f32 %v630, %v668
        %v671 = vadd.f32 %v631, %v669
        %v672 = vsel %vm633, %v660, 0.0
        %v673 = vsel %vm633, %v661, 0.0
        %v674 = vadd.f32 %v670, %v672
        %v675 = vadd.f32 %v671, %v673
        %vm676 = vcmp.lt.s32.totalorder %v521, 4
        %vm677 = vcmp.ge.s32.totalorder %v521, 4
        %678 = vrot.lane.b32.xlu0 %v538, 92
        %v679 = vpop.permute.xlu0 %678
        %680 = vrot.lane.b32.xlu0 %v541, 92
        %v681 = vpop.permute.xlu0 %680
        %682 = vrot.lane.b32.xlu0 %v543, 92
        %v683 = vpop.permute.xlu0 %682
        %684 = vrot.lane.b32.xlu0 %v545, 92
        %v685 = vpop.permute.xlu0 %684
        %vm686 = vcmask 752640
        %v687 = vsel %vm686, %v679, %v681
        %v688 = vsel %vm686, %v683, %v685
        %v691 = vmax.f32 %v666, %v687
        %v692 = vmax.f32 %v667, %v688
        %v693 = vsel %vm676, %v691, %v666
        %v694 = vsel %vm676, %v692, %v667
        %695 = vrot.lane.b32.xlu0 %v538, 100
        %v696 = vpop.permute.xlu0 %695
        %697 = vrot.lane.b32.xlu0 %v541, 100
        %v698 = vpop.permute.xlu0 %697
        %699 = vrot.lane.b32.xlu0 %v543, 100
        %v700 = vpop.permute.xlu0 %699
        %701 = vrot.lane.b32.xlu0 %v545, 100
        %v702 = vpop.permute.xlu0 %701
        %vm703 = vcmask 818176
        %v704 = vsel %vm703, %v696, %v698
        %v705 = vsel %vm703, %v700, %v702
        %v708 = vmax.f32 %v693, %v704
        %v709 = vmax.f32 %v694, %v705
        %v710 = vsel %vm677, %v708, %v693
        %v711 = vsel %vm677, %v709, %v694
        %v712 = vsel %vm676, %v687, 0.0
        %v713 = vsel %vm676, %v688, 0.0
        %v714 = vadd.f32 %v674, %v712
        %v715 = vadd.f32 %v675, %v713
        %v716 = vsel %vm677, %v704, 0.0
        %v717 = vsel %vm677, %v705, 0.0
        %v718 = vadd.f32 %v714, %v716
        %v719 = vadd.f32 %v715, %v717
        %vm720 = vcmp.lt.s32.totalorder %v521, 3
        %vm721 = vcmp.ge.s32.totalorder %v521, 5
        %722 = vrot.lane.b32.xlu0 %v538, 91
        %v723 = vpop.permute.xlu0 %722
        %724 = vrot.lane.b32.xlu0 %v541, 91
        %v725 = vpop.permute.xlu0 %724
        %726 = vrot.lane.b32.xlu0 %v543, 91
        %v727 = vpop.permute.xlu0 %726
        %728 = vrot.lane.b32.xlu0 %v545, 91
        %v729 = vpop.permute.xlu0 %728
        %vm730 = vcmask 744448
        %v731 = vsel %vm730, %v723, %v725
        %v732 = vsel %vm730, %v727, %v729
        %v735 = vmax.f32 %v710, %v731
        %v736 = vmax.f32 %v711, %v732
        %v737 = vsel %vm720, %v735, %v710
        %v738 = vsel %vm720, %v736, %v711
        %739 = vrot.lane.b32.xlu0 %v538, 101
        %v740 = vpop.permute.xlu0 %739
        %741 = vrot.lane.b32.xlu0 %v541, 101
        %v742 = vpop.permute.xlu0 %741
        %743 = vrot.lane.b32.xlu0 %v543, 101
        %v744 = vpop.permute.xlu0 %743
        %745 = vrot.lane.b32.xlu0 %v545, 101
        %v746 = vpop.permute.xlu0 %745
        %vm747 = vcmask 826368
        %v748 = vsel %vm747, %v740, %v742
        %v749 = vsel %vm747, %v744, %v746
        %v752 = vmax.f32 %v737, %v748
        %v753 = vmax.f32 %v738, %v749
        %v754 = vsel %vm721, %v752, %v737
        %v755 = vsel %vm721, %v753, %v738
        %v756 = vsel %vm720, %v731, 0.0
        %v757 = vsel %vm720, %v732, 0.0
        %v758 = vadd.f32 %v718, %v756
        %v759 = vadd.f32 %v719, %v757
        %v760 = vsel %vm721, %v748, 0.0
        %v761 = vsel %vm721, %v749, 0.0
        %v762 = vadd.f32 %v758, %v760
        %v763 = vadd.f32 %v759, %v761
        %vm764 = vcmp.lt.s32.totalorder %v521, 2
        %vm765 = vcmp.ge.s32.totalorder %v521, 6
        %766 = vrot.lane.b32.xlu0 %v538, 90
        %v767 = vpop.permute.xlu0 %766
        %768 = vrot.lane.b32.xlu0 %v541, 90
        %v769 = vpop.permute.xlu0 %768
        %770 = vrot.lane.b32.xlu0 %v543, 90
        %v771 = vpop.permute.xlu0 %770
        %772 = vrot.lane.b32.xlu0 %v545, 90
        %v773 = vpop.permute.xlu0 %772
        %vm774 = vcmask 736256
        %v775 = vsel %vm774, %v767, %v769
        %v776 = vsel %vm774, %v771, %v773
        %v779 = vmax.f32 %v754, %v775
        %v780 = vmax.f32 %v755, %v776
        %v781 = vsel %vm764, %v779, %v754
        %v782 = vsel %vm764, %v780, %v755
        %783 = vrot.lane.b32.xlu0 %v538, 102
        %v784 = vpop.permute.xlu0 %783
        %785 = vrot.lane.b32.xlu0 %v541, 102
        %v786 = vpop.permute.xlu0 %785
        %787 = vrot.lane.b32.xlu0 %v543, 102
        %v788 = vpop.permute.xlu0 %787
        %789 = vrot.lane.b32.xlu0 %v545, 102
        %v790 = vpop.permute.xlu0 %789
        %vm791 = vcmask 834560
        %v792 = vsel %vm791, %v784, %v786
        %v793 = vsel %vm791, %v788, %v790
        %v796 = vmax.f32 %v781, %v792
        %v797 = vmax.f32 %v782, %v793
        %v798 = vsel %vm765, %v796, %v781
        %v799 = vsel %vm765, %v797, %v782
        %v800 = vsel %vm764, %v775, 0.0
        %v801 = vsel %vm764, %v776, 0.0
        %v802 = vadd.f32 %v762, %v800
        %v803 = vadd.f32 %v763, %v801
        %v804 = vsel %vm765, %v792, 0.0
        %v805 = vsel %vm765, %v793, 0.0
        %v806 = vadd.f32 %v802, %v804
        %v807 = vadd.f32 %v803, %v805
        %vm808 = vcmp.lt.s32.totalorder %v521, 1
        %vm809 = vcmp.ge.s32.totalorder %v521, 7
        %810 = vrot.lane.b32.xlu0 %v538, 89
        %v811 = vpop.permute.xlu0 %810
        %812 = vrot.lane.b32.xlu0 %v541, 89
        %v813 = vpop.permute.xlu0 %812
        %814 = vrot.lane.b32.xlu0 %v543, 89
        %v815 = vpop.permute.xlu0 %814
        %816 = vrot.lane.b32.xlu0 %v545, 89
        %v817 = vpop.permute.xlu0 %816
        %vm818 = vcmask 728064
        %v819 = vsel %vm818, %v811, %v813
        %v820 = vsel %vm818, %v815, %v817
        %v823 = vmax.f32 %v798, %v819
        %v824 = vmax.f32 %v799, %v820
        %v825 = vsel %vm808, %v823, %v798
        %v826 = vsel %vm808, %v824, %v799
        %827 = vrot.lane.b32.xlu0 %v538, 103
        %v828 = vpop.permute.xlu0 %827
        %829 = vrot.lane.b32.xlu0 %v541, 103
        %v830 = vpop.permute.xlu0 %829
        %831 = vrot.lane.b32.xlu0 %v543, 103
        %v832 = vpop.permute.xlu0 %831
        %833 = vrot.lane.b32.xlu0 %v545, 103
        %v834 = vpop.permute.xlu0 %833
        %vm835 = vcmask 842752
        %v836 = vsel %vm835, %v828, %v830
        %v837 = vsel %vm835, %v832, %v834
        %v840 = vmax.f32 %v825, %v836
        %v841 = vmax.f32 %v826, %v837
        %v842 = vsel %vm809, %v840, %v825
        %v843 = vsel %vm809, %v841, %v826
        %v844 = vsel %vm808, %v819, 0.0
        %v845 = vsel %vm808, %v820, 0.0
        %v846 = vadd.f32 %v806, %v844
        %v847 = vadd.f32 %v807, %v845
        %v848 = vsel %vm809, %v836, 0.0
        %v849 = vsel %vm809, %v837, 0.0
        %v850 = vadd.f32 %v846, %v848
        %v851 = vadd.f32 %v847, %v849
        %v852 = vmul.f32 %v850, 0.125
        %v853 = vmul.f32 %v851, 0.125
        %v854 = vlaneseq
        %vm855 = vcmp.ge.s32.totalorder %v854, 0
        %vm856 = vcmp.lt.s32.totalorder %v854, 144
        %vm857 = vmand %vm855, %vm856
        %858 = vst.msk [vmem:[#allocation4] ss:$8 sm:$0x3] %vm857, 0.0
        %859 = vst.msk [vmem:[#allocation4] ss:$8 sm:$0x0] %vm857, 0.0
        %s860 = scalar_lea.vmem [#allocation4], 33
        %861 = vst.msk [vmem:[%s860] ss:$8 sm:$0x3] %vm857, 0.0
        %862 = vst.msk [vmem:[%s860] ss:$8 sm:$0x0] %vm857, 0.0
        %vm863 = vcmask 64513
        %864 = vst.msk [vmem:[#allocation4] sm:$0xfe] %vm863, 0.0
        %vm865 = vcmask 64512
        %866 = vst.msk [vmem:[#allocation4 + $0x10] sm:$0xff] %vm865, 0.0
        %vm867 = vcmask 57344
        %868 = vst.msk [vmem:[#allocation4 + $0x20] sm:$0x1] %vm867, 0.0
        %vm869 = vcmask 130113
        %870 = vst.msk [vmem:[#allocation4 + $0x8] sm:$0xfe] %vm869, 0.0
        %vm871 = vcmask 130112
        %872 = vst.msk [vmem:[#allocation4 + $0x18] sm:$0xff] %vm871, 0.0
        %vm873 = vcmask 122944
        %874 = vst.msk [vmem:[#allocation4 + $0x28] sm:$0x1] %vm873, 0.0
        %vm877 = vcmask 1040384
        %v878 = vrot.slane %v842, 7
        %v879 = vrot.slane %v843, 7
        %v880 = vsel %vm877, %v878, %v879
        %881 = vrot.lane.b32.xlu0 %v878, 8
        %v882 = vpop.permute.xlu0 %881
        %883 = vrot.lane.b32.xlu0 %v880, 8
        %v884 = vpop.permute.xlu0 %883
        %885 = vrot.lane.b32.xlu0 %v879, 8
        %v886 = vpop.permute.xlu0 %885
        %vm890 = vcmask 1047617
        %891 = vst.msk [vmem:[#allocation4] sm:$0xfe] %vm890, %v882
        %892 = vst.msk [vmem:[#allocation4 + $0x8] sm:$0xfe] %vm863, %v882
        %vm893 = vcmask 1047616
        %894 = vst.msk [vmem:[#allocation4 + $0x10] sm:$0xff] %vm893, %v884
        %895 = vst.msk [vmem:[#allocation4 + $0x18] sm:$0xff] %vm865, %v884
        %vm896 = vcmask 1040448
        %897 = vst.msk [vmem:[#allocation4 + $0x20] sm:$0x1] %vm896, %v886
        %898 = vst.msk [vmem:[#allocation4 + $0x28] sm:$0x1] %vm867, %v886
        %899 = vst.msk [vmem:[#allocation5] ss:$8 sm:$0x3] %vm857, 0.0
        %900 = vst.msk [vmem:[#allocation5] ss:$8 sm:$0x0] %vm857, 0.0
        %s901 = scalar_lea.vmem [#allocation5], 33
        %902 = vst.msk [vmem:[%s901] ss:$8 sm:$0x3] %vm857, 0.0
        %903 = vst.msk [vmem:[%s901] ss:$8 sm:$0x0] %vm857, 0.0
        %904 = vst.msk [vmem:[#allocation5] sm:$0xfe] %vm863, 0.0
        %905 = vst.msk [vmem:[#allocation5 + $0x10] sm:$0xff] %vm865, 0.0
        %906 = vst.msk [vmem:[#allocation5 + $0x20] sm:$0x1] %vm867, 0.0
        %907 = vst.msk [vmem:[#allocation5 + $0x8] sm:$0xfe] %vm869, 0.0
        %908 = vst.msk [vmem:[#allocation5 + $0x18] sm:$0xff] %vm871, 0.0
        %909 = vst.msk [vmem:[#allocation5 + $0x28] sm:$0x1] %vm873, 0.0
        %v912 = vrot.slane %v852, 7
        %v913 = vrot.slane %v853, 7
        %v914 = vsel %vm877, %v912, %v913
        %915 = vrot.lane.b32.xlu0 %v912, 8
        %v916 = vpop.permute.xlu0 %915
        %917 = vrot.lane.b32.xlu0 %v914, 8
        %v918 = vpop.permute.xlu0 %917
        %919 = vrot.lane.b32.xlu0 %v913, 8
        %v920 = vpop.permute.xlu0 %919
        %924 = vst.msk [vmem:[#allocation5] sm:$0xfe] %vm890, %v916
        %925 = vst.msk [vmem:[#allocation5 + $0x8] sm:$0xfe] %vm863, %v916
        %926 = vst.msk [vmem:[#allocation5 + $0x10] sm:$0xff] %vm893, %v918
        %927 = vst.msk [vmem:[#allocation5 + $0x18] sm:$0xff] %vm865, %v918
        %928 = vst.msk [vmem:[#allocation5 + $0x20] sm:$0x1] %vm896, %v920
        %929 = vst.msk [vmem:[#allocation5 + $0x28] sm:$0x1] %vm867, %v920
        %v930 = vld [vmem:[#allocation4] sm:$0xff]
        %v931 = vld [vmem:[#allocation4 + $0x10] sm:$0xff]
        %s932 = sld [smem:[#allocation13]]
        %v933 = vstv %s932
        %v934 = vmul.f32 %v930, %v933
        %v935 = vmul.f32 %v931, %v933
        %v936 = vadd.f32 %v934, 0.0
        %v937 = vadd.f32 %v935, 0.0
        %v938 = vld [vmem:[#allocation4] sm:$0xff]
        %v939 = vld [vmem:[#allocation4 + $0x8] sm:$0xff]
        %v940 = vld [vmem:[#allocation4 + $0x10] sm:$0xff]
        %v941 = vld [vmem:[#allocation4 + $0x18] sm:$0xff]
        %s942 = sld [smem:[#allocation13 + $0x1]]
        %v943 = vstv %s942
        %v944 = vmul.f32 %v938, %v943
        %v945 = vmul.f32 %v939, %v943
        %v946 = vmul.f32 %v940, %v943
        %v947 = vmul.f32 %v941, %v943
        %952 = vrot.lane.b32.xlu0 %v944, 120
        %v953 = vpop.permute.xlu0 %952
        %954 = vrot.lane.b32.xlu0 %v945, 120
        %v955 = vpop.permute.xlu0 %954
        %956 = vrot.lane.b32.xlu0 %v946, 120
        %v957 = vpop.permute.xlu0 %956
        %958 = vrot.lane.b32.xlu0 %v947, 120
        %v959 = vpop.permute.xlu0 %958
        %vm960 = vcmask 982016
        %v961 = vsel %vm960, %v953, %v955
        %v962 = vsel %vm960, %v957, %v959
        %v965 = vadd.f32 %v936, %v961
        %v966 = vadd.f32 %v937, %v962
        %s967 = sld [smem:[#allocation13 + $0x2]]
        %v968 = vstv %s967
        %v969 = vmul.f32 %v938, %v968
        %v970 = vmul.f32 %v939, %v968
        %v971 = vmul.f32 %v940, %v968
        %v972 = vmul.f32 %v941, %v968
        %977 = vrot.lane.b32.xlu0 %v969, 112
        %v978 = vpop.permute.xlu0 %977
        %979 = vrot.lane.b32.xlu0 %v970, 112
        %v980 = vpop.permute.xlu0 %979
        %981 = vrot.lane.b32.xlu0 %v971, 112
        %v982 = vpop.permute.xlu0 %981
        %983 = vrot.lane.b32.xlu0 %v972, 112
        %v984 = vpop.permute.xlu0 %983
        %vm985 = vcmask 916480
        %v986 = vsel %vm985, %v978, %v980
        %v987 = vsel %vm985, %v982, %v984
        %v990 = vadd.f32 %v965, %v986
        %v991 = vadd.f32 %v966, %v987
        %v992 = vld [vmem:[#allocation4] sm:$0xfe]
        %v993 = vld [vmem:[#allocation4 + $0x10] sm:$0xff]
        %v994 = vld [vmem:[#allocation4 + $0x20] sm:$0x1]
        %s995 = sld [smem:[#allocation13 + $0x3]]
        %v996 = vstv %s995
        %v997 = vmul.f32 %v992, %v996
        %v998 = vmul.f32 %v993, %v996
        %v999 = vmul.f32 %v994, %v996
        %vm1003 = vcmask 1046528
        %v1004 = vrot.slane %v997, 1
        %v1005 = vrot.slane %v998, 1
        %v1006 = vsel %vm1003, %v1004, %v1005
        %v1007 = vrot.slane %v999, 1
        %v1008 = vsel %vm1003, %v1005, %v1007
        %v1011 = vadd.f32 %v990, %v1006
        %v1012 = vadd.f32 %v991, %v1008
        %v1013 = vld [vmem:[#allocation4] sm:$0xfe]
        %v1014 = vld [vmem:[#allocation4 + $0x8] sm:$0xfe]
        %v1015 = vld [vmem:[#allocation4 + $0x10] sm:$0xff]
        %v1016 = vld [vmem:[#allocation4 + $0x18] sm:$0xff]
        %v1017 = vld [vmem:[#allocation4 + $0x20] sm:$0x1]
        %v1018 = vld [vmem:[#allocation4 + $0x28] sm:$0x1]
        %s1019 = sld [smem:[#allocation13 + $0x4]]
        %v1020 = vstv %s1019
        %v1021 = vmul.f32 %v1013, %v1020
        %v1022 = vmul.f32 %v1014, %v1020
        %v1023 = vmul.f32 %v1015, %v1020
        %v1024 = vmul.f32 %v1016, %v1020
        %v1025 = vmul.f32 %v1017, %v1020
        %v1026 = vmul.f32 %v1018, %v1020
        %v1033 = vrot.slane %v1021, 1
        %v1034 = vrot.slane %v1023, 1
        %v1035 = vsel %vm1003, %v1033, %v1034
        %v1036 = vrot.slane %v1022, 1
        %v1037 = vrot.slane %v1024, 1
        %v1038 = vsel %vm1003, %v1036, %v1037
        %v1039 = vrot.slane %v1025, 1
        %v1040 = vsel %vm1003, %v1034, %v1039
        %v1041 = vrot.slane %v1026, 1
        %v1042 = vsel %vm1003, %v1037, %v1041
        %1043 = vrot.lane.b32.xlu0 %v1035, 120
        %v1044 = vpop.permute.xlu0 %1043
        %1045 = vrot.lane.b32.xlu0 %v1038, 120
        %v1046 = vpop.permute.xlu0 %1045
        %1047 = vrot.lane.b32.xlu0 %v1040, 120
        %v1048 = vpop.permute.xlu0 %1047
        %1049 = vrot.lane.b32.xlu0 %v1042, 120
        %v1050 = vpop.permute.xlu0 %1049
        %v1051 = vsel %vm960, %v1044, %v1046
        %v1052 = vsel %vm960, %v1048, %v1050
        %v1055 = vadd.f32 %v1011, %v1051
        %v1056 = vadd.f32 %v1012, %v1052
        %s1057 = sld [smem:[#allocation13 + $0x5]]
        %v1058 = vstv %s1057
        %v1059 = vmul.f32 %v1013, %v1058
        %v1060 = vmul.f32 %v1014, %v1058
        %v1061 = vmul.f32 %v1015, %v1058
        %v1062 = vmul.f32 %v1016, %v1058
        %v1063 = vmul.f32 %v1017, %v1058
        %v1064 = vmul.f32 %v1018, %v1058
        %v1071 = vrot.slane %v1059, 1
        %v1072 = vrot.slane %v1061, 1
        %v1073 = vsel %vm1003, %v1071, %v1072
        %v1074 = vrot.slane %v1060, 1
        %v1075 = vrot.slane %v1062, 1
        %v1076 = vsel %vm1003, %v1074, %v1075
        %v1077 = vrot.slane %v1063, 1
        %v1078 = vsel %vm1003, %v1072, %v1077
        %v1079 = vrot.slane %v1064, 1
        %v1080 = vsel %vm1003, %v1075, %v1079
        %1081 = vrot.lane.b32.xlu0 %v1073, 112
        %v1082 = vpop.permute.xlu0 %1081
        %1083 = vrot.lane.b32.xlu0 %v1076, 112
        %v1084 = vpop.permute.xlu0 %1083
        %1085 = vrot.lane.b32.xlu0 %v1078, 112
        %v1086 = vpop.permute.xlu0 %1085
        %1087 = vrot.lane.b32.xlu0 %v1080, 112
        %v1088 = vpop.permute.xlu0 %1087
        %v1089 = vsel %vm985, %v1082, %v1084
        %v1090 = vsel %vm985, %v1086, %v1088
        %v1093 = vadd.f32 %v1055, %v1089
        %v1094 = vadd.f32 %v1056, %v1090
        %v1095 = vld [vmem:[#allocation4] sm:$0xfc]
        %v1096 = vld [vmem:[#allocation4 + $0x20] sm:$0x3]
        %s1097 = sld [smem:[#allocation13 + $0x6]]
        %v1098 = vstv %s1097
        %v1099 = vmul.f32 %v1095, %v1098
        %v1100 = vmul.f32 %v993, %v1098
        %v1101 = vmul.f32 %v1096, %v1098
        %vm1105 = vcmask 1045504
        %v1106 = vrot.slane %v1099, 2
        %v1107 = vrot.slane %v1100, 2
        %v1108 = vsel %vm1105, %v1106, %v1107
        %v1109 = vrot.slane %v1101, 2
        %v1110 = vsel %vm1105, %v1107, %v1109
        %v1113 = vadd.f32 %v1093, %v1108
        %v1114 = vadd.f32 %v1094, %v1110
        %v1115 = vld [vmem:[#allocation4] sm:$0xfc]
        %v1116 = vld [vmem:[#allocation4 + $0x8] sm:$0xfc]
        %v1117 = vld [vmem:[#allocation4 + $0x20] sm:$0x3]
        %v1118 = vld [vmem:[#allocation4 + $0x28] sm:$0x3]
        %s1119 = sld [smem:[#allocation13 + $0x7]]
        %v1120 = vstv %s1119
        %v1121 = vmul.f32 %v1115, %v1120
        %v1122 = vmul.f32 %v1116, %v1120
        %v1123 = vmul.f32 %v1015, %v1120
        %v1124 = vmul.f32 %v1016, %v1120
        %v1125 = vmul.f32 %v1117, %v1120
        %v1126 = vmul.f32 %v1118, %v1120
        %v1133 = vrot.slane %v1121, 2
        %v1134 = vrot.slane %v1123, 2
        %v1135 = vsel %vm1105, %v1133, %v1134
        %v1136 = vrot.slane %v1122, 2
        %v1137 = vrot.slane %v1124, 2
        %v1138 = vsel %vm1105, %v1136, %v1137
        %v1139 = vrot.slane %v1125, 2
        %v1140 = vsel %vm1105, %v1134, %v1139
        %v1141 = vrot.slane %v1126, 2
        %v1142 = vsel %vm1105, %v1137, %v1141
        %1143 = vrot.lane.b32.xlu0 %v1135, 120
        %v1144 = vpop.permute.xlu0 %1143
        %1145 = vrot.lane.b32.xlu0 %v1138, 120
        %v1146 = vpop.permute.xlu0 %1145
        %1147 = vrot.lane.b32.xlu0 %v1140, 120
        %v1148 = vpop.permute.xlu0 %1147
        %1149 = vrot.lane.b32.xlu0 %v1142, 120
        %v1150 = vpop.permute.xlu0 %1149
        %v1151 = vsel %vm960, %v1144, %v1146
        %v1152 = vsel %vm960, %v1148, %v1150
        %v1155 = vadd.f32 %v1113, %v1151
        %v1156 = vadd.f32 %v1114, %v1152
        %s1157 = sld [smem:[#allocation13 + $0x8]]
        %v1158 = vstv %s1157
        %v1159 = vmul.f32 %v1115, %v1158
        %v1160 = vmul.f32 %v1116, %v1158
        %v1161 = vmul.f32 %v1015, %v1158
        %v1162 = vmul.f32 %v1016, %v1158
        %v1163 = vmul.f32 %v1117, %v1158
        %v1164 = vmul.f32 %v1118, %v1158
        %v1171 = vrot.slane %v1159, 2
        %v1172 = vrot.slane %v1161, 2
        %v1173 = vsel %vm1105, %v1171, %v1172
        %v1174 = vrot.slane %v1160, 2
        %v1175 = vrot.slane %v1162, 2
        %v1176 = vsel %vm1105, %v1174, %v1175
        %v1177 = vrot.slane %v1163, 2
        %v1178 = vsel %vm1105, %v1172, %v1177
        %v1179 = vrot.slane %v1164, 2
        %v1180 = vsel %vm1105, %v1175, %v1179
        %1181 = vrot.lane.b32.xlu0 %v1173, 112
        %v1182 = vpop.permute.xlu0 %1181
        %1183 = vrot.lane.b32.xlu0 %v1176, 112
        %v1184 = vpop.permute.xlu0 %1183
        %1185 = vrot.lane.b32.xlu0 %v1178, 112
        %v1186 = vpop.permute.xlu0 %1185
        %1187 = vrot.lane.b32.xlu0 %v1180, 112
        %v1188 = vpop.permute.xlu0 %1187
        %v1189 = vsel %vm985, %v1182, %v1184
        %v1190 = vsel %vm985, %v1186, %v1188
        %v1193 = vadd.f32 %v1155, %v1189
        %v1194 = vadd.f32 %v1156, %v1190
        %v1195 = vld [vmem:[#allocation5] sm:$0xff]
        %v1196 = vld [vmem:[#allocation5 + $0x10] sm:$0xff]
        %s1197 = sld [smem:[#allocation13 + $0x9]]
        %v1198 = vstv %s1197
        %v1199 = vmul.f32 %v1195, %v1198
        %v1200 = vmul.f32 %v1196, %v1198
        %v1201 = vadd.f32 %v1193, %v1199
        %v1202 = vadd.f32 %v1194, %v1200
        %v1203 = vld [vmem:[#allocation5] sm:$0xff]
        %v1204 = vld [vmem:[#allocation5 + $0x8] sm:$0xff]
        %v1205 = vld [vmem:[#allocation5 + $0x10] sm:$0xff]
        %v1206 = vld [vmem:[#allocation5 + $0x18] sm:$0xff]
        %s1207 = sld [smem:[#allocation13 + $0xa]]
        %v1208 = vstv %s1207
        %v1209 = vmul.f32 %v1203, %v1208
        %v1210 = vmul.f32 %v1204, %v1208
        %v1211 = vmul.f32 %v1205, %v1208
        %v1212 = vmul.f32 %v1206, %v1208
        %1217 = vrot.lane.b32.xlu0 %v1209, 120
        %v1218 = vpop.permute.xlu0 %1217
        %1219 = vrot.lane.b32.xlu0 %v1210, 120
        %v1220 = vpop.permute.xlu0 %1219
        %1221 = vrot.lane.b32.xlu0 %v1211, 120
        %v1222 = vpop.permute.xlu0 %1221
        %1223 = vrot.lane.b32.xlu0 %v1212, 120
        %v1224 = vpop.permute.xlu0 %1223
        %v1225 = vsel %vm960, %v1218, %v1220
        %v1226 = vsel %vm960, %v1222, %v1224
        %v1229 = vadd.f32 %v1201, %v1225
        %v1230 = vadd.f32 %v1202, %v1226
        %s1231 = sld [smem:[#allocation13 + $0xb]]
        %v1232 = vstv %s1231
        %v1233 = vmul.f32 %v1203, %v1232
        %v1234 = vmul.f32 %v1204, %v1232
        %v1235 = vmul.f32 %v1205, %v1232
        %v1236 = vmul.f32 %v1206, %v1232
        %1241 = vrot.lane.b32.xlu0 %v1233, 112
        %v1242 = vpop.permute.xlu0 %1241
        %1243 = vrot.lane.b32.xlu0 %v1234, 112
        %v1244 = vpop.permute.xlu0 %1243
        %1245 = vrot.lane.b32.xlu0 %v1235, 112
        %v1246 = vpop.permute.xlu0 %1245
        %1247 = vrot.lane.b32.xlu0 %v1236, 112
        %v1248 = vpop.permute.xlu0 %1247
        %v1249 = vsel %vm985, %v1242, %v1244
        %v1250 = vsel %vm985, %v1246, %v1248
        %v1253 = vadd.f32 %v1229, %v1249
        %v1254 = vadd.f32 %v1230, %v1250
        %v1255 = vld [vmem:[#allocation5] sm:$0xfe]
        %v1256 = vld [vmem:[#allocation5 + $0x10] sm:$0xff]
        %v1257 = vld [vmem:[#allocation5 + $0x20] sm:$0x1]
        %s1258 = sld [smem:[#allocation13 + $0xc]]
        %v1259 = vstv %s1258
        %v1260 = vmul.f32 %v1255, %v1259
        %v1261 = vmul.f32 %v1256, %v1259
        %v1262 = vmul.f32 %v1257, %v1259
        %v1266 = vrot.slane %v1260, 1
        %v1267 = vrot.slane %v1261, 1
        %v1268 = vsel %vm1003, %v1266, %v1267
        %v1269 = vrot.slane %v1262, 1
        %v1270 = vsel %vm1003, %v1267, %v1269
        %v1273 = vadd.f32 %v1253, %v1268
        %v1274 = vadd.f32 %v1254, %v1270
        %v1275 = vld [vmem:[#allocation5] sm:$0xfe]
        %v1276 = vld [vmem:[#allocation5 + $0x8] sm:$0xfe]
        %v1277 = vld [vmem:[#allocation5 + $0x10] sm:$0xff]
        %v1278 = vld [vmem:[#allocation5 + $0x18] sm:$0xff]
        %v1279 = vld [vmem:[#allocation5 + $0x20] sm:$0x1]
        %v1280 = vld [vmem:[#allocation5 + $0x28] sm:$0x1]
        %s1281 = sld [smem:[#allocation13 + $0xd]]
        %v1282 = vstv %s1281
        %v1283 = vmul.f32 %v1275, %v1282
        %v1284 = vmul.f32 %v1276, %v1282
        %v1285 = vmul.f32 %v1277, %v1282
        %v1286 = vmul.f32 %v1278, %v1282
        %v1287 = vmul.f32 %v1279, %v1282
        %v1288 = vmul.f32 %v1280, %v1282
        %v1295 = vrot.slane %v1283, 1
        %v1296 = vrot.slane %v1285, 1
        %v1297 = vsel %vm1003, %v1295, %v1296
        %v1298 = vrot.slane %v1284, 1
        %v1299 = vrot.slane %v1286, 1
        %v1300 = vsel %vm1003, %v1298, %v1299
        %v1301 = vrot.slane %v1287, 1
        %v1302 = vsel %vm1003, %v1296, %v1301
        %v1303 = vrot.slane %v1288, 1
        %v1304 = vsel %vm1003, %v1299, %v1303
        %1305 = vrot.lane.b32.xlu0 %v1297, 120
        %v1306 = vpop.permute.xlu0 %1305
        %1307 = vrot.lane.b32.xlu0 %v1300, 120
        %v1308 = vpop.permute.xlu0 %1307
        %1309 = vrot.lane.b32.xlu0 %v1302, 120
        %v1310 = vpop.permute.xlu0 %1309
        %1311 = vrot.lane.b32.xlu0 %v1304, 120
        %v1312 = vpop.permute.xlu0 %1311
        %v1313 = vsel %vm960, %v1306, %v1308
        %v1314 = vsel %vm960, %v1310, %v1312
        %v1317 = vadd.f32 %v1273, %v1313
        %v1318 = vadd.f32 %v1274, %v1314
        %s1319 = sld [smem:[#allocation13 + $0xe]]
        %v1320 = vstv %s1319
        %v1321 = vmul.f32 %v1275, %v1320
        %v1322 = vmul.f32 %v1276, %v1320
        %v1323 = vmul.f32 %v1277, %v1320
        %v1324 = vmul.f32 %v1278, %v1320
        %v1325 = vmul.f32 %v1279, %v1320
        %v1326 = vmul.f32 %v1280, %v1320
        %v1333 = vrot.slane %v1321, 1
        %v1334 = vrot.slane %v1323, 1
        %v1335 = vsel %vm1003, %v1333, %v1334
        %v1336 = vrot.slane %v1322, 1
        %v1337 = vrot.slane %v1324, 1
        %v1338 = vsel %vm1003, %v1336, %v1337
        %v1339 = vrot.slane %v1325, 1
        %v1340 = vsel %vm1003, %v1334, %v1339
        %v1341 = vrot.slane %v1326, 1
        %v1342 = vsel %vm1003, %v1337, %v1341
        %1343 = vrot.lane.b32.xlu0 %v1335, 112
        %v1344 = vpop.permute.xlu0 %1343
        %1345 = vrot.lane.b32.xlu0 %v1338, 112
        %v1346 = vpop.permute.xlu0 %1345
        %1347 = vrot.lane.b32.xlu0 %v1340, 112
        %v1348 = vpop.permute.xlu0 %1347
        %1349 = vrot.lane.b32.xlu0 %v1342, 112
        %v1350 = vpop.permute.xlu0 %1349
        %v1351 = vsel %vm985, %v1344, %v1346
        %v1352 = vsel %vm985, %v1348, %v1350
        %v1355 = vadd.f32 %v1317, %v1351
        %v1356 = vadd.f32 %v1318, %v1352
        %v1357 = vld [vmem:[#allocation5] sm:$0xfc]
        %v1358 = vld [vmem:[#allocation5 + $0x20] sm:$0x3]
        %s1359 = sld [smem:[#allocation13 + $0xf]]
        %v1360 = vstv %s1359
        %v1361 = vmul.f32 %v1357, %v1360
        %v1362 = vmul.f32 %v1256, %v1360
        %v1363 = vmul.f32 %v1358, %v1360
        %v1367 = vrot.slane %v1361, 2
        %v1368 = vrot.slane %v1362, 2
        %v1369 = vsel %vm1105, %v1367, %v1368
        %v1370 = vrot.slane %v1363, 2
        %v1371 = vsel %vm1105, %v1368, %v1370
        %v1374 = vadd.f32 %v1355, %v1369
        %v1375 = vadd.f32 %v1356, %v1371
        %v1376 = vld [vmem:[#allocation5] sm:$0xfc]
        %v1377 = vld [vmem:[#allocation5 + $0x8] sm:$0xfc]
        %v1378 = vld [vmem:[#allocation5 + $0x20] sm:$0x3]
        %v1379 = vld [vmem:[#allocation5 + $0x28] sm:$0x3]
        %s1380 = sld [smem:[#allocation13 + $0x10]]
        %v1381 = vstv %s1380
        %v1382 = vmul.f32 %v1376, %v1381
        %v1383 = vmul.f32 %v1377, %v1381
        %v1384 = vmul.f32 %v1277, %v1381
        %v1385 = vmul.f32 %v1278, %v1381
        %v1386 = vmul.f32 %v1378, %v1381
        %v1387 = vmul.f32 %v1379, %v1381
        %v1394 = vrot.slane %v1382, 2
        %v1395 = vrot.slane %v1384, 2
        %v1396 = vsel %vm1105, %v1394, %v1395
        %v1397 = vrot.slane %v1383, 2
        %v1398 = vrot.slane %v1385, 2
        %v1399 = vsel %vm1105, %v1397, %v1398
        %v1400 = vrot.slane %v1386, 2
        %v1401 = vsel %vm1105, %v1395, %v1400
        %v1402 = vrot.slane %v1387, 2
        %v1403 = vsel %vm1105, %v1398, %v1402
        %1404 = vrot.lane.b32.xlu0 %v1396, 120
        %v1405 = vpop.permute.xlu0 %1404
        %1406 = vrot.lane.b32.xlu0 %v1399, 120
        %v1407 = vpop.permute.xlu0 %1406
        %1408 = vrot.lane.b32.xlu0 %v1401, 120
        %v1409 = vpop.permute.xlu0 %1408
        %1410 = vrot.lane.b32.xlu0 %v1403, 120
        %v1411 = vpop.permute.xlu0 %1410
        %v1412 = vsel %vm960, %v1405, %v1407
        %v1413 = vsel %vm960, %v1409, %v1411
        %v1416 = vadd.f32 %v1374, %v1412
        %v1417 = vadd.f32 %v1375, %v1413
        %s1418 = sld [smem:[#allocation13 + $0x11]]
        %v1419 = vstv %s1418
        %v1420 = vmul.f32 %v1376, %v1419
        %v1421 = vmul.f32 %v1377, %v1419
        %v1422 = vmul.f32 %v1277, %v1419
        %v1423 = vmul.f32 %v1278, %v1419
        %v1424 = vmul.f32 %v1378, %v1419
        %v1425 = vmul.f32 %v1379, %v1419
        %v1432 = vrot.slane %v1420, 2
        %v1433 = vrot.slane %v1422, 2
        %v1434 = vsel %vm1105, %v1432, %v1433
        %v1435 = vrot.slane %v1421, 2
        %v1436 = vrot.slane %v1423, 2
        %v1437 = vsel %vm1105, %v1435, %v1436
        %v1438 = vrot.slane %v1424, 2
        %v1439 = vsel %vm1105, %v1433, %v1438
        %v1440 = vrot.slane %v1425, 2
        %v1441 = vsel %vm1105, %v1436, %v1440
        %1442 = vrot.lane.b32.xlu0 %v1434, 112
        %v1443 = vpop.permute.xlu0 %1442
        %1444 = vrot.lane.b32.xlu0 %v1437, 112
        %v1445 = vpop.permute.xlu0 %1444
        %1446 = vrot.lane.b32.xlu0 %v1439, 112
        %v1447 = vpop.permute.xlu0 %1446
        %1448 = vrot.lane.b32.xlu0 %v1441, 112
        %v1449 = vpop.permute.xlu0 %1448
        %v1450 = vsel %vm985, %v1443, %v1445
        %v1451 = vsel %vm985, %v1447, %v1449
        %v1454 = vadd.f32 %v1416, %v1450
        %v1455 = vadd.f32 %v1417, %v1451
        %s1456 = sld [smem:[#allocation13 + $0x12]]
        %v1457 = vstv %s1456
        %v1458 = vadd.f32 %v1454, %v1457
        %v1459 = vadd.f32 %v1455, %v1457
        %v1460 = vld [vmem:[#allocation2] sm:$0xff]
        %v1461 = vld [vmem:[#allocation2 + $0x10] sm:$0xff]
        %v1462 = vld [vmem:[#allocation10] sm:$0x1]
        %v1463 = vlaneseq
        %v1464 = vshrl.u32 %v1463, 7
        %v1465 = vsub.s32 0, %v1464
        %v1466 = vrot.slane %v1462, %v1465
        %v1467 = vmul.f32 %v1460, %v1466
        %v1468 = vmul.f32 %v1461, %v1466
        %v1469 = vadd.f32 %v1467, 0.0
        %v1470 = vadd.f32 %v1468, 0.0
        %v1471 = vld [vmem:[#allocation2 + $0x8] sm:$0xff]
        %v1472 = vld [vmem:[#allocation2 + $0x18] sm:$0xff]
        %v1473 = vld [vmem:[#allocation10 + $0x1] sm:$0x1]
        %v1474 = vlaneseq
        %v1475 = vshrl.u32 %v1474, 7
        %v1476 = vsub.s32 0, %v1475
        %v1477 = vrot.slane %v1473, %v1476
        %1479 = vrot.lane.b32.xlu0 %v1477, 16
        %v1480 = vpop.permute.xlu0 %1479
        %v1482 = vmul.f32 %v1460, %v1480
        %v1483 = vmul.f32 %v1471, %v1480
        %v1484 = vmul.f32 %v1461, %v1480
        %v1485 = vmul.f32 %v1472, %v1480
        %1490 = vrot.lane.b32.xlu0 %v1482, 112
        %v1491 = vpop.permute.xlu0 %1490
        %1492 = vrot.lane.b32.xlu0 %v1483, 112
        %v1493 = vpop.permute.xlu0 %1492
        %1494 = vrot.lane.b32.xlu0 %v1484, 112
        %v1495 = vpop.permute.xlu0 %1494
        %1496 = vrot.lane.b32.xlu0 %v1485, 112
        %v1497 = vpop.permute.xlu0 %1496
        %v1498 = vsel %vm985, %v1491, %v1493
        %v1499 = vsel %vm985, %v1495, %v1497
        %v1502 = vadd.f32 %v1469, %v1498
        %v1503 = vadd.f32 %v1470, %v1499
        %v1504 = vld [vmem:[#allocation10 + $0x2] sm:$0x1]
        %v1505 = vlaneseq
        %v1506 = vshrl.u32 %v1505, 7
        %v1507 = vsub.s32 0, %v1506
        %v1508 = vrot.slane %v1504, %v1507
        %1510 = vrot.lane.b32.xlu0 %v1508, 32
        %v1511 = vpop.permute.xlu0 %1510
        %v1513 = vmul.f32 %v1460, %v1511
        %v1514 = vmul.f32 %v1471, %v1511
        %v1515 = vmul.f32 %v1461, %v1511
        %v1516 = vmul.f32 %v1472, %v1511
        %1521 = vrot.lane.b32.xlu0 %v1513, 96
        %v1522 = vpop.permute.xlu0 %1521
        %1523 = vrot.lane.b32.xlu0 %v1514, 96
        %v1524 = vpop.permute.xlu0 %1523
        %1525 = vrot.lane.b32.xlu0 %v1515, 96
        %v1526 = vpop.permute.xlu0 %1525
        %1527 = vrot.lane.b32.xlu0 %v1516, 96
        %v1528 = vpop.permute.xlu0 %1527
        %vm1529 = vcmask 785408
        %v1530 = vsel %vm1529, %v1522, %v1524
        %v1531 = vsel %vm1529, %v1526, %v1528
        %v1534 = vadd.f32 %v1502, %v1530
        %v1535 = vadd.f32 %v1503, %v1531
        %v1536 = vld [vmem:[#allocation10 + $0x3] sm:$0x1]
        %v1537 = vlaneseq
        %v1538 = vshrl.u32 %v1537, 7
        %v1539 = vsub.s32 0, %v1538
        %v1540 = vrot.slane %v1536, %v1539
        %1542 = vrot.lane.b32.xlu0 %v1540, 48
        %v1543 = vpop.permute.xlu0 %1542
        %v1545 = vmul.f32 %v1460, %v1543
        %v1546 = vmul.f32 %v1471, %v1543
        %v1547 = vmul.f32 %v1461, %v1543
        %v1548 = vmul.f32 %v1472, %v1543
        %1553 = vrot.lane.b32.xlu0 %v1545, 80
        %v1554 = vpop.permute.xlu0 %1553
        %1555 = vrot.lane.b32.xlu0 %v1546, 80
        %v1556 = vpop.permute.xlu0 %1555
        %1557 = vrot.lane.b32.xlu0 %v1547, 80
        %v1558 = vpop.permute.xlu0 %1557
        %1559 = vrot.lane.b32.xlu0 %v1548, 80
        %v1560 = vpop.permute.xlu0 %1559
        %vm1561 = vcmask 654336
        %v1562 = vsel %vm1561, %v1554, %v1556
        %v1563 = vsel %vm1561, %v1558, %v1560
        %v1566 = vadd.f32 %v1534, %v1562
        %v1567 = vadd.f32 %v1535, %v1563
        %v1568 = vld [vmem:[#allocation10 + $0x4] sm:$0x1]
        %v1569 = vlaneseq
        %v1570 = vshrl.u32 %v1569, 7
        %v1571 = vsub.s32 0, %v1570
        %v1572 = vrot.slane %v1568, %v1571
        %1574 = vrot.lane.b32.xlu0 %v1572, 64
        %v1575 = vpop.permute.xlu0 %1574
        %v1577 = vmul.f32 %v1460, %v1575
        %v1578 = vmul.f32 %v1471, %v1575
        %v1579 = vmul.f32 %v1461, %v1575
        %v1580 = vmul.f32 %v1472, %v1575
        %1585 = vrot.lane.b32.xlu0 %v1577, 64
        %v1586 = vpop.permute.xlu0 %1585
        %1587 = vrot.lane.b32.xlu0 %v1578, 64
        %v1588 = vpop.permute.xlu0 %1587
        %1589 = vrot.lane.b32.xlu0 %v1579, 64
        %v1590 = vpop.permute.xlu0 %1589
        %1591 = vrot.lane.b32.xlu0 %v1580, 64
        %v1592 = vpop.permute.xlu0 %1591
        %vm1593 = vcmask 523264
        %v1594 = vsel %vm1593, %v1586, %v1588
        %v1595 = vsel %vm1593, %v1590, %v1592
        %v1598 = vadd.f32 %v1566, %v1594
        %v1599 = vadd.f32 %v1567, %v1595
        %v1600 = vld [vmem:[#allocation2] sm:$0xfc]
        %v1601 = vld [vmem:[#allocation2 + $0x20] sm:$0x3]
        %v1602 = vld [vmem:[#allocation10 + $0x5] sm:$0x1]
        %v1603 = vlaneseq
        %v1604 = vshrl.u32 %v1603, 7
        %v1605 = vsub.s32 0, %v1604
        %v1606 = vrot.slane %v1602, %v1605
        %v1607 = vmul.f32 %v1600, %v1606
        %v1608 = vmul.f32 %v1461, %v1606
        %v1609 = vmul.f32 %v1601, %v1606
        %v1613 = vrot.slane %v1607, 2
        %v1614 = vrot.slane %v1608, 2
        %v1615 = vsel %vm1105, %v1613, %v1614
        %v1616 = vrot.slane %v1609, 2
        %v1617 = vsel %vm1105, %v1614, %v1616
        %v1620 = vadd.f32 %v1598, %v1615
        %v1621 = vadd.f32 %v1599, %v1617
        %v1622 = vld [vmem:[#allocation2 + $0x8] sm:$0xfc]
        %v1623 = vld [vmem:[#allocation2 + $0x28] sm:$0x3]
        %v1624 = vld [vmem:[#allocation10 + $0x6] sm:$0x1]
        %v1625 = vlaneseq
        %v1626 = vshrl.u32 %v1625, 7
        %v1627 = vsub.s32 0, %v1626
        %v1628 = vrot.slane %v1624, %v1627
        %1630 = vrot.lane.b32.xlu0 %v1628, 16
        %v1631 = vpop.permute.xlu0 %1630
        %v1633 = vmul.f32 %v1600, %v1631
        %v1634 = vmul.f32 %v1622, %v1631
        %v1635 = vmul.f32 %v1461, %v1631
        %v1636 = vmul.f32 %v1472, %v1631
        %v1637 = vmul.f32 %v1601, %v1631
        %v1638 = vmul.f32 %v1623, %v1631
        %v1645 = vrot.slane %v1633, 2
        %v1646 = vrot.slane %v1635, 2
        %v1647 = vsel %vm1105, %v1645, %v1646
        %v1648 = vrot.slane %v1634, 2
        %v1649 = vrot.slane %v1636, 2
        %v1650 = vsel %vm1105, %v1648, %v1649
        %v1651 = vrot.slane %v1637, 2
        %v1652 = vsel %vm1105, %v1646, %v1651
        %v1653 = vrot.slane %v1638, 2
        %v1654 = vsel %vm1105, %v1649, %v1653
        %1655 = vrot.lane.b32.xlu0 %v1647, 112
        %v1656 = vpop.permute.xlu0 %1655
        %1657 = vrot.lane.b32.xlu0 %v1650, 112
        %v1658 = vpop.permute.xlu0 %1657
        %1659 = vrot.lane.b32.xlu0 %v1652, 112
        %v1660 = vpop.permute.xlu0 %1659
        %1661 = vrot.lane.b32.xlu0 %v1654, 112
        %v1662 = vpop.permute.xlu0 %1661
        %v1663 = vsel %vm985, %v1656, %v1658
        %v1664 = vsel %vm985, %v1660, %v1662
        %v1667 = vadd.f32 %v1620, %v1663
        %v1668 = vadd.f32 %v1621, %v1664
        %v1669 = vld [vmem:[#allocation10 + $0x7] sm:$0x1]
        %v1670 = vlaneseq
        %v1671 = vshrl.u32 %v1670, 7
        %v1672 = vsub.s32 0, %v1671
        %v1673 = vrot.slane %v1669, %v1672
        %1675 = vrot.lane.b32.xlu0 %v1673, 32
        %v1676 = vpop.permute.xlu0 %1675
        %v1678 = vmul.f32 %v1600, %v1676
        %v1679 = vmul.f32 %v1622, %v1676
        %v1680 = vmul.f32 %v1461, %v1676
        %v1681 = vmul.f32 %v1472, %v1676
        %v1682 = vmul.f32 %v1601, %v1676
        %v1683 = vmul.f32 %v1623, %v1676
        %v1690 = vrot.slane %v1678, 2
        %v1691 = vrot.slane %v1680, 2
        %v1692 = vsel %vm1105, %v1690, %v1691
        %v1693 = vrot.slane %v1679, 2
        %v1694 = vrot.slane %v1681, 2
        %v1695 = vsel %vm1105, %v1693, %v1694
        %v1696 = vrot.slane %v1682, 2
        %v1697 = vsel %vm1105, %v1691, %v1696
        %v1698 = vrot.slane %v1683, 2
        %v1699 = vsel %vm1105, %v1694, %v1698
        %1700 = vrot.lane.b32.xlu0 %v1692, 96
        %v1701 = vpop.permute.xlu0 %1700
        %1702 = vrot.lane.b32.xlu0 %v1695, 96
        %v1703 = vpop.permute.xlu0 %1702
        %1704 = vrot.lane.b32.xlu0 %v1697, 96
        %v1705 = vpop.permute.xlu0 %1704
        %1706 = vrot.lane.b32.xlu0 %v1699, 96
        %v1707 = vpop.permute.xlu0 %1706
        %v1708 = vsel %vm1529, %v1701, %v1703
        %v1709 = vsel %vm1529, %v1705, %v1707
        %v1712 = vadd.f32 %v1667, %v1708
        %v1713 = vadd.f32 %v1668, %v1709
        %v1714 = vld [vmem:[#allocation10 + $0x8] sm:$0x1]
        %v1715 = vlaneseq
        %v1716 = vshrl.u32 %v1715, 7
        %v1717 = vsub.s32 0, %v1716
        %v1718 = vrot.slane %v1714, %v1717
        %1720 = vrot.lane.b32.xlu0 %v1718, 48
        %v1721 = vpop.permute.xlu0 %1720
        %v1723 = vmul.f32 %v1600, %v1721
        %v1724 = vmul.f32 %v1622, %v1721
        %v1725 = vmul.f32 %v1461, %v1721
        %v1726 = vmul.f32 %v1472, %v1721
        %v1727 = vmul.f32 %v1601, %v1721
        %v1728 = vmul.f32 %v1623, %v1721
        %v1735 = vrot.slane %v1723, 2
        %v1736 = vrot.slane %v1725, 2
        %v1737 = vsel %vm1105, %v1735, %v1736
        %v1738 = vrot.slane %v1724, 2
        %v1739 = vrot.slane %v1726, 2
        %v1740 = vsel %vm1105, %v1738, %v1739
        %v1741 = vrot.slane %v1727, 2
        %v1742 = vsel %vm1105, %v1736, %v1741
        %v1743 = vrot.slane %v1728, 2
        %v1744 = vsel %vm1105, %v1739, %v1743
        %1745 = vrot.lane.b32.xlu0 %v1737, 80
        %v1746 = vpop.permute.xlu0 %1745
        %1747 = vrot.lane.b32.xlu0 %v1740, 80
        %v1748 = vpop.permute.xlu0 %1747
        %1749 = vrot.lane.b32.xlu0 %v1742, 80
        %v1750 = vpop.permute.xlu0 %1749
        %1751 = vrot.lane.b32.xlu0 %v1744, 80
        %v1752 = vpop.permute.xlu0 %1751
        %v1753 = vsel %vm1561, %v1746, %v1748
        %v1754 = vsel %vm1561, %v1750, %v1752
        %v1757 = vadd.f32 %v1712, %v1753
        %v1758 = vadd.f32 %v1713, %v1754
        %v1759 = vld [vmem:[#allocation10 + $0x9] sm:$0x1]
        %v1760 = vlaneseq
        %v1761 = vshrl.u32 %v1760, 7
        %v1762 = vsub.s32 0, %v1761
        %v1763 = vrot.slane %v1759, %v1762
        %1765 = vrot.lane.b32.xlu0 %v1763, 64
        %v1766 = vpop.permute.xlu0 %1765
        %v1768 = vmul.f32 %v1600, %v1766
        %v1769 = vmul.f32 %v1622, %v1766
        %v1770 = vmul.f32 %v1461, %v1766
        %v1771 = vmul.f32 %v1472, %v1766
        %v1772 = vmul.f32 %v1601, %v1766
        %v1773 = vmul.f32 %v1623, %v1766
        %v1780 = vrot.slane %v1768, 2
        %v1781 = vrot.slane %v1770, 2
        %v1782 = vsel %vm1105, %v1780, %v1781
        %v1783 = vrot.slane %v1769, 2
        %v1784 = vrot.slane %v1771, 2
        %v1785 = vsel %vm1105, %v1783, %v1784
        %v1786 = vrot.slane %v1772, 2
        %v1787 = vsel %vm1105, %v1781, %v1786
        %v1788 = vrot.slane %v1773, 2
        %v1789 = vsel %vm1105, %v1784, %v1788
        %1790 = vrot.lane.b32.xlu0 %v1782, 64
        %v1791 = vpop.permute.xlu0 %1790
        %1792 = vrot.lane.b32.xlu0 %v1785, 64
        %v1793 = vpop.permute.xlu0 %1792
        %1794 = vrot.lane.b32.xlu0 %v1787, 64
        %v1795 = vpop.permute.xlu0 %1794
        %1796 = vrot.lane.b32.xlu0 %v1789, 64
        %v1797 = vpop.permute.xlu0 %1796
        %v1798 = vsel %vm1593, %v1791, %v1793
        %v1799 = vsel %vm1593, %v1795, %v1797
        %v1802 = vadd.f32 %v1757, %v1798
        %v1803 = vadd.f32 %v1758, %v1799
        %v1804 = vld [vmem:[#allocation2] sm:$0xf0]
        %v1805 = vld [vmem:[#allocation2 + $0x20] sm:$0xf]
        %v1806 = vld [vmem:[#allocation10 + $0xa] sm:$0x1]
        %v1807 = vlaneseq
        %v1808 = vshrl.u32 %v1807, 7
        %v1809 = vsub.s32 0, %v1808
        %v1810 = vrot.slane %v1806, %v1809
        %v1811 = vmul.f32 %v1804, %v1810
        %v1812 = vmul.f32 %v1461, %v1810
        %v1813 = vmul.f32 %v1805, %v1810
        %v1817 = vrot.slane %v1811, 4
        %v1818 = vrot.slane %v1812, 4
        %v1819 = vsel %vm497, %v1817, %v1818
        %v1820 = vrot.slane %v1813, 4
        %v1821 = vsel %vm497, %v1818, %v1820
        %v1824 = vadd.f32 %v1802, %v1819
        %v1825 = vadd.f32 %v1803, %v1821
        %v1826 = vld [vmem:[#allocation2 + $0x8] sm:$0xf0]
        %v1827 = vld [vmem:[#allocation2 + $0x28] sm:$0xf]
        %v1828 = vld [vmem:[#allocation10 + $0xb] sm:$0x1]
        %v1829 = vlaneseq
        %v1830 = vshrl.u32 %v1829, 7
        %v1831 = vsub.s32 0, %v1830
        %v1832 = vrot.slane %v1828, %v1831
        %1834 = vrot.lane.b32.xlu0 %v1832, 16
        %v1835 = vpop.permute.xlu0 %1834
        %v1837 = vmul.f32 %v1804, %v1835
        %v1838 = vmul.f32 %v1826, %v1835
        %v1839 = vmul.f32 %v1461, %v1835
        %v1840 = vmul.f32 %v1472, %v1835
        %v1841 = vmul.f32 %v1805, %v1835
        %v1842 = vmul.f32 %v1827, %v1835
        %v1849 = vrot.slane %v1837, 4
        %v1850 = vrot.slane %v1839, 4
        %v1851 = vsel %vm497, %v1849, %v1850
        %v1852 = vrot.slane %v1838, 4
        %v1853 = vrot.slane %v1840, 4
        %v1854 = vsel %vm497, %v1852, %v1853
        %v1855 = vrot.slane %v1841, 4
        %v1856 = vsel %vm497, %v1850, %v1855
        %v1857 = vrot.slane %v1842, 4
        %v1858 = vsel %vm497, %v1853, %v1857
        %1859 = vrot.lane.b32.xlu0 %v1851, 112
        %v1860 = vpop.permute.xlu0 %1859
        %1861 = vrot.lane.b32.xlu0 %v1854, 112
        %v1862 = vpop.permute.xlu0 %1861
        %1863 = vrot.lane.b32.xlu0 %v1856, 112
        %v1864 = vpop.permute.xlu0 %1863
        %1865 = vrot.lane.b32.xlu0 %v1858, 112
        %v1866 = vpop.permute.xlu0 %1865
        %v1867 = vsel %vm985, %v1860, %v1862
        %v1868 = vsel %vm985, %v1864, %v1866
        %v1871 = vadd.f32 %v1824, %v1867
        %v1872 = vadd.f32 %v1825, %v1868
        %v1873 = vld [vmem:[#allocation10 + $0xc] sm:$0x1]
        %v1874 = vlaneseq
        %v1875 = vshrl.u32 %v1874, 7
        %v1876 = vsub.s32 0, %v1875
        %v1877 = vrot.slane %v1873, %v1876
        %1879 = vrot.lane.b32.xlu0 %v1877, 32
        %v1880 = vpop.permute.xlu0 %1879
        %v1882 = vmul.f32 %v1804, %v1880
        %v1883 = vmul.f32 %v1826, %v1880
        %v1884 = vmul.f32 %v1461, %v1880
        %v1885 = vmul.f32 %v1472, %v1880
        %v1886 = vmul.f32 %v1805, %v1880
        %v1887 = vmul.f32 %v1827, %v1880
        %v1894 = vrot.slane %v1882, 4
        %v1895 = vrot.slane %v1884, 4
        %v1896 = vsel %vm497, %v1894, %v1895
        %v1897 = vrot.slane %v1883, 4
        %v1898 = vrot.slane %v1885, 4
        %v1899 = vsel %vm497, %v1897, %v1898
        %v1900 = vrot.slane %v1886, 4
        %v1901 = vsel %vm497, %v1895, %v1900
        %v1902 = vrot.slane %v1887, 4
        %v1903 = vsel %vm497, %v1898, %v1902
        %1904 = vrot.lane.b32.xlu0 %v1896, 96
        %v1905 = vpop.permute.xlu0 %1904
        %1906 = vrot.lane.b32.xlu0 %v1899, 96
        %v1907 = vpop.permute.xlu0 %1906
        %1908 = vrot.lane.b32.xlu0 %v1901, 96
        %v1909 = vpop.permute.xlu0 %1908
        %1910 = vrot.lane.b32.xlu0 %v1903, 96
        %v1911 = vpop.permute.xlu0 %1910
        %v1912 = vsel %vm1529, %v1905, %v1907
        %v1913 = vsel %vm1529, %v1909, %v1911
        %v1916 = vadd.f32 %v1871, %v1912
        %v1917 = vadd.f32 %v1872, %v1913
        %v1918 = vld [vmem:[#allocation10 + $0xd] sm:$0x1]
        %v1919 = vlaneseq
        %v1920 = vshrl.u32 %v1919, 7
        %v1921 = vsub.s32 0, %v1920
        %v1922 = vrot.slane %v1918, %v1921
        %1924 = vrot.lane.b32.xlu0 %v1922, 48
        %v1925 = vpop.permute.xlu0 %1924
        %v1927 = vmul.f32 %v1804, %v1925
        %v1928 = vmul.f32 %v1826, %v1925
        %v1929 = vmul.f32 %v1461, %v1925
        %v1930 = vmul.f32 %v1472, %v1925
        %v1931 = vmul.f32 %v1805, %v1925
        %v1932 = vmul.f32 %v1827, %v1925
        %v1939 = vrot.slane %v1927, 4
        %v1940 = vrot.slane %v1929, 4
        %v1941 = vsel %vm497, %v1939, %v1940
        %v1942 = vrot.slane %v1928, 4
        %v1943 = vrot.slane %v1930, 4
        %v1944 = vsel %vm497, %v1942, %v1943
        %v1945 = vrot.slane %v1931, 4
        %v1946 = vsel %vm497, %v1940, %v1945
        %v1947 = vrot.slane %v1932, 4
        %v1948 = vsel %vm497, %v1943, %v1947
        %1949 = vrot.lane.b32.xlu0 %v1941, 80
        %v1950 = vpop.permute.xlu0 %1949
        %1951 = vrot.lane.b32.xlu0 %v1944, 80
        %v1952 = vpop.permute.xlu0 %1951
        %1953 = vrot.lane.b32.xlu0 %v1946, 80
        %v1954 = vpop.permute.xlu0 %1953
        %1955 = vrot.lane.b32.xlu0 %v1948, 80
        %v1956 = vpop.permute.xlu0 %1955
        %v1957 = vsel %vm1561, %v1950, %v1952
        %v1958 = vsel %vm1561, %v1954, %v1956
        %v1961 = vadd.f32 %v1916, %v1957
        %v1962 = vadd.f32 %v1917, %v1958
        %v1963 = vld [vmem:[#allocation10 + $0xe] sm:$0x1]
        %v1964 = vlaneseq
        %v1965 = vshrl.u32 %v1964, 7
        %v1966 = vsub.s32 0, %v1965
        %v1967 = vrot.slane %v1963, %v1966
        %1969 = vrot.lane.b32.xlu0 %v1967, 64
        %v1970 = vpop.permute.xlu0 %1969
        %v1972 = vmul.f32 %v1804, %v1970
        %v1973 = vmul.f32 %v1826, %v1970
        %v1974 = vmul.f32 %v1461, %v1970
        %v1975 = vmul.f32 %v1472, %v1970
        %v1976 = vmul.f32 %v1805, %v1970
        %v1977 = vmul.f32 %v1827, %v1970
        %v1984 = vrot.slane %v1972, 4
        %v1985 = vrot.slane %v1974, 4
        %v1986 = vsel %vm497, %v1984, %v1985
        %v1987 = vrot.slane %v1973, 4
        %v1988 = vrot.slane %v1975, 4
        %v1989 = vsel %vm497, %v1987, %v1988
        %v1990 = vrot.slane %v1976, 4
        %v1991 = vsel %vm497, %v1985, %v1990
        %v1992 = vrot.slane %v1977, 4
        %v1993 = vsel %vm497, %v1988, %v1992
        %1994 = vrot.lane.b32.xlu0 %v1986, 64
        %v1995 = vpop.permute.xlu0 %1994
        %1996 = vrot.lane.b32.xlu0 %v1989, 64
        %v1997 = vpop.permute.xlu0 %1996
        %1998 = vrot.lane.b32.xlu0 %v1991, 64
        %v1999 = vpop.permute.xlu0 %1998
        %2000 = vrot.lane.b32.xlu0 %v1993, 64
        %v2001 = vpop.permute.xlu0 %2000
        %v2002 = vsel %vm1593, %v1995, %v1997
        %v2003 = vsel %vm1593, %v1999, %v2001
        %v2006 = vadd.f32 %v1961, %v2002
        %v2007 = vadd.f32 %v1962, %v2003
        %v2008 = vld [vmem:[#allocation2] sm:$0xc0]
        %v2009 = vld [vmem:[#allocation2 + $0x20] sm:$0x3f]
        %v2010 = vld [vmem:[#allocation10 + $0xf] sm:$0x1]
        %v2011 = vlaneseq
        %v2012 = vshrl.u32 %v2011, 7
        %v2013 = vsub.s32 0, %v2012
        %v2014 = vrot.slane %v2010, %v2013
        %v2015 = vmul.f32 %v2008, %v2014
        %v2016 = vmul.f32 %v1461, %v2014
        %v2017 = vmul.f32 %v2009, %v2014
        %vm2021 = vcmask 1041408
        %v2022 = vrot.slane %v2015, 6
        %v2023 = vrot.slane %v2016, 6
        %v2024 = vsel %vm2021, %v2022, %v2023
        %v2025 = vrot.slane %v2017, 6
        %v2026 = vsel %vm2021, %v2023, %v2025
        %v2029 = vadd.f32 %v2006, %v2024
        %v2030 = vadd.f32 %v2007, %v2026
        %v2031 = vld [vmem:[#allocation2 + $0x8] sm:$0xc0]
        %v2032 = vld [vmem:[#allocation2 + $0x28] sm:$0x3f]
        %v2033 = vld [vmem:[#allocation10 + $0x10] sm:$0x1]
        %v2034 = vlaneseq
        %v2035 = vshrl.u32 %v2034, 7
        %v2036 = vsub.s32 0, %v2035
        %v2037 = vrot.slane %v2033, %v2036
        %2039 = vrot.lane.b32.xlu0 %v2037, 16
        %v2040 = vpop.permute.xlu0 %2039
        %v2042 = vmul.f32 %v2008, %v2040
        %v2043 = vmul.f32 %v2031, %v2040
        %v2044 = vmul.f32 %v1461, %v2040
        %v2045 = vmul.f32 %v1472, %v2040
        %v2046 = vmul.f32 %v2009, %v2040
        %v2047 = vmul.f32 %v2032, %v2040
        %v2054 = vrot.slane %v2042, 6
        %v2055 = vrot.slane %v2044, 6
        %v2056 = vsel %vm2021, %v2054, %v2055
        %v2057 = vrot.slane %v2043, 6
        %v2058 = vrot.slane %v2045, 6
        %v2059 = vsel %vm2021, %v2057, %v2058
        %v2060 = vrot.slane %v2046, 6
        %v2061 = vsel %vm2021, %v2055, %v2060
        %v2062 = vrot.slane %v2047, 6
        %v2063 = vsel %vm2021, %v2058, %v2062
        %2064 = vrot.lane.b32.xlu0 %v2056, 112
        %v2065 = vpop.permute.xlu0 %2064
        %2066 = vrot.lane.b32.xlu0 %v2059, 112
        %v2067 = vpop.permute.xlu0 %2066
        %2068 = vrot.lane.b32.xlu0 %v2061, 112
        %v2069 = vpop.permute.xlu0 %2068
        %2070 = vrot.lane.b32.xlu0 %v2063, 112
        %v2071 = vpop.permute.xlu0 %2070
        %v2072 = vsel %vm985, %v2065, %v2067
        %v2073 = vsel %vm985, %v2069, %v2071
        %v2076 = vadd.f32 %v2029, %v2072
        %v2077 = vadd.f32 %v2030, %v2073
        %v2078 = vld [vmem:[#allocation10 + $0x11] sm:$0x1]
        %v2079 = vlaneseq
        %v2080 = vshrl.u32 %v2079, 7
        %v2081 = vsub.s32 0, %v2080
        %v2082 = vrot.slane %v2078, %v2081
        %2084 = vrot.lane.b32.xlu0 %v2082, 32
        %v2085 = vpop.permute.xlu0 %2084
        %v2087 = vmul.f32 %v2008, %v2085
        %v2088 = vmul.f32 %v2031, %v2085
        %v2089 = vmul.f32 %v1461, %v2085
        %v2090 = vmul.f32 %v1472, %v2085
        %v2091 = vmul.f32 %v2009, %v2085
        %v2092 = vmul.f32 %v2032, %v2085
        %v2099 = vrot.slane %v2087, 6
        %v2100 = vrot.slane %v2089, 6
        %v2101 = vsel %vm2021, %v2099, %v2100
        %v2102 = vrot.slane %v2088, 6
        %v2103 = vrot.slane %v2090, 6
        %v2104 = vsel %vm2021, %v2102, %v2103
        %v2105 = vrot.slane %v2091, 6
        %v2106 = vsel %vm2021, %v2100, %v2105
        %v2107 = vrot.slane %v2092, 6
        %v2108 = vsel %vm2021, %v2103, %v2107
        %2109 = vrot.lane.b32.xlu0 %v2101, 96
        %v2110 = vpop.permute.xlu0 %2109
        %2111 = vrot.lane.b32.xlu0 %v2104, 96
        %v2112 = vpop.permute.xlu0 %2111
        %2113 = vrot.lane.b32.xlu0 %v2106, 96
        %v2114 = vpop.permute.xlu0 %2113
        %2115 = vrot.lane.b32.xlu0 %v2108, 96
        %v2116 = vpop.permute.xlu0 %2115
        %v2117 = vsel %vm1529, %v2110, %v2112
        %v2118 = vsel %vm1529, %v2114, %v2116
        %v2121 = vadd.f32 %v2076, %v2117
        %v2122 = vadd.f32 %v2077, %v2118
        %v2123 = vld [vmem:[#allocation10 + $0x12] sm:$0x1]
        %v2124 = vlaneseq
        %v2125 = vshrl.u32 %v2124, 7
        %v2126 = vsub.s32 0, %v2125
        %v2127 = vrot.slane %v2123, %v2126
        %2129 = vrot.lane.b32.xlu0 %v2127, 48
        %v2130 = vpop.permute.xlu0 %2129
        %v2132 = vmul.f32 %v2008, %v2130
        %v2133 = vmul.f32 %v2031, %v2130
        %v2134 = vmul.f32 %v1461, %v2130
        %v2135 = vmul.f32 %v1472, %v2130
        %v2136 = vmul.f32 %v2009, %v2130
        %v2137 = vmul.f32 %v2032, %v2130
        %v2144 = vrot.slane %v2132, 6
        %v2145 = vrot.slane %v2134, 6
        %v2146 = vsel %vm2021, %v2144, %v2145
        %v2147 = vrot.slane %v2133, 6
        %v2148 = vrot.slane %v2135, 6
        %v2149 = vsel %vm2021, %v2147, %v2148
        %v2150 = vrot.slane %v2136, 6
        %v2151 = vsel %vm2021, %v2145, %v2150
        %v2152 = vrot.slane %v2137, 6
        %v2153 = vsel %vm2021, %v2148, %v2152
        %2154 = vrot.lane.b32.xlu0 %v2146, 80
        %v2155 = vpop.permute.xlu0 %2154
        %2156 = vrot.lane.b32.xlu0 %v2149, 80
        %v2157 = vpop.permute.xlu0 %2156
        %2158 = vrot.lane.b32.xlu0 %v2151, 80
        %v2159 = vpop.permute.xlu0 %2158
        %2160 = vrot.lane.b32.xlu0 %v2153, 80
        %v2161 = vpop.permute.xlu0 %2160
        %v2162 = vsel %vm1561, %v2155, %v2157
        %v2163 = vsel %vm1561, %v2159, %v2161
        %v2166 = vadd.f32 %v2121, %v2162
        %v2167 = vadd.f32 %v2122, %v2163
        %v2168 = vld [vmem:[#allocation10 + $0x13] sm:$0x1]
        %v2169 = vlaneseq
        %v2170 = vshrl.u32 %v2169, 7
        %v2171 = vsub.s32 0, %v2170
        %v2172 = vrot.slane %v2168, %v2171
        %2174 = vrot.lane.b32.xlu0 %v2172, 64
        %v2175 = vpop.permute.xlu0 %2174
        %v2177 = vmul.f32 %v2008, %v2175
        %v2178 = vmul.f32 %v2031, %v2175
        %v2179 = vmul.f32 %v1461, %v2175
        %v2180 = vmul.f32 %v1472, %v2175
        %v2181 = vmul.f32 %v2009, %v2175
        %v2182 = vmul.f32 %v2032, %v2175
        %v2189 = vrot.slane %v2177, 6
        %v2190 = vrot.slane %v2179, 6
        %v2191 = vsel %vm2021, %v2189, %v2190
        %v2192 = vrot.slane %v2178, 6
        %v2193 = vrot.slane %v2180, 6
        %v2194 = vsel %vm2021, %v2192, %v2193
        %v2195 = vrot.slane %v2181, 6
        %v2196 = vsel %vm2021, %v2190, %v2195
        %v2197 = vrot.slane %v2182, 6
        %v2198 = vsel %vm2021, %v2193, %v2197
        %2199 = vrot.lane.b32.xlu0 %v2191, 64
        %v2200 = vpop.permute.xlu0 %2199
        %2201 = vrot.lane.b32.xlu0 %v2194, 64
        %v2202 = vpop.permute.xlu0 %2201
        %2203 = vrot.lane.b32.xlu0 %v2196, 64
        %v2204 = vpop.permute.xlu0 %2203
        %2205 = vrot.lane.b32.xlu0 %v2198, 64
        %v2206 = vpop.permute.xlu0 %2205
        %v2207 = vsel %vm1593, %v2200, %v2202
        %v2208 = vsel %vm1593, %v2204, %v2206
        %v2211 = vadd.f32 %v2166, %v2207
        %v2212 = vadd.f32 %v2167, %v2208
        %v2213 = vld [vmem:[#allocation2 + $0x20] sm:$0xff]
        %v2214 = vld [vmem:[#allocation10 + $0x14] sm:$0x1]
        %v2215 = vlaneseq
        %v2216 = vshrl.u32 %v2215, 7
        %v2217 = vsub.s32 0, %v2216
        %v2218 = vrot.slane %v2214, %v2217
        %v2219 = vmul.f32 %v1461, %v2218
        %v2220 = vmul.f32 %v2213, %v2218
        %v2221 = vadd.f32 %v2211, %v2219
        %v2222 = vadd.f32 %v2212, %v2220
        %v2223 = vld [vmem:[#allocation2 + $0x28] sm:$0xff]
        %v2224 = vld [vmem:[#allocation10 + $0x15] sm:$0x1]
        %v2225 = vlaneseq
        %v2226 = vshrl.u32 %v2225, 7
        %v2227 = vsub.s32 0, %v2226
        %v2228 = vrot.slane %v2224, %v2227
        %2230 = vrot.lane.b32.xlu0 %v2228, 16
        %v2231 = vpop.permute.xlu0 %2230
        %v2233 = vmul.f32 %v1461, %v2231
        %v2234 = vmul.f32 %v1472, %v2231
        %v2235 = vmul.f32 %v2213, %v2231
        %v2236 = vmul.f32 %v2223, %v2231
        %2241 = vrot.lane.b32.xlu0 %v2233, 112
        %v2242 = vpop.permute.xlu0 %2241
        %2243 = vrot.lane.b32.xlu0 %v2234, 112
        %v2244 = vpop.permute.xlu0 %2243
        %2245 = vrot.lane.b32.xlu0 %v2235, 112
        %v2246 = vpop.permute.xlu0 %2245
        %2247 = vrot.lane.b32.xlu0 %v2236, 112
        %v2248 = vpop.permute.xlu0 %2247
        %v2249 = vsel %vm985, %v2242, %v2244
        %v2250 = vsel %vm985, %v2246, %v2248
        %v2253 = vadd.f32 %v2221, %v2249
        %v2254 = vadd.f32 %v2222, %v2250
        %v2255 = vld [vmem:[#allocation10 + $0x16] sm:$0x1]
        %v2256 = vlaneseq
        %v2257 = vshrl.u32 %v2256, 7
        %v2258 = vsub.s32 0, %v2257
        %v2259 = vrot.slane %v2255, %v2258
        %2261 = vrot.lane.b32.xlu0 %v2259, 32
        %v2262 = vpop.permute.xlu0 %2261
        %v2264 = vmul.f32 %v1461, %v2262
        %v2265 = vmul.f32 %v1472, %v2262
        %v2266 = vmul.f32 %v2213, %v2262
        %v2267 = vmul.f32 %v2223, %v2262
        %2272 = vrot.lane.b32.xlu0 %v2264, 96
        %v2273 = vpop.permute.xlu0 %2272
        %2274 = vrot.lane.b32.xlu0 %v2265, 96
        %v2275 = vpop.permute.xlu0 %2274
        %2276 = vrot.lane.b32.xlu0 %v2266, 96
        %v2277 = vpop.permute.xlu0 %2276
        %2278 = vrot.lane.b32.xlu0 %v2267, 96
        %v2279 = vpop.permute.xlu0 %2278
        %v2280 = vsel %vm1529, %v2273, %v2275
        %v2281 = vsel %vm1529, %v2277, %v2279
        %v2284 = vadd.f32 %v2253, %v2280
        %v2285 = vadd.f32 %v2254, %v2281
        %v2286 = vld [vmem:[#allocation10 + $0x17] sm:$0x1]
        %v2287 = vlaneseq
        %v2288 = vshrl.u32 %v2287, 7
        %v2289 = vsub.s32 0, %v2288
        %v2290 = vrot.slane %v2286, %v2289
        %2292 = vrot.lane.b32.xlu0 %v2290, 48
        %v2293 = vpop.permute.xlu0 %2292
        %v2295 = vmul.f32 %v1461, %v2293
        %v2296 = vmul.f32 %v1472, %v2293
        %v2297 = vmul.f32 %v2213, %v2293
        %v2298 = vmul.f32 %v2223, %v2293
        %2303 = vrot.lane.b32.xlu0 %v2295, 80
        %v2304 = vpop.permute.xlu0 %2303
        %2305 = vrot.lane.b32.xlu0 %v2296, 80
        %v2306 = vpop.permute.xlu0 %2305
        %2307 = vrot.lane.b32.xlu0 %v2297, 80
        %v2308 = vpop.permute.xlu0 %2307
        %2309 = vrot.lane.b32.xlu0 %v2298, 80
        %v2310 = vpop.permute.xlu0 %2309
        %v2311 = vsel %vm1561, %v2304, %v2306
        %v2312 = vsel %vm1561, %v2308, %v2310
        %v2315 = vadd.f32 %v2284, %v2311
        %v2316 = vadd.f32 %v2285, %v2312
        %v2317 = vld [vmem:[#allocation10 + $0x18] sm:$0x1]
        %v2318 = vlaneseq
        %v2319 = vshrl.u32 %v2318, 7
        %v2320 = vsub.s32 0, %v2319
        %v2321 = vrot.slane %v2317, %v2320
        %2323 = vrot.lane.b32.xlu0 %v2321, 64
        %v2324 = vpop.permute.xlu0 %2323
        %v2326 = vmul.f32 %v1461, %v2324
        %v2327 = vmul.f32 %v1472, %v2324
        %v2328 = vmul.f32 %v2213, %v2324
        %v2329 = vmul.f32 %v2223, %v2324
        %2334 = vrot.lane.b32.xlu0 %v2326, 64
        %v2335 = vpop.permute.xlu0 %2334
        %2336 = vrot.lane.b32.xlu0 %v2327, 64
        %v2337 = vpop.permute.xlu0 %2336
        %2338 = vrot.lane.b32.xlu0 %v2328, 64
        %v2339 = vpop.permute.xlu0 %2338
        %2340 = vrot.lane.b32.xlu0 %v2329, 64
        %v2341 = vpop.permute.xlu0 %2340
        %v2342 = vsel %vm1593, %v2335, %v2337
        %v2343 = vsel %vm1593, %v2339, %v2341
        %v2346 = vadd.f32 %v2315, %v2342
        %v2347 = vadd.f32 %v2316, %v2343
        %v2348 = vld [vmem:[%s2] sm:$0x1]
        %v2350 = vlaneseq
        %v2351 = vshrl.u32 %v2350, 7
        %v2352 = vsub.s32 0, %v2351
        %v2353 = vrot.slane %v2348, %v2352
        %v2355 = vadd.f32 %v2346, %v2353
        %v2356 = vadd.f32 %v2347, %v2353
        %2357 = vst [vmem:[#allocation3] sm:$0xff] 0.0
        %2358 = vst [vmem:[#allocation3 + $0x8] sm:$0xff] 0.0
        %vm2359 = vcmask 130048
        %2360 = vst.msk [vmem:[#allocation3 + $0x10] sm:$0xff] %vm2359, 0.0
        %2361 = vst [vmem:[#allocation3 + $0x18] sm:$0x1] 0.0
        %2362 = vst [vmem:[#allocation3 + $0x20] sm:$0x1] 0.0
        %vm2363 = vcmask 122880
        %2364 = vst.msk [vmem:[#allocation3 + $0x28] sm:$0x1] %vm2363, 0.0
        %2365 = vst [vmem:[#allocation3 + $0x48] sm:$0xfe] 0.0
        %2366 = vst [vmem:[#allocation3 + $0x50] sm:$0xfe] 0.0
        %vm2367 = vcmask 130049
        %2368 = vst.msk [vmem:[#allocation3 + $0x58] sm:$0xfe] %vm2367, 0.0
        %2369 = vst [vmem:[#allocation3 + $0x60] sm:$0x3] 0.0
        %2370 = vst [vmem:[#allocation3 + $0x68] sm:$0x3] 0.0
        %vm2371 = vcmask 123904
        %2372 = vst.msk [vmem:[#allocation3 + $0x70] sm:$0x3] %vm2371, 0.0
        %vm2373 = vcmask 588801
        %2374 = vst.msk [vmem:[#allocation3 + $0x18] sm:$0xfe] %vm2373, 0.0
        %vm2375 = vcmask 588800
        %2376 = vst.msk [vmem:[#allocation3 + $0x30] sm:$0xff] %vm2375, 0.0
        %vm2377 = vcmask 581632
        %2378 = vst.msk [vmem:[#allocation3 + $0x48] sm:$0x1] %vm2377, 0.0
        %vm2379 = vcmask 1048129
        %2380 = vst.msk [vmem:[#allocation3 + $0x20] sm:$0xfe] %vm2379, 0.0
        %2381 = vst.msk [vmem:[#allocation3 + $0x28] sm:$0xfe] %vm2367, 0.0
        %vm2382 = vcmask 1048128
        %2383 = vst.msk [vmem:[#allocation3 + $0x38] sm:$0xff] %vm2382, 0.0
        %2384 = vst.msk [vmem:[#allocation3 + $0x40] sm:$0xff] %vm2359, 0.0
        %vm2385 = vcmask 1040960
        %2386 = vst.msk [vmem:[#allocation3 + $0x50] sm:$0x1] %vm2385, 0.0
        %2387 = vst.msk [vmem:[#allocation3 + $0x58] sm:$0x1] %vm2363, 0.0
        %v2390 = vrot.slane %v2355, 7
        %v2391 = vrot.slane %v2356, 7
        %v2392 = vsel %vm877, %v2390, %v2391
        %2393 = vrot.lane.b32.xlu0 %v2390, 72
        %v2394 = vpop.permute.xlu0 %2393
        %2395 = vrot.lane.b32.xlu0 %v2392, 72
        %v2396 = vpop.permute.xlu0 %2395
        %2397 = vrot.lane.b32.xlu0 %v2391, 72
        %v2398 = vpop.permute.xlu0 %2397
        %2402 = vst.msk [vmem:[#allocation3 + $0x18] sm:$0xfe] %vm2379, %v2394
        %2403 = vst.msk [vmem:[#allocation3 + $0x20] sm:$0xfe] %vm2373, %v2394
        %2404 = vst.msk [vmem:[#allocation3 + $0x30] sm:$0xff] %vm2382, %v2396
        %2405 = vst.msk [vmem:[#allocation3 + $0x38] sm:$0xff] %vm2375, %v2396
        %2406 = vst.msk [vmem:[#allocation3 + $0x48] sm:$0x1] %vm2385, %v2398
        %2407 = vst.msk [vmem:[#allocation3 + $0x50] sm:$0x1] %vm2377, %v2398
        %v2408 = vld [vmem:[#allocation3] sm:$0xff]
        %v2409 = vld [vmem:[#allocation3 + $0x18] sm:$0xff]
        %v2410 = vld [vmem:[#allocation12] sm:$0x1]
        %v2411 = vlaneseq
        %v2412 = vshrl.u32 %v2411, 7
        %v2413 = vsub.s32 0, %v2412
        %v2414 = vrot.slane %v2410, %v2413
        %v2415 = vmul.f32 %v2408, %v2414
        %v2416 = vmul.f32 %v2409, %v2414
        %v2417 = vadd.f32 %v2415, 0.0
        %v2418 = vadd.f32 %v2416, 0.0
        %v2419 = vld [vmem:[#allocation3 + $0x8] sm:$0xff]
        %v2420 = vld [vmem:[#allocation3 + $0x20] sm:$0xff]
        %v2421 = vld [vmem:[#allocation12 + $0x1] sm:$0x1]
        %v2422 = vlaneseq
        %v2423 = vshrl.u32 %v2422, 7
        %v2424 = vsub.s32 0, %v2423
        %v2425 = vrot.slane %v2421, %v2424
        %2427 = vrot.lane.b32.xlu0 %v2425, 24
        %v2428 = vpop.permute.xlu0 %2427
        %v2430 = vmul.f32 %v2408, %v2428
        %v2431 = vmul.f32 %v2419, %v2428
        %v2432 = vmul.f32 %v2409, %v2428
        %v2433 = vmul.f32 %v2420, %v2428
        %2438 = vrot.lane.b32.xlu0 %v2430, 104
        %v2439 = vpop.permute.xlu0 %2438
        %2440 = vrot.lane.b32.xlu0 %v2431, 104
        %v2441 = vpop.permute.xlu0 %2440
        %2442 = vrot.lane.b32.xlu0 %v2432, 104
        %v2443 = vpop.permute.xlu0 %2442
        %2444 = vrot.lane.b32.xlu0 %v2433, 104
        %v2445 = vpop.permute.xlu0 %2444
        %vm2446 = vcmask 850944
        %v2447 = vsel %vm2446, %v2439, %v2441
        %v2448 = vsel %vm2446, %v2443, %v2445
        %v2451 = vadd.f32 %v2417, %v2447
        %v2452 = vadd.f32 %v2418, %v2448
        %v2453 = vld [vmem:[#allocation12 + $0x2] sm:$0x1]
        %v2454 = vlaneseq
        %v2455 = vshrl.u32 %v2454, 7
        %v2456 = vsub.s32 0, %v2455
        %v2457 = vrot.slane %v2453, %v2456
        %2459 = vrot.lane.b32.xlu0 %v2457, 48
        %v2460 = vpop.permute.xlu0 %2459
        %v2462 = vmul.f32 %v2408, %v2460
        %v2463 = vmul.f32 %v2419, %v2460
        %v2464 = vmul.f32 %v2409, %v2460
        %v2465 = vmul.f32 %v2420, %v2460
        %2470 = vrot.lane.b32.xlu0 %v2462, 80
        %v2471 = vpop.permute.xlu0 %2470
        %2472 = vrot.lane.b32.xlu0 %v2463, 80
        %v2473 = vpop.permute.xlu0 %2472
        %2474 = vrot.lane.b32.xlu0 %v2464, 80
        %v2475 = vpop.permute.xlu0 %2474
        %2476 = vrot.lane.b32.xlu0 %v2465, 80
        %v2477 = vpop.permute.xlu0 %2476
        %v2478 = vsel %vm1561, %v2471, %v2473
        %v2479 = vsel %vm1561, %v2475, %v2477
        %v2482 = vadd.f32 %v2451, %v2478
        %v2483 = vadd.f32 %v2452, %v2479
        %v2484 = vld [vmem:[#allocation12 + $0x3] sm:$0x1]
        %v2485 = vlaneseq
        %v2486 = vshrl.u32 %v2485, 7
        %v2487 = vsub.s32 0, %v2486
        %v2488 = vrot.slane %v2484, %v2487
        %2490 = vrot.lane.b32.xlu0 %v2488, 72
        %v2491 = vpop.permute.xlu0 %2490
        %v2493 = vmul.f32 %v2408, %v2491
        %v2494 = vmul.f32 %v2419, %v2491
        %v2495 = vmul.f32 %v2409, %v2491
        %v2496 = vmul.f32 %v2420, %v2491
        %2501 = vrot.lane.b32.xlu0 %v2493, 56
        %v2502 = vpop.permute.xlu0 %2501
        %2503 = vrot.lane.b32.xlu0 %v2494, 56
        %v2504 = vpop.permute.xlu0 %2503
        %2505 = vrot.lane.b32.xlu0 %v2495, 56
        %v2506 = vpop.permute.xlu0 %2505
        %2507 = vrot.lane.b32.xlu0 %v2496, 56
        %v2508 = vpop.permute.xlu0 %2507
        %vm2509 = vcmask 457728
        %v2510 = vsel %vm2509, %v2502, %v2504
        %v2511 = vsel %vm2509, %v2506, %v2508
        %v2514 = vadd.f32 %v2482, %v2510
        %v2515 = vadd.f32 %v2483, %v2511
        %v2516 = vld [vmem:[#allocation12 + $0x4] sm:$0x1]
        %v2517 = vlaneseq
        %v2518 = vshrl.u32 %v2517, 7
        %v2519 = vsub.s32 0, %v2518
        %v2520 = vrot.slane %v2516, %v2519
        %2522 = vrot.lane.b32.xlu0 %v2520, 96
        %v2523 = vpop.permute.xlu0 %2522
        %v2525 = vmul.f32 %v2408, %v2523
        %v2526 = vmul.f32 %v2419, %v2523
        %v2527 = vmul.f32 %v2409, %v2523
        %v2528 = vmul.f32 %v2420, %v2523
        %2533 = vrot.lane.b32.xlu0 %v2525, 32
        %v2534 = vpop.permute.xlu0 %2533
        %2535 = vrot.lane.b32.xlu0 %v2526, 32
        %v2536 = vpop.permute.xlu0 %2535
        %2537 = vrot.lane.b32.xlu0 %v2527, 32
        %v2538 = vpop.permute.xlu0 %2537
        %2539 = vrot.lane.b32.xlu0 %v2528, 32
        %v2540 = vpop.permute.xlu0 %2539
        %v2541 = vsel %vm485, %v2534, %v2536
        %v2542 = vsel %vm485, %v2538, %v2540
        %v2545 = vadd.f32 %v2514, %v2541
        %v2546 = vadd.f32 %v2515, %v2542
        %v2547 = vld [vmem:[#allocation12 + $0x5] sm:$0x1]
        %v2548 = vlaneseq
        %v2549 = vshrl.u32 %v2548, 7
        %v2550 = vsub.s32 0, %v2549
        %v2551 = vrot.slane %v2547, %v2550
        %2553 = vrot.lane.b32.xlu0 %v2551, 120
        %v2554 = vpop.permute.xlu0 %2553
        %v2556 = vmul.f32 %v2408, %v2554
        %v2557 = vmul.f32 %v2419, %v2554
        %v2558 = vmul.f32 %v2409, %v2554
        %v2559 = vmul.f32 %v2420, %v2554
        %2564 = vrot.lane.b32.xlu0 %v2556, 8
        %v2565 = vpop.permute.xlu0 %2564
        %2566 = vrot.lane.b32.xlu0 %v2557, 8
        %v2567 = vpop.permute.xlu0 %2566
        %2568 = vrot.lane.b32.xlu0 %v2558, 8
        %v2569 = vpop.permute.xlu0 %2568
        %2570 = vrot.lane.b32.xlu0 %v2559, 8
        %v2571 = vpop.permute.xlu0 %2570
        %v2572 = vsel %vm865, %v2565, %v2567
        %v2573 = vsel %vm865, %v2569, %v2571
        %v2576 = vadd.f32 %v2545, %v2572
        %v2577 = vadd.f32 %v2546, %v2573
        %v2578 = vld [vmem:[#allocation3 + $0x10] sm:$0xff]
        %v2579 = vld [vmem:[#allocation3 + $0x28] sm:$0xff]
        %v2580 = vld [vmem:[#allocation12 + $0x6] sm:$0x1]
        %v2581 = vlaneseq
        %v2582 = vshrl.u32 %v2581, 7
        %v2583 = vsub.s32 0, %v2582
        %v2584 = vrot.slane %v2580, %v2583
        %2586 = vrot.lane.b32.xlu0 %v2584, 16
        %v2587 = vpop.permute.xlu0 %2586
        %v2589 = vmul.f32 %v2419, %v2587
        %v2590 = vmul.f32 %v2578, %v2587
        %v2591 = vmul.f32 %v2420, %v2587
        %v2592 = vmul.f32 %v2579, %v2587
        %2597 = vrot.lane.b32.xlu0 %v2589, 112
        %v2598 = vpop.permute.xlu0 %2597
        %2599 = vrot.lane.b32.xlu0 %v2590, 112
        %v2600 = vpop.permute.xlu0 %2599
        %2601 = vrot.lane.b32.xlu0 %v2591, 112
        %v2602 = vpop.permute.xlu0 %2601
        %2603 = vrot.lane.b32.xlu0 %v2592, 112
        %v2604 = vpop.permute.xlu0 %2603
        %v2605 = vsel %vm985, %v2598, %v2600
        %v2606 = vsel %vm985, %v2602, %v2604
        %v2609 = vadd.f32 %v2576, %v2605
        %v2610 = vadd.f32 %v2577, %v2606
        %v2611 = vld [vmem:[#allocation3] sm:$0xf8]
        %v2612 = vld [vmem:[#allocation3 + $0x30] sm:$0x7]
        %v2613 = vld [vmem:[#allocation12 + $0x7] sm:$0x1]
        %v2614 = vlaneseq
        %v2615 = vshrl.u32 %v2614, 7
        %v2616 = vsub.s32 0, %v2615
        %v2617 = vrot.slane %v2613, %v2616
        %v2618 = vmul.f32 %v2611, %v2617
        %v2619 = vmul.f32 %v2409, %v2617
        %v2620 = vmul.f32 %v2612, %v2617
        %vm2624 = vcmask 1044480
        %v2625 = vrot.slane %v2618, 3
        %v2626 = vrot.slane %v2619, 3
        %v2627 = vsel %vm2624, %v2625, %v2626
        %v2628 = vrot.slane %v2620, 3
        %v2629 = vsel %vm2624, %v2626, %v2628
        %v2632 = vadd.f32 %v2609, %v2627
        %v2633 = vadd.f32 %v2610, %v2629
        %v2634 = vld [vmem:[#allocation3 + $0x8] sm:$0xf8]
        %v2635 = vld [vmem:[#allocation3 + $0x38] sm:$0x7]
        %v2636 = vld [vmem:[#allocation12 + $0x8] sm:$0x1]
        %v2637 = vlaneseq
        %v2638 = vshrl.u32 %v2637, 7
        %v2639 = vsub.s32 0, %v2638
        %v2640 = vrot.slane %v2636, %v2639
        %2642 = vrot.lane.b32.xlu0 %v2640, 24
        %v2643 = vpop.permute.xlu0 %2642
        %v2645 = vmul.f32 %v2611, %v2643
        %v2646 = vmul.f32 %v2634, %v2643
        %v2647 = vmul.f32 %v2409, %v2643
        %v2648 = vmul.f32 %v2420, %v2643
        %v2649 = vmul.f32 %v2612, %v2643
        %v2650 = vmul.f32 %v2635, %v2643
        %v2657 = vrot.slane %v2645, 3
        %v2658 = vrot.slane %v2647, 3
        %v2659 = vsel %vm2624, %v2657, %v2658
        %v2660 = vrot.slane %v2646, 3
        %v2661 = vrot.slane %v2648, 3
        %v2662 = vsel %vm2624, %v2660, %v2661
        %v2663 = vrot.slane %v2649, 3
        %v2664 = vsel %vm2624, %v2658, %v2663
        %v2665 = vrot.slane %v2650, 3
        %v2666 = vsel %vm2624, %v2661, %v2665
        %2667 = vrot.lane.b32.xlu0 %v2659, 104
        %v2668 = vpop.permute.xlu0 %2667
        %2669 = vrot.lane.b32.xlu0 %v2662, 104
        %v2670 = vpop.permute.xlu0 %2669
        %2671 = vrot.lane.b32.xlu0 %v2664, 104
        %v2672 = vpop.permute.xlu0 %2671
        %2673 = vrot.lane.b32.xlu0 %v2666, 104
        %v2674 = vpop.permute.xlu0 %2673
        %v2675 = vsel %vm2446, %v2668, %v2670
        %v2676 = vsel %vm2446, %v2672, %v2674
        %v2679 = vadd.f32 %v2632, %v2675
        %v2680 = vadd.f32 %v2633, %v2676
        %v2681 = vld [vmem:[#allocation12 + $0x9] sm:$0x1]
        %v2682 = vlaneseq
        %v2683 = vshrl.u32 %v2682, 7
        %v2684 = vsub.s32 0, %v2683
        %v2685 = vrot.slane %v2681, %v2684
        %2687 = vrot.lane.b32.xlu0 %v2685, 48
        %v2688 = vpop.permute.xlu0 %2687
        %v2690 = vmul.f32 %v2611, %v2688
        %v2691 = vmul.f32 %v2634, %v2688
        %v2692 = vmul.f32 %v2409, %v2688
        %v2693 = vmul.f32 %v2420, %v2688
        %v2694 = vmul.f32 %v2612, %v2688
        %v2695 = vmul.f32 %v2635, %v2688
        %v2702 = vrot.slane %v2690, 3
        %v2703 = vrot.slane %v2692, 3
        %v2704 = vsel %vm2624, %v2702, %v2703
        %v2705 = vrot.slane %v2691, 3
        %v2706 = vrot.slane %v2693, 3
        %v2707 = vsel %vm2624, %v2705, %v2706
        %v2708 = vrot.slane %v2694, 3
        %v2709 = vsel %vm2624, %v2703, %v2708
        %v2710 = vrot.slane %v2695, 3
        %v2711 = vsel %vm2624, %v2706, %v2710
        %2712 = vrot.lane.b32.xlu0 %v2704, 80
        %v2713 = vpop.permute.xlu0 %2712
        %2714 = vrot.lane.b32.xlu0 %v2707, 80
        %v2715 = vpop.permute.xlu0 %2714
        %2716 = vrot.lane.b32.xlu0 %v2709, 80
        %v2717 = vpop.permute.xlu0 %2716
        %2718 = vrot.lane.b32.xlu0 %v2711, 80
        %v2719 = vpop.permute.xlu0 %2718
        %v2720 = vsel %vm1561, %v2713, %v2715
        %v2721 = vsel %vm1561, %v2717, %v2719
        %v2724 = vadd.f32 %v2679, %v2720
        %v2725 = vadd.f32 %v2680, %v2721
        %v2726 = vld [vmem:[#allocation12 + $0xa] sm:$0x1]
        %v2727 = vlaneseq
        %v2728 = vshrl.u32 %v2727, 7
        %v2729 = vsub.s32 0, %v2728
        %v2730 = vrot.slane %v2726, %v2729
        %2732 = vrot.lane.b32.xlu0 %v2730, 72
        %v2733 = vpop.permute.xlu0 %2732
        %v2735 = vmul.f32 %v2611, %v2733
        %v2736 = vmul.f32 %v2634, %v2733
        %v2737 = vmul.f32 %v2409, %v2733
        %v2738 = vmul.f32 %v2420, %v2733
        %v2739 = vmul.f32 %v2612, %v2733
        %v2740 = vmul.f32 %v2635, %v2733
        %v2747 = vrot.slane %v2735, 3
        %v2748 = vrot.slane %v2737, 3
        %v2749 = vsel %vm2624, %v2747, %v2748
        %v2750 = vrot.slane %v2736, 3
        %v2751 = vrot.slane %v2738, 3
        %v2752 = vsel %vm2624, %v2750, %v2751
        %v2753 = vrot.slane %v2739, 3
        %v2754 = vsel %vm2624, %v2748, %v2753
        %v2755 = vrot.slane %v2740, 3
        %v2756 = vsel %vm2624, %v2751, %v2755
        %2757 = vrot.lane.b32.xlu0 %v2749, 56
        %v2758 = vpop.permute.xlu0 %2757
        %2759 = vrot.lane.b32.xlu0 %v2752, 56
        %v2760 = vpop.permute.xlu0 %2759
        %2761 = vrot.lane.b32.xlu0 %v2754, 56
        %v2762 = vpop.permute.xlu0 %2761
        %2763 = vrot.lane.b32.xlu0 %v2756, 56
        %v2764 = vpop.permute.xlu0 %2763
        %v2765 = vsel %vm2509, %v2758, %v2760
        %v2766 = vsel %vm2509, %v2762, %v2764
        %v2769 = vadd.f32 %v2724, %v2765
        %v2770 = vadd.f32 %v2725, %v2766
        %v2771 = vld [vmem:[#allocation12 + $0xb] sm:$0x1]
        %v2772 = vlaneseq
        %v2773 = vshrl.u32 %v2772, 7
        %v2774 = vsub.s32 0, %v2773
        %v2775 = vrot.slane %v2771, %v2774
        %2777 = vrot.lane.b32.xlu0 %v2775, 96
        %v2778 = vpop.permute.xlu0 %2777
        %v2780 = vmul.f32 %v2611, %v2778
        %v2781 = vmul.f32 %v2634, %v2778
        %v2782 = vmul.f32 %v2409, %v2778
        %v2783 = vmul.f32 %v2420, %v2778
        %v2784 = vmul.f32 %v2612, %v2778
        %v2785 = vmul.f32 %v2635, %v2778
        %v2792 = vrot.slane %v2780, 3
        %v2793 = vrot.slane %v2782, 3
        %v2794 = vsel %vm2624, %v2792, %v2793
        %v2795 = vrot.slane %v2781, 3
        %v2796 = vrot.slane %v2783, 3
        %v2797 = vsel %vm2624, %v2795, %v2796
        %v2798 = vrot.slane %v2784, 3
        %v2799 = vsel %vm2624, %v2793, %v2798
        %v2800 = vrot.slane %v2785, 3
        %v2801 = vsel %vm2624, %v2796, %v2800
        %2802 = vrot.lane.b32.xlu0 %v2794, 32
        %v2803 = vpop.permute.xlu0 %2802
        %2804 = vrot.lane.b32.xlu0 %v2797, 32
        %v2805 = vpop.permute.xlu0 %2804
        %2806 = vrot.lane.b32.xlu0 %v2799, 32
        %v2807 = vpop.permute.xlu0 %2806
        %2808 = vrot.lane.b32.xlu0 %v2801, 32
        %v2809 = vpop.permute.xlu0 %2808
        %v2810 = vsel %vm485, %v2803, %v2805
        %v2811 = vsel %vm485, %v2807, %v2809
        %v2814 = vadd.f32 %v2769, %v2810
        %v2815 = vadd.f32 %v2770, %v2811
        %v2816 = vld [vmem:[#allocation12 + $0xc] sm:$0x1]
        %v2817 = vlaneseq
        %v2818 = vshrl.u32 %v2817, 7
        %v2819 = vsub.s32 0, %v2818
        %v2820 = vrot.slane %v2816, %v2819
        %2822 = vrot.lane.b32.xlu0 %v2820, 120
        %v2823 = vpop.permute.xlu0 %2822
        %v2825 = vmul.f32 %v2611, %v2823
        %v2826 = vmul.f32 %v2634, %v2823
        %v2827 = vmul.f32 %v2409, %v2823
        %v2828 = vmul.f32 %v2420, %v2823
        %v2829 = vmul.f32 %v2612, %v2823
        %v2830 = vmul.f32 %v2635, %v2823
        %v2837 = vrot.slane %v2825, 3
        %v2838 = vrot.slane %v2827, 3
        %v2839 = vsel %vm2624, %v2837, %v2838
        %v2840 = vrot.slane %v2826, 3
        %v2841 = vrot.slane %v2828, 3
        %v2842 = vsel %vm2624, %v2840, %v2841
        %v2843 = vrot.slane %v2829, 3
        %v2844 = vsel %vm2624, %v2838, %v2843
        %v2845 = vrot.slane %v2830, 3
        %v2846 = vsel %vm2624, %v2841, %v2845
        %2847 = vrot.lane.b32.xlu0 %v2839, 8
        %v2848 = vpop.permute.xlu0 %2847
        %2849 = vrot.lane.b32.xlu0 %v2842, 8
        %v2850 = vpop.permute.xlu0 %2849
        %2851 = vrot.lane.b32.xlu0 %v2844, 8
        %v2852 = vpop.permute.xlu0 %2851
        %2853 = vrot.lane.b32.xlu0 %v2846, 8
        %v2854 = vpop.permute.xlu0 %2853
        %v2855 = vsel %vm865, %v2848, %v2850
        %v2856 = vsel %vm865, %v2852, %v2854
        %v2859 = vadd.f32 %v2814, %v2855
        %v2860 = vadd.f32 %v2815, %v2856
        %v2861 = vld [vmem:[#allocation3 + $0x10] sm:$0xf8]
        %v2862 = vld [vmem:[#allocation3 + $0x40] sm:$0x7]
        %v2863 = vld [vmem:[#allocation12 + $0xd] sm:$0x1]
        %v2864 = vlaneseq
        %v2865 = vshrl.u32 %v2864, 7
        %v2866 = vsub.s32 0, %v2865
        %v2867 = vrot.slane %v2863, %v2866
        %2869 = vrot.lane.b32.xlu0 %v2867, 16
        %v2870 = vpop.permute.xlu0 %2869
        %v2872 = vmul.f32 %v2634, %v2870
        %v2873 = vmul.f32 %v2861, %v2870
        %v2874 = vmul.f32 %v2420, %v2870
        %v2875 = vmul.f32 %v2579, %v2870
        %v2876 = vmul.f32 %v2635, %v2870
        %v2877 = vmul.f32 %v2862, %v2870
        %v2884 = vrot.slane %v2872, 3
        %v2885 = vrot.slane %v2874, 3
        %v2886 = vsel %vm2624, %v2884, %v2885
        %v2887 = vrot.slane %v2873, 3
        %v2888 = vrot.slane %v2875, 3
        %v2889 = vsel %vm2624, %v2887, %v2888
        %v2890 = vrot.slane %v2876, 3
        %v2891 = vsel %vm2624, %v2885, %v2890
        %v2892 = vrot.slane %v2877, 3
        %v2893 = vsel %vm2624, %v2888, %v2892
        %2894 = vrot.lane.b32.xlu0 %v2886, 112
        %v2895 = vpop.permute.xlu0 %2894
        %2896 = vrot.lane.b32.xlu0 %v2889, 112
        %v2897 = vpop.permute.xlu0 %2896
        %2898 = vrot.lane.b32.xlu0 %v2891, 112
        %v2899 = vpop.permute.xlu0 %2898
        %2900 = vrot.lane.b32.xlu0 %v2893, 112
        %v2901 = vpop.permute.xlu0 %2900
        %v2902 = vsel %vm985, %v2895, %v2897
        %v2903 = vsel %vm985, %v2899, %v2901
        %v2906 = vadd.f32 %v2859, %v2902
        %v2907 = vadd.f32 %v2860, %v2903
        %v2908 = vld [vmem:[#allocation3] sm:$0xc0]
        %v2909 = vld [vmem:[#allocation3 + $0x30] sm:$0x3f]
        %v2910 = vld [vmem:[#allocation12 + $0xe] sm:$0x1]
        %v2911 = vlaneseq
        %v2912 = vshrl.u32 %v2911, 7
        %v2913 = vsub.s32 0, %v2912
        %v2914 = vrot.slane %v2910, %v2913
        %v2915 = vmul.f32 %v2908, %v2914
        %v2916 = vmul.f32 %v2409, %v2914
        %v2917 = vmul.f32 %v2909, %v2914
        %v2921 = vrot.slane %v2915, 6
        %v2922 = vrot.slane %v2916, 6
        %v2923 = vsel %vm2021, %v2921, %v2922
        %v2924 = vrot.slane %v2917, 6
        %v2925 = vsel %vm2021, %v2922, %v2924
        %v2928 = vadd.f32 %v2906, %v2923
        %v2929 = vadd.f32 %v2907, %v2925
        %v2930 = vld [vmem:[#allocation3 + $0x8] sm:$0xc0]
        %v2931 = vld [vmem:[#allocation3 + $0x38] sm:$0x3f]
        %v2932 = vld [vmem:[#allocation12 + $0xf] sm:$0x1]
        %v2933 = vlaneseq
        %v2934 = vshrl.u32 %v2933, 7
        %v2935 = vsub.s32 0, %v2934
        %v2936 = vrot.slane %v2932, %v2935
        %2938 = vrot.lane.b32.xlu0 %v2936, 24
        %v2939 = vpop.permute.xlu0 %2938
        %v2941 = vmul.f32 %v2908, %v2939
        %v2942 = vmul.f32 %v2930, %v2939
        %v2943 = vmul.f32 %v2409, %v2939
        %v2944 = vmul.f32 %v2420, %v2939
        %v2945 = vmul.f32 %v2909, %v2939
        %v2946 = vmul.f32 %v2931, %v2939
        %v2953 = vrot.slane %v2941, 6
        %v2954 = vrot.slane %v2943, 6
        %v2955 = vsel %vm2021, %v2953, %v2954
        %v2956 = vrot.slane %v2942, 6
        %v2957 = vrot.slane %v2944, 6
        %v2958 = vsel %vm2021, %v2956, %v2957
        %v2959 = vrot.slane %v2945, 6
        %v2960 = vsel %vm2021, %v2954, %v2959
        %v2961 = vrot.slane %v2946, 6
        %v2962 = vsel %vm2021, %v2957, %v2961
        %2963 = vrot.lane.b32.xlu0 %v2955, 104
        %v2964 = vpop.permute.xlu0 %2963
        %2965 = vrot.lane.b32.xlu0 %v2958, 104
        %v2966 = vpop.permute.xlu0 %2965
        %2967 = vrot.lane.b32.xlu0 %v2960, 104
        %v2968 = vpop.permute.xlu0 %2967
        %2969 = vrot.lane.b32.xlu0 %v2962, 104
        %v2970 = vpop.permute.xlu0 %2969
        %v2971 = vsel %vm2446, %v2964, %v2966
        %v2972 = vsel %vm2446, %v2968, %v2970
        %v2975 = vadd.f32 %v2928, %v2971
        %v2976 = vadd.f32 %v2929, %v2972
        %v2977 = vld [vmem:[#allocation12 + $0x10] sm:$0x1]
        %v2978 = vlaneseq
        %v2979 = vshrl.u32 %v2978, 7
        %v2980 = vsub.s32 0, %v2979
        %v2981 = vrot.slane %v2977, %v2980
        %2983 = vrot.lane.b32.xlu0 %v2981, 48
        %v2984 = vpop.permute.xlu0 %2983
        %v2986 = vmul.f32 %v2908, %v2984
        %v2987 = vmul.f32 %v2930, %v2984
        %v2988 = vmul.f32 %v2409, %v2984
        %v2989 = vmul.f32 %v2420, %v2984
        %v2990 = vmul.f32 %v2909, %v2984
        %v2991 = vmul.f32 %v2931, %v2984
        %v2998 = vrot.slane %v2986, 6
        %v2999 = vrot.slane %v2988, 6
        %v3000 = vsel %vm2021, %v2998, %v2999
        %v3001 = vrot.slane %v2987, 6
        %v3002 = vrot.slane %v2989, 6
        %v3003 = vsel %vm2021, %v3001, %v3002
        %v3004 = vrot.slane %v2990, 6
        %v3005 = vsel %vm2021, %v2999, %v3004
        %v3006 = vrot.slane %v2991, 6
        %v3007 = vsel %vm2021, %v3002, %v3006
        %3008 = vrot.lane.b32.xlu0 %v3000, 80
        %v3009 = vpop.permute.xlu0 %3008
        %3010 = vrot.lane.b32.xlu0 %v3003, 80
        %v3011 = vpop.permute.xlu0 %3010
        %3012 = vrot.lane.b32.xlu0 %v3005, 80
        %v3013 = vpop.permute.xlu0 %3012
        %3014 = vrot.lane.b32.xlu0 %v3007, 80
        %v3015 = vpop.permute.xlu0 %3014
        %v3016 = vsel %vm1561, %v3009, %v3011
        %v3017 = vsel %vm1561, %v3013, %v3015
        %v3020 = vadd.f32 %v2975, %v3016
        %v3021 = vadd.f32 %v2976, %v3017
        %v3022 = vld [vmem:[#allocation12 + $0x11] sm:$0x1]
        %v3023 = vlaneseq
        %v3024 = vshrl.u32 %v3023, 7
        %v3025 = vsub.s32 0, %v3024
        %v3026 = vrot.slane %v3022, %v3025
        %3028 = vrot.lane.b32.xlu0 %v3026, 72
        %v3029 = vpop.permute.xlu0 %3028
        %v3031 = vmul.f32 %v2908, %v3029
        %v3032 = vmul.f32 %v2930, %v3029
        %v3033 = vmul.f32 %v2409, %v3029
        %v3034 = vmul.f32 %v2420, %v3029
        %v3035 = vmul.f32 %v2909, %v3029
        %v3036 = vmul.f32 %v2931, %v3029
        %v3043 = vrot.slane %v3031, 6
        %v3044 = vrot.slane %v3033, 6
        %v3045 = vsel %vm2021, %v3043, %v3044
        %v3046 = vrot.slane %v3032, 6
        %v3047 = vrot.slane %v3034, 6
        %v3048 = vsel %vm2021, %v3046, %v3047
        %v3049 = vrot.slane %v3035, 6
        %v3050 = vsel %vm2021, %v3044, %v3049
        %v3051 = vrot.slane %v3036, 6
        %v3052 = vsel %vm2021, %v3047, %v3051
        %3053 = vrot.lane.b32.xlu0 %v3045, 56
        %v3054 = vpop.permute.xlu0 %3053
        %3055 = vrot.lane.b32.xlu0 %v3048, 56
        %v3056 = vpop.permute.xlu0 %3055
        %3057 = vrot.lane.b32.xlu0 %v3050, 56
        %v3058 = vpop.permute.xlu0 %3057
        %3059 = vrot.lane.b32.xlu0 %v3052, 56
        %v3060 = vpop.permute.xlu0 %3059
        %v3061 = vsel %vm2509, %v3054, %v3056
        %v3062 = vsel %vm2509, %v3058, %v3060
        %v3065 = vadd.f32 %v3020, %v3061
        %v3066 = vadd.f32 %v3021, %v3062
        %v3067 = vld [vmem:[#allocation12 + $0x12] sm:$0x1]
        %v3068 = vlaneseq
        %v3069 = vshrl.u32 %v3068, 7
        %v3070 = vsub.s32 0, %v3069
        %v3071 = vrot.slane %v3067, %v3070
        %3073 = vrot.lane.b32.xlu0 %v3071, 96
        %v3074 = vpop.permute.xlu0 %3073
        %v3076 = vmul.f32 %v2908, %v3074
        %v3077 = vmul.f32 %v2930, %v3074
        %v3078 = vmul.f32 %v2409, %v3074
        %v3079 = vmul.f32 %v2420, %v3074
        %v3080 = vmul.f32 %v2909, %v3074
        %v3081 = vmul.f32 %v2931, %v3074
        %v3088 = vrot.slane %v3076, 6
        %v3089 = vrot.slane %v3078, 6
        %v3090 = vsel %vm2021, %v3088, %v3089
        %v3091 = vrot.slane %v3077, 6
        %v3092 = vrot.slane %v3079, 6
        %v3093 = vsel %vm2021, %v3091, %v3092
        %v3094 = vrot.slane %v3080, 6
        %v3095 = vsel %vm2021, %v3089, %v3094
        %v3096 = vrot.slane %v3081, 6
        %v3097 = vsel %vm2021, %v3092, %v3096
        %3098 = vrot.lane.b32.xlu0 %v3090, 32
        %v3099 = vpop.permute.xlu0 %3098
        %3100 = vrot.lane.b32.xlu0 %v3093, 32
        %v3101 = vpop.permute.xlu0 %3100
        %3102 = vrot.lane.b32.xlu0 %v3095, 32
        %v3103 = vpop.permute.xlu0 %3102
        %3104 = vrot.lane.b32.xlu0 %v3097, 32
        %v3105 = vpop.permute.xlu0 %3104
        %v3106 = vsel %vm485, %v3099, %v3101
        %v3107 = vsel %vm485, %v3103, %v3105
        %v3110 = vadd.f32 %v3065, %v3106
        %v3111 = vadd.f32 %v3066, %v3107
        %v3112 = vld [vmem:[#allocation12 + $0x13] sm:$0x1]
        %v3113 = vlaneseq
        %v3114 = vshrl.u32 %v3113, 7
        %v3115 = vsub.s32 0, %v3114
        %v3116 = vrot.slane %v3112, %v3115
        %3118 = vrot.lane.b32.xlu0 %v3116, 120
        %v3119 = vpop.permute.xlu0 %3118
        %v3121 = vmul.f32 %v2908, %v3119
        %v3122 = vmul.f32 %v2930, %v3119
        %v3123 = vmul.f32 %v2409, %v3119
        %v3124 = vmul.f32 %v2420, %v3119
        %v3125 = vmul.f32 %v2909, %v3119
        %v3126 = vmul.f32 %v2931, %v3119
        %v3133 = vrot.slane %v3121, 6
        %v3134 = vrot.slane %v3123, 6
        %v3135 = vsel %vm2021, %v3133, %v3134
        %v3136 = vrot.slane %v3122, 6
        %v3137 = vrot.slane %v3124, 6
        %v3138 = vsel %vm2021, %v3136, %v3137
        %v3139 = vrot.slane %v3125, 6
        %v3140 = vsel %vm2021, %v3134, %v3139
        %v3141 = vrot.slane %v3126, 6
        %v3142 = vsel %vm2021, %v3137, %v3141
        %3143 = vrot.lane.b32.xlu0 %v3135, 8
        %v3144 = vpop.permute.xlu0 %3143
        %3145 = vrot.lane.b32.xlu0 %v3138, 8
        %v3146 = vpop.permute.xlu0 %3145
        %3147 = vrot.lane.b32.xlu0 %v3140, 8
        %v3148 = vpop.permute.xlu0 %3147
        %3149 = vrot.lane.b32.xlu0 %v3142, 8
        %v3150 = vpop.permute.xlu0 %3149
        %v3151 = vsel %vm865, %v3144, %v3146
        %v3152 = vsel %vm865, %v3148, %v3150
        %v3155 = vadd.f32 %v3110, %v3151
        %v3156 = vadd.f32 %v3111, %v3152
        %v3157 = vld [vmem:[#allocation3 + $0x10] sm:$0xc0]
        %v3158 = vld [vmem:[#allocation3 + $0x40] sm:$0x3f]
        %v3159 = vld [vmem:[#allocation12 + $0x14] sm:$0x1]
        %v3160 = vlaneseq
        %v3161 = vshrl.u32 %v3160, 7
        %v3162 = vsub.s32 0, %v3161
        %v3163 = vrot.slane %v3159, %v3162
        %3165 = vrot.lane.b32.xlu0 %v3163, 16
        %v3166 = vpop.permute.xlu0 %3165
        %v3168 = vmul.f32 %v2930, %v3166
        %v3169 = vmul.f32 %v3157, %v3166
        %v3170 = vmul.f32 %v2420, %v3166
        %v3171 = vmul.f32 %v2579, %v3166
        %v3172 = vmul.f32 %v2931, %v3166
        %v3173 = vmul.f32 %v3158, %v3166
        %v3180 = vrot.slane %v3168, 6
        %v3181 = vrot.slane %v3170, 6
        %v3182 = vsel %vm2021, %v3180, %v3181
        %v3183 = vrot.slane %v3169, 6
        %v3184 = vrot.slane %v3171, 6
        %v3185 = vsel %vm2021, %v3183, %v3184
        %v3186 = vrot.slane %v3172, 6
        %v3187 = vsel %vm2021, %v3181, %v3186
        %v3188 = vrot.slane %v3173, 6
        %v3189 = vsel %vm2021, %v3184, %v3188
        %3190 = vrot.lane.b32.xlu0 %v3182, 112
        %v3191 = vpop.permute.xlu0 %3190
        %3192 = vrot.lane.b32.xlu0 %v3185, 112
        %v3193 = vpop.permute.xlu0 %3192
        %3194 = vrot.lane.b32.xlu0 %v3187, 112
        %v3195 = vpop.permute.xlu0 %3194
        %3196 = vrot.lane.b32.xlu0 %v3189, 112
        %v3197 = vpop.permute.xlu0 %3196
        %v3198 = vsel %vm985, %v3191, %v3193
        %v3199 = vsel %vm985, %v3195, %v3197
        %v3202 = vadd.f32 %v3155, %v3198
        %v3203 = vadd.f32 %v3156, %v3199
        %v3204 = vld [vmem:[#allocation3 + $0x18] sm:$0xfe]
        %v3205 = vld [vmem:[#allocation3 + $0x30] sm:$0xff]
        %v3206 = vld [vmem:[#allocation3 + $0x48] sm:$0x1]
        %v3207 = vld [vmem:[#allocation12 + $0x15] sm:$0x1]
        %v3208 = vlaneseq
        %v3209 = vshrl.u32 %v3208, 7
        %v3210 = vsub.s32 0, %v3209
        %v3211 = vrot.slane %v3207, %v3210
        %v3212 = vmul.f32 %v3204, %v3211
        %v3213 = vmul.f32 %v3205, %v3211
        %v3214 = vmul.f32 %v3206, %v3211
        %v3218 = vrot.slane %v3212, 1
        %v3219 = vrot.slane %v3213, 1
        %v3220 = vsel %vm1003, %v3218, %v3219
        %v3221 = vrot.slane %v3214, 1
        %v3222 = vsel %vm1003, %v3219, %v3221
        %v3225 = vadd.f32 %v3202, %v3220
        %v3226 = vadd.f32 %v3203, %v3222
        %v3227 = vld [vmem:[#allocation3 + $0x20] sm:$0xfe]
        %v3228 = vld [vmem:[#allocation3 + $0x38] sm:$0xff]
        %v3229 = vld [vmem:[#allocation3 + $0x50] sm:$0x1]
        %v3230 = vld [vmem:[#allocation12 + $0x16] sm:$0x1]
        %v3231 = vlaneseq
        %v3232 = vshrl.u32 %v3231, 7
        %v3233 = vsub.s32 0, %v3232
        %v3234 = vrot.slane %v3230, %v3233
        %3236 = vrot.lane.b32.xlu0 %v3234, 24
        %v3237 = vpop.permute.xlu0 %3236
        %v3239 = vmul.f32 %v3204, %v3237
        %v3240 = vmul.f32 %v3227, %v3237
        %v3241 = vmul.f32 %v3205, %v3237
        %v3242 = vmul.f32 %v3228, %v3237
        %v3243 = vmul.f32 %v3206, %v3237
        %v3244 = vmul.f32 %v3229, %v3237
        %v3251 = vrot.slane %v3239, 1
        %v3252 = vrot.slane %v3241, 1
        %v3253 = vsel %vm1003, %v3251, %v3252
        %v3254 = vrot.slane %v3240, 1
        %v3255 = vrot.slane %v3242, 1
        %v3256 = vsel %vm1003, %v3254, %v3255
        %v3257 = vrot.slane %v3243, 1
        %v3258 = vsel %vm1003, %v3252, %v3257
        %v3259 = vrot.slane %v3244, 1
        %v3260 = vsel %vm1003, %v3255, %v3259
        %3261 = vrot.lane.b32.xlu0 %v3253, 104
        %v3262 = vpop.permute.xlu0 %3261
        %3263 = vrot.lane.b32.xlu0 %v3256, 104
        %v3264 = vpop.permute.xlu0 %3263
        %3265 = vrot.lane.b32.xlu0 %v3258, 104
        %v3266 = vpop.permute.xlu0 %3265
        %3267 = vrot.lane.b32.xlu0 %v3260, 104
        %v3268 = vpop.permute.xlu0 %3267
        %v3269 = vsel %vm2446, %v3262, %v3264
        %v3270 = vsel %vm2446, %v3266, %v3268
        %v3273 = vadd.f32 %v3225, %v3269
        %v3274 = vadd.f32 %v3226, %v3270
        %v3275 = vld [vmem:[#allocation12 + $0x17] sm:$0x1]
        %v3276 = vlaneseq
        %v3277 = vshrl.u32 %v3276, 7
        %v3278 = vsub.s32 0, %v3277
        %v3279 = vrot.slane %v3275, %v3278
        %3281 = vrot.lane.b32.xlu0 %v3279, 48
        %v3282 = vpop.permute.xlu0 %3281
        %v3284 = vmul.f32 %v3204, %v3282
        %v3285 = vmul.f32 %v3227, %v3282
        %v3286 = vmul.f32 %v3205, %v3282
        %v3287 = vmul.f32 %v3228, %v3282
        %v3288 = vmul.f32 %v3206, %v3282
        %v3289 = vmul.f32 %v3229, %v3282
        %v3296 = vrot.slane %v3284, 1
        %v3297 = vrot.slane %v3286, 1
        %v3298 = vsel %vm1003, %v3296, %v3297
        %v3299 = vrot.slane %v3285, 1
        %v3300 = vrot.slane %v3287, 1
        %v3301 = vsel %vm1003, %v3299, %v3300
        %v3302 = vrot.slane %v3288, 1
        %v3303 = vsel %vm1003, %v3297, %v3302
        %v3304 = vrot.slane %v3289, 1
        %v3305 = vsel %vm1003, %v3300, %v3304
        %3306 = vrot.lane.b32.xlu0 %v3298, 80
        %v3307 = vpop.permute.xlu0 %3306
        %3308 = vrot.lane.b32.xlu0 %v3301, 80
        %v3309 = vpop.permute.xlu0 %3308
        %3310 = vrot.lane.b32.xlu0 %v3303, 80
        %v3311 = vpop.permute.xlu0 %3310
        %3312 = vrot.lane.b32.xlu0 %v3305, 80
        %v3313 = vpop.permute.xlu0 %3312
        %v3314 = vsel %vm1561, %v3307, %v3309
        %v3315 = vsel %vm1561, %v3311, %v3313
        %v3318 = vadd.f32 %v3273, %v3314
        %v3319 = vadd.f32 %v3274, %v3315
        %v3320 = vld [vmem:[#allocation12 + $0x18] sm:$0x1]
        %v3321 = vlaneseq
        %v3322 = vshrl.u32 %v3321, 7
        %v3323 = vsub.s32 0, %v3322
        %v3324 = vrot.slane %v3320, %v3323
        %3326 = vrot.lane.b32.xlu0 %v3324, 72
        %v3327 = vpop.permute.xlu0 %3326
        %v3329 = vmul.f32 %v3204, %v3327
        %v3330 = vmul.f32 %v3227, %v3327
        %v3331 = vmul.f32 %v3205, %v3327
        %v3332 = vmul.f32 %v3228, %v3327
        %v3333 = vmul.f32 %v3206, %v3327
        %v3334 = vmul.f32 %v3229, %v3327
        %v3341 = vrot.slane %v3329, 1
        %v3342 = vrot.slane %v3331, 1
        %v3343 = vsel %vm1003, %v3341, %v3342
        %v3344 = vrot.slane %v3330, 1
        %v3345 = vrot.slane %v3332, 1
        %v3346 = vsel %vm1003, %v3344, %v3345
        %v3347 = vrot.slane %v3333, 1
        %v3348 = vsel %vm1003, %v3342, %v3347
        %v3349 = vrot.slane %v3334, 1
        %v3350 = vsel %vm1003, %v3345, %v3349
        %3351 = vrot.lane.b32.xlu0 %v3343, 56
        %v3352 = vpop.permute.xlu0 %3351
        %3353 = vrot.lane.b32.xlu0 %v3346, 56
        %v3354 = vpop.permute.xlu0 %3353
        %3355 = vrot.lane.b32.xlu0 %v3348, 56
        %v3356 = vpop.permute.xlu0 %3355
        %3357 = vrot.lane.b32.xlu0 %v3350, 56
        %v3358 = vpop.permute.xlu0 %3357
        %v3359 = vsel %vm2509, %v3352, %v3354
        %v3360 = vsel %vm2509, %v3356, %v3358
        %v3363 = vadd.f32 %v3318, %v3359
        %v3364 = vadd.f32 %v3319, %v3360
        %v3365 = vld [vmem:[#allocation12 + $0x19] sm:$0x1]
        %v3366 = vlaneseq
        %v3367 = vshrl.u32 %v3366, 7
        %v3368 = vsub.s32 0, %v3367
        %v3369 = vrot.slane %v3365, %v3368
        %3371 = vrot.lane.b32.xlu0 %v3369, 96
        %v3372 = vpop.permute.xlu0 %3371
        %v3374 = vmul.f32 %v3204, %v3372
        %v3375 = vmul.f32 %v3227, %v3372
        %v3376 = vmul.f32 %v3205, %v3372
        %v3377 = vmul.f32 %v3228, %v3372
        %v3378 = vmul.f32 %v3206, %v3372
        %v3379 = vmul.f32 %v3229, %v3372
        %v3386 = vrot.slane %v3374, 1
        %v3387 = vrot.slane %v3376, 1
        %v3388 = vsel %vm1003, %v3386, %v3387
        %v3389 = vrot.slane %v3375, 1
        %v3390 = vrot.slane %v3377, 1
        %v3391 = vsel %vm1003, %v3389, %v3390
        %v3392 = vrot.slane %v3378, 1
        %v3393 = vsel %vm1003, %v3387, %v3392
        %v3394 = vrot.slane %v3379, 1
        %v3395 = vsel %vm1003, %v3390, %v3394
        %3396 = vrot.lane.b32.xlu0 %v3388, 32
        %v3397 = vpop.permute.xlu0 %3396
        %3398 = vrot.lane.b32.xlu0 %v3391, 32
        %v3399 = vpop.permute.xlu0 %3398
        %3400 = vrot.lane.b32.xlu0 %v3393, 32
        %v3401 = vpop.permute.xlu0 %3400
        %3402 = vrot.lane.b32.xlu0 %v3395, 32
        %v3403 = vpop.permute.xlu0 %3402
        %v3404 = vsel %vm485, %v3397, %v3399
        %v3405 = vsel %vm485, %v3401, %v3403
        %v3408 = vadd.f32 %v3363, %v3404
        %v3409 = vadd.f32 %v3364, %v3405
        %v3410 = vld [vmem:[#allocation12 + $0x1a] sm:$0x1]
        %v3411 = vlaneseq
        %v3412 = vshrl.u32 %v3411, 7
        %v3413 = vsub.s32 0, %v3412
        %v3414 = vrot.slane %v3410, %v3413
        %3416 = vrot.lane.b32.xlu0 %v3414, 120
        %v3417 = vpop.permute.xlu0 %3416
        %v3419 = vmul.f32 %v3204, %v3417
        %v3420 = vmul.f32 %v3227, %v3417
        %v3421 = vmul.f32 %v3205, %v3417
        %v3422 = vmul.f32 %v3228, %v3417
        %v3423 = vmul.f32 %v3206, %v3417
        %v3424 = vmul.f32 %v3229, %v3417
        %v3431 = vrot.slane %v3419, 1
        %v3432 = vrot.slane %v3421, 1
        %v3433 = vsel %vm1003, %v3431, %v3432
        %v3434 = vrot.slane %v3420, 1
        %v3435 = vrot.slane %v3422, 1
        %v3436 = vsel %vm1003, %v3434, %v3435
        %v3437 = vrot.slane %v3423, 1
        %v3438 = vsel %vm1003, %v3432, %v3437
        %v3439 = vrot.slane %v3424, 1
        %v3440 = vsel %vm1003, %v3435, %v3439
        %3441 = vrot.lane.b32.xlu0 %v3433, 8
        %v3442 = vpop.permute.xlu0 %3441
        %3443 = vrot.lane.b32.xlu0 %v3436, 8
        %v3444 = vpop.permute.xlu0 %3443
        %3445 = vrot.lane.b32.xlu0 %v3438, 8
        %v3446 = vpop.permute.xlu0 %3445
        %3447 = vrot.lane.b32.xlu0 %v3440, 8
        %v3448 = vpop.permute.xlu0 %3447
        %v3449 = vsel %vm865, %v3442, %v3444
        %v3450 = vsel %vm865, %v3446, %v3448
        %v3453 = vadd.f32 %v3408, %v3449
        %v3454 = vadd.f32 %v3409, %v3450
        %v3455 = vld [vmem:[#allocation3 + $0x28] sm:$0xfe]
        %v3456 = vld [vmem:[#allocation3 + $0x40] sm:$0xff]
        %v3457 = vld [vmem:[#allocation3 + $0x58] sm:$0x1]
        %v3458 = vld [vmem:[#allocation12 + $0x1b] sm:$0x1]
        %v3459 = vlaneseq
        %v3460 = vshrl.u32 %v3459, 7
        %v3461 = vsub.s32 0, %v3460
        %v3462 = vrot.slane %v3458, %v3461
        %3464 = vrot.lane.b32.xlu0 %v3462, 16
        %v3465 = vpop.permute.xlu0 %3464
        %v3467 = vmul.f32 %v3227, %v3465
        %v3468 = vmul.f32 %v3455, %v3465
        %v3469 = vmul.f32 %v3228, %v3465
        %v3470 = vmul.f32 %v3456, %v3465
        %v3471 = vmul.f32 %v3229, %v3465
        %v3472 = vmul.f32 %v3457, %v3465
        %v3479 = vrot.slane %v3467, 1
        %v3480 = vrot.slane %v3469, 1
        %v3481 = vsel %vm1003, %v3479, %v3480
        %v3482 = vrot.slane %v3468, 1
        %v3483 = vrot.slane %v3470, 1
        %v3484 = vsel %vm1003, %v3482, %v3483
        %v3485 = vrot.slane %v3471, 1
        %v3486 = vsel %vm1003, %v3480, %v3485
        %v3487 = vrot.slane %v3472, 1
        %v3488 = vsel %vm1003, %v3483, %v3487
        %3489 = vrot.lane.b32.xlu0 %v3481, 112
        %v3490 = vpop.permute.xlu0 %3489
        %3491 = vrot.lane.b32.xlu0 %v3484, 112
        %v3492 = vpop.permute.xlu0 %3491
        %3493 = vrot.lane.b32.xlu0 %v3486, 112
        %v3494 = vpop.permute.xlu0 %3493
        %3495 = vrot.lane.b32.xlu0 %v3488, 112
        %v3496 = vpop.permute.xlu0 %3495
        %v3497 = vsel %vm985, %v3490, %v3492
        %v3498 = vsel %vm985, %v3494, %v3496
        %v3501 = vadd.f32 %v3453, %v3497
        %v3502 = vadd.f32 %v3454, %v3498
        %v3503 = vld [vmem:[#allocation3 + $0x18] sm:$0xf0]
        %v3504 = vld [vmem:[#allocation3 + $0x48] sm:$0xf]
        %v3505 = vld [vmem:[#allocation12 + $0x1c] sm:$0x1]
        %v3506 = vlaneseq
        %v3507 = vshrl.u32 %v3506, 7
        %v3508 = vsub.s32 0, %v3507
        %v3509 = vrot.slane %v3505, %v3508
        %v3510 = vmul.f32 %v3503, %v3509
        %v3511 = vmul.f32 %v3205, %v3509
        %v3512 = vmul.f32 %v3504, %v3509
        %v3516 = vrot.slane %v3510, 4
        %v3517 = vrot.slane %v3511, 4
        %v3518 = vsel %vm497, %v3516, %v3517
        %v3519 = vrot.slane %v3512, 4
        %v3520 = vsel %vm497, %v3517, %v3519
        %v3523 = vadd.f32 %v3501, %v3518
        %v3524 = vadd.f32 %v3502, %v3520
        %v3525 = vld [vmem:[#allocation3 + $0x20] sm:$0xf0]
        %v3526 = vld [vmem:[#allocation3 + $0x50] sm:$0xf]
        %v3527 = vld [vmem:[#allocation12 + $0x1d] sm:$0x1]
        %v3528 = vlaneseq
        %v3529 = vshrl.u32 %v3528, 7
        %v3530 = vsub.s32 0, %v3529
        %v3531 = vrot.slane %v3527, %v3530
        %3533 = vrot.lane.b32.xlu0 %v3531, 24
        %v3534 = vpop.permute.xlu0 %3533
        %v3536 = vmul.f32 %v3503, %v3534
        %v3537 = vmul.f32 %v3525, %v3534
        %v3538 = vmul.f32 %v3205, %v3534
        %v3539 = vmul.f32 %v3228, %v3534
        %v3540 = vmul.f32 %v3504, %v3534
        %v3541 = vmul.f32 %v3526, %v3534
        %v3548 = vrot.slane %v3536, 4
        %v3549 = vrot.slane %v3538, 4
        %v3550 = vsel %vm497, %v3548, %v3549
        %v3551 = vrot.slane %v3537, 4
        %v3552 = vrot.slane %v3539, 4
        %v3553 = vsel %vm497, %v3551, %v3552
        %v3554 = vrot.slane %v3540, 4
        %v3555 = vsel %vm497, %v3549, %v3554
        %v3556 = vrot.slane %v3541, 4
        %v3557 = vsel %vm497, %v3552, %v3556
        %3558 = vrot.lane.b32.xlu0 %v3550, 104
        %v3559 = vpop.permute.xlu0 %3558
        %3560 = vrot.lane.b32.xlu0 %v3553, 104
        %v3561 = vpop.permute.xlu0 %3560
        %3562 = vrot.lane.b32.xlu0 %v3555, 104
        %v3563 = vpop.permute.xlu0 %3562
        %3564 = vrot.lane.b32.xlu0 %v3557, 104
        %v3565 = vpop.permute.xlu0 %3564
        %v3566 = vsel %vm2446, %v3559, %v3561
        %v3567 = vsel %vm2446, %v3563, %v3565
        %v3570 = vadd.f32 %v3523, %v3566
        %v3571 = vadd.f32 %v3524, %v3567
        %v3572 = vld [vmem:[#allocation12 + $0x1e] sm:$0x1]
        %v3573 = vlaneseq
        %v3574 = vshrl.u32 %v3573, 7
        %v3575 = vsub.s32 0, %v3574
        %v3576 = vrot.slane %v3572, %v3575
        %3578 = vrot.lane.b32.xlu0 %v3576, 48
        %v3579 = vpop.permute.xlu0 %3578
        %v3581 = vmul.f32 %v3503, %v3579
        %v3582 = vmul.f32 %v3525, %v3579
        %v3583 = vmul.f32 %v3205, %v3579
        %v3584 = vmul.f32 %v3228, %v3579
        %v3585 = vmul.f32 %v3504, %v3579
        %v3586 = vmul.f32 %v3526, %v3579
        %v3593 = vrot.slane %v3581, 4
        %v3594 = vrot.slane %v3583, 4
        %v3595 = vsel %vm497, %v3593, %v3594
        %v3596 = vrot.slane %v3582, 4
        %v3597 = vrot.slane %v3584, 4
        %v3598 = vsel %vm497, %v3596, %v3597
        %v3599 = vrot.slane %v3585, 4
        %v3600 = vsel %vm497, %v3594, %v3599
        %v3601 = vrot.slane %v3586, 4
        %v3602 = vsel %vm497, %v3597, %v3601
        %3603 = vrot.lane.b32.xlu0 %v3595, 80
        %v3604 = vpop.permute.xlu0 %3603
        %3605 = vrot.lane.b32.xlu0 %v3598, 80
        %v3606 = vpop.permute.xlu0 %3605
        %3607 = vrot.lane.b32.xlu0 %v3600, 80
        %v3608 = vpop.permute.xlu0 %3607
        %3609 = vrot.lane.b32.xlu0 %v3602, 80
        %v3610 = vpop.permute.xlu0 %3609
        %v3611 = vsel %vm1561, %v3604, %v3606
        %v3612 = vsel %vm1561, %v3608, %v3610
        %v3615 = vadd.f32 %v3570, %v3611
        %v3616 = vadd.f32 %v3571, %v3612
        %v3617 = vld [vmem:[#allocation12 + $0x1f] sm:$0x1]
        %v3618 = vlaneseq
        %v3619 = vshrl.u32 %v3618, 7
        %v3620 = vsub.s32 0, %v3619
        %v3621 = vrot.slane %v3617, %v3620
        %3623 = vrot.lane.b32.xlu0 %v3621, 72
        %v3624 = vpop.permute.xlu0 %3623
        %v3626 = vmul.f32 %v3503, %v3624
        %v3627 = vmul.f32 %v3525, %v3624
        %v3628 = vmul.f32 %v3205, %v3624
        %v3629 = vmul.f32 %v3228, %v3624
        %v3630 = vmul.f32 %v3504, %v3624
        %v3631 = vmul.f32 %v3526, %v3624
        %v3638 = vrot.slane %v3626, 4
        %v3639 = vrot.slane %v3628, 4
        %v3640 = vsel %vm497, %v3638, %v3639
        %v3641 = vrot.slane %v3627, 4
        %v3642 = vrot.slane %v3629, 4
        %v3643 = vsel %vm497, %v3641, %v3642
        %v3644 = vrot.slane %v3630, 4
        %v3645 = vsel %vm497, %v3639, %v3644
        %v3646 = vrot.slane %v3631, 4
        %v3647 = vsel %vm497, %v3642, %v3646
        %3648 = vrot.lane.b32.xlu0 %v3640, 56
        %v3649 = vpop.permute.xlu0 %3648
        %3650 = vrot.lane.b32.xlu0 %v3643, 56
        %v3651 = vpop.permute.xlu0 %3650
        %3652 = vrot.lane.b32.xlu0 %v3645, 56
        %v3653 = vpop.permute.xlu0 %3652
        %3654 = vrot.lane.b32.xlu0 %v3647, 56
        %v3655 = vpop.permute.xlu0 %3654
        %v3656 = vsel %vm2509, %v3649, %v3651
        %v3657 = vsel %vm2509, %v3653, %v3655
        %v3660 = vadd.f32 %v3615, %v3656
        %v3661 = vadd.f32 %v3616, %v3657
        %v3662 = vld [vmem:[#allocation12 + $0x20] sm:$0x1]
        %v3663 = vlaneseq
        %v3664 = vshrl.u32 %v3663, 7
        %v3665 = vsub.s32 0, %v3664
        %v3666 = vrot.slane %v3662, %v3665
        %3668 = vrot.lane.b32.xlu0 %v3666, 96
        %v3669 = vpop.permute.xlu0 %3668
        %v3671 = vmul.f32 %v3503, %v3669
        %v3672 = vmul.f32 %v3525, %v3669
        %v3673 = vmul.f32 %v3205, %v3669
        %v3674 = vmul.f32 %v3228, %v3669
        %v3675 = vmul.f32 %v3504, %v3669
        %v3676 = vmul.f32 %v3526, %v3669
        %v3683 = vrot.slane %v3671, 4
        %v3684 = vrot.slane %v3673, 4
        %v3685 = vsel %vm497, %v3683, %v3684
        %v3686 = vrot.slane %v3672, 4
        %v3687 = vrot.slane %v3674, 4
        %v3688 = vsel %vm497, %v3686, %v3687
        %v3689 = vrot.slane %v3675, 4
        %v3690 = vsel %vm497, %v3684, %v3689
        %v3691 = vrot.slane %v3676, 4
        %v3692 = vsel %vm497, %v3687, %v3691
        %3693 = vrot.lane.b32.xlu0 %v3685, 32
        %v3694 = vpop.permute.xlu0 %3693
        %3695 = vrot.lane.b32.xlu0 %v3688, 32
        %v3696 = vpop.permute.xlu0 %3695
        %3697 = vrot.lane.b32.xlu0 %v3690, 32
        %v3698 = vpop.permute.xlu0 %3697
        %3699 = vrot.lane.b32.xlu0 %v3692, 32
        %v3700 = vpop.permute.xlu0 %3699
        %v3701 = vsel %vm485, %v3694, %v3696
        %v3702 = vsel %vm485, %v3698, %v3700
        %v3705 = vadd.f32 %v3660, %v3701
        %v3706 = vadd.f32 %v3661, %v3702
        %v3707 = vld [vmem:[#allocation12 + $0x21] sm:$0x1]
        %v3708 = vlaneseq
        %v3709 = vshrl.u32 %v3708, 7
        %v3710 = vsub.s32 0, %v3709
        %v3711 = vrot.slane %v3707, %v3710
        %3713 = vrot.lane.b32.xlu0 %v3711, 120
        %v3714 = vpop.permute.xlu0 %3713
        %v3716 = vmul.f32 %v3503, %v3714
        %v3717 = vmul.f32 %v3525, %v3714
        %v3718 = vmul.f32 %v3205, %v3714
        %v3719 = vmul.f32 %v3228, %v3714
        %v3720 = vmul.f32 %v3504, %v3714
        %v3721 = vmul.f32 %v3526, %v3714
        %v3728 = vrot.slane %v3716, 4
        %v3729 = vrot.slane %v3718, 4
        %v3730 = vsel %vm497, %v3728, %v3729
        %v3731 = vrot.slane %v3717, 4
        %v3732 = vrot.slane %v3719, 4
        %v3733 = vsel %vm497, %v3731, %v3732
        %v3734 = vrot.slane %v3720, 4
        %v3735 = vsel %vm497, %v3729, %v3734
        %v3736 = vrot.slane %v3721, 4
        %v3737 = vsel %vm497, %v3732, %v3736
        %3738 = vrot.lane.b32.xlu0 %v3730, 8
        %v3739 = vpop.permute.xlu0 %3738
        %3740 = vrot.lane.b32.xlu0 %v3733, 8
        %v3741 = vpop.permute.xlu0 %3740
        %3742 = vrot.lane.b32.xlu0 %v3735, 8
        %v3743 = vpop.permute.xlu0 %3742
        %3744 = vrot.lane.b32.xlu0 %v3737, 8
        %v3745 = vpop.permute.xlu0 %3744
        %v3746 = vsel %vm865, %v3739, %v3741
        %v3747 = vsel %vm865, %v3743, %v3745
        %v3750 = vadd.f32 %v3705, %v3746
        %v3751 = vadd.f32 %v3706, %v3747
        %v3752 = vld [vmem:[#allocation3 + $0x28] sm:$0xf0]
        %v3753 = vld [vmem:[#allocation3 + $0x58] sm:$0xf]
        %v3754 = vld [vmem:[#allocation12 + $0x22] sm:$0x1]
        %v3755 = vlaneseq
        %v3756 = vshrl.u32 %v3755, 7
        %v3757 = vsub.s32 0, %v3756
        %v3758 = vrot.slane %v3754, %v3757
        %3760 = vrot.lane.b32.xlu0 %v3758, 16
        %v3761 = vpop.permute.xlu0 %3760
        %v3763 = vmul.f32 %v3525, %v3761
        %v3764 = vmul.f32 %v3752, %v3761
        %v3765 = vmul.f32 %v3228, %v3761
        %v3766 = vmul.f32 %v3456, %v3761
        %v3767 = vmul.f32 %v3526, %v3761
        %v3768 = vmul.f32 %v3753, %v3761
        %v3775 = vrot.slane %v3763, 4
        %v3776 = vrot.slane %v3765, 4
        %v3777 = vsel %vm497, %v3775, %v3776
        %v3778 = vrot.slane %v3764, 4
        %v3779 = vrot.slane %v3766, 4
        %v3780 = vsel %vm497, %v3778, %v3779
        %v3781 = vrot.slane %v3767, 4
        %v3782 = vsel %vm497, %v3776, %v3781
        %v3783 = vrot.slane %v3768, 4
        %v3784 = vsel %vm497, %v3779, %v3783
        %3785 = vrot.lane.b32.xlu0 %v3777, 112
        %v3786 = vpop.permute.xlu0 %3785
        %3787 = vrot.lane.b32.xlu0 %v3780, 112
        %v3788 = vpop.permute.xlu0 %3787
        %3789 = vrot.lane.b32.xlu0 %v3782, 112
        %v3790 = vpop.permute.xlu0 %3789
        %3791 = vrot.lane.b32.xlu0 %v3784, 112
        %v3792 = vpop.permute.xlu0 %3791
        %v3793 = vsel %vm985, %v3786, %v3788
        %v3794 = vsel %vm985, %v3790, %v3792
        %v3797 = vadd.f32 %v3750, %v3793
        %v3798 = vadd.f32 %v3751, %v3794
        %v3799 = vld [vmem:[#allocation3 + $0x18] sm:$0x80]
        %v3800 = vld [vmem:[#allocation3 + $0x48] sm:$0x7f]
        %v3801 = vld [vmem:[#allocation12 + $0x23] sm:$0x1]
        %v3802 = vlaneseq
        %v3803 = vshrl.u32 %v3802, 7
        %v3804 = vsub.s32 0, %v3803
        %v3805 = vrot.slane %v3801, %v3804
        %v3806 = vmul.f32 %v3799, %v3805
        %v3807 = vmul.f32 %v3205, %v3805
        %v3808 = vmul.f32 %v3800, %v3805
        %v3812 = vrot.slane %v3806, 7
        %v3813 = vrot.slane %v3807, 7
        %v3814 = vsel %vm877, %v3812, %v3813
        %v3815 = vrot.slane %v3808, 7
        %v3816 = vsel %vm877, %v3813, %v3815
        %v3819 = vadd.f32 %v3797, %v3814
        %v3820 = vadd.f32 %v3798, %v3816
        %v3821 = vld [vmem:[#allocation3 + $0x20] sm:$0x80]
        %v3822 = vld [vmem:[#allocation3 + $0x50] sm:$0x7f]
        %v3823 = vld [vmem:[#allocation12 + $0x24] sm:$0x1]
        %v3824 = vlaneseq
        %v3825 = vshrl.u32 %v3824, 7
        %v3826 = vsub.s32 0, %v3825
        %v3827 = vrot.slane %v3823, %v3826
        %3829 = vrot.lane.b32.xlu0 %v3827, 24
        %v3830 = vpop.permute.xlu0 %3829
        %v3832 = vmul.f32 %v3799, %v3830
        %v3833 = vmul.f32 %v3821, %v3830
        %v3834 = vmul.f32 %v3205, %v3830
        %v3835 = vmul.f32 %v3228, %v3830
        %v3836 = vmul.f32 %v3800, %v3830
        %v3837 = vmul.f32 %v3822, %v3830
        %v3844 = vrot.slane %v3832, 7
        %v3845 = vrot.slane %v3834, 7
        %v3846 = vsel %vm877, %v3844, %v3845
        %v3847 = vrot.slane %v3833, 7
        %v3848 = vrot.slane %v3835, 7
        %v3849 = vsel %vm877, %v3847, %v3848
        %v3850 = vrot.slane %v3836, 7
        %v3851 = vsel %vm877, %v3845, %v3850
        %v3852 = vrot.slane %v3837, 7
        %v3853 = vsel %vm877, %v3848, %v3852
        %3854 = vrot.lane.b32.xlu0 %v3846, 104
        %v3855 = vpop.permute.xlu0 %3854
        %3856 = vrot.lane.b32.xlu0 %v3849, 104
        %v3857 = vpop.permute.xlu0 %3856
        %3858 = vrot.lane.b32.xlu0 %v3851, 104
        %v3859 = vpop.permute.xlu0 %3858
        %3860 = vrot.lane.b32.xlu0 %v3853, 104
        %v3861 = vpop.permute.xlu0 %3860
        %v3862 = vsel %vm2446, %v3855, %v3857
        %v3863 = vsel %vm2446, %v3859, %v3861
        %v3866 = vadd.f32 %v3819, %v3862
        %v3867 = vadd.f32 %v3820, %v3863
        %v3868 = vld [vmem:[#allocation12 + $0x25] sm:$0x1]
        %v3869 = vlaneseq
        %v3870 = vshrl.u32 %v3869, 7
        %v3871 = vsub.s32 0, %v3870
        %v3872 = vrot.slane %v3868, %v3871
        %3874 = vrot.lane.b32.xlu0 %v3872, 48
        %v3875 = vpop.permute.xlu0 %3874
        %v3877 = vmul.f32 %v3799, %v3875
        %v3878 = vmul.f32 %v3821, %v3875
        %v3879 = vmul.f32 %v3205, %v3875
        %v3880 = vmul.f32 %v3228, %v3875
        %v3881 = vmul.f32 %v3800, %v3875
        %v3882 = vmul.f32 %v3822, %v3875
        %v3889 = vrot.slane %v3877, 7
        %v3890 = vrot.slane %v3879, 7
        %v3891 = vsel %vm877, %v3889, %v3890
        %v3892 = vrot.slane %v3878, 7
        %v3893 = vrot.slane %v3880, 7
        %v3894 = vsel %vm877, %v3892, %v3893
        %v3895 = vrot.slane %v3881, 7
        %v3896 = vsel %vm877, %v3890, %v3895
        %v3897 = vrot.slane %v3882, 7
        %v3898 = vsel %vm877, %v3893, %v3897
        %3899 = vrot.lane.b32.xlu0 %v3891, 80
        %v3900 = vpop.permute.xlu0 %3899
        %3901 = vrot.lane.b32.xlu0 %v3894, 80
        %v3902 = vpop.permute.xlu0 %3901
        %3903 = vrot.lane.b32.xlu0 %v3896, 80
        %v3904 = vpop.permute.xlu0 %3903
        %3905 = vrot.lane.b32.xlu0 %v3898, 80
        %v3906 = vpop.permute.xlu0 %3905
        %v3907 = vsel %vm1561, %v3900, %v3902
        %v3908 = vsel %vm1561, %v3904, %v3906
        %v3911 = vadd.f32 %v3866, %v3907
        %v3912 = vadd.f32 %v3867, %v3908
        %v3913 = vld [vmem:[#allocation12 + $0x26] sm:$0x1]
        %v3914 = vlaneseq
        %v3915 = vshrl.u32 %v3914, 7
        %v3916 = vsub.s32 0, %v3915
        %v3917 = vrot.slane %v3913, %v3916
        %3919 = vrot.lane.b32.xlu0 %v3917, 72
        %v3920 = vpop.permute.xlu0 %3919
        %v3922 = vmul.f32 %v3799, %v3920
        %v3923 = vmul.f32 %v3821, %v3920
        %v3924 = vmul.f32 %v3205, %v3920
        %v3925 = vmul.f32 %v3228, %v3920
        %v3926 = vmul.f32 %v3800, %v3920
        %v3927 = vmul.f32 %v3822, %v3920
        %v3934 = vrot.slane %v3922, 7
        %v3935 = vrot.slane %v3924, 7
        %v3936 = vsel %vm877, %v3934, %v3935
        %v3937 = vrot.slane %v3923, 7
        %v3938 = vrot.slane %v3925, 7
        %v3939 = vsel %vm877, %v3937, %v3938
        %v3940 = vrot.slane %v3926, 7
        %v3941 = vsel %vm877, %v3935, %v3940
        %v3942 = vrot.slane %v3927, 7
        %v3943 = vsel %vm877, %v3938, %v3942
        %3944 = vrot.lane.b32.xlu0 %v3936, 56
        %v3945 = vpop.permute.xlu0 %3944
        %3946 = vrot.lane.b32.xlu0 %v3939, 56
        %v3947 = vpop.permute.xlu0 %3946
        %3948 = vrot.lane.b32.xlu0 %v3941, 56
        %v3949 = vpop.permute.xlu0 %3948
        %3950 = vrot.lane.b32.xlu0 %v3943, 56
        %v3951 = vpop.permute.xlu0 %3950
        %v3952 = vsel %vm2509, %v3945, %v3947
        %v3953 = vsel %vm2509, %v3949, %v3951
        %v3956 = vadd.f32 %v3911, %v3952
        %v3957 = vadd.f32 %v3912, %v3953
        %v3958 = vld [vmem:[#allocation12 + $0x27] sm:$0x1]
        %v3959 = vlaneseq
        %v3960 = vshrl.u32 %v3959, 7
        %v3961 = vsub.s32 0, %v3960
        %v3962 = vrot.slane %v3958, %v3961
        %3964 = vrot.lane.b32.xlu0 %v3962, 96
        %v3965 = vpop.permute.xlu0 %3964
        %v3967 = vmul.f32 %v3799, %v3965
        %v3968 = vmul.f32 %v3821, %v3965
        %v3969 = vmul.f32 %v3205, %v3965
        %v3970 = vmul.f32 %v3228, %v3965
        %v3971 = vmul.f32 %v3800, %v3965
        %v3972 = vmul.f32 %v3822, %v3965
        %v3979 = vrot.slane %v3967, 7
        %v3980 = vrot.slane %v3969, 7
        %v3981 = vsel %vm877, %v3979, %v3980
        %v3982 = vrot.slane %v3968, 7
        %v3983 = vrot.slane %v3970, 7
        %v3984 = vsel %vm877, %v3982, %v3983
        %v3985 = vrot.slane %v3971, 7
        %v3986 = vsel %vm877, %v3980, %v3985
        %v3987 = vrot.slane %v3972, 7
        %v3988 = vsel %vm877, %v3983, %v3987
        %3989 = vrot.lane.b32.xlu0 %v3981, 32
        %v3990 = vpop.permute.xlu0 %3989
        %3991 = vrot.lane.b32.xlu0 %v3984, 32
        %v3992 = vpop.permute.xlu0 %3991
        %3993 = vrot.lane.b32.xlu0 %v3986, 32
        %v3994 = vpop.permute.xlu0 %3993
        %3995 = vrot.lane.b32.xlu0 %v3988, 32
        %v3996 = vpop.permute.xlu0 %3995
        %v3997 = vsel %vm485, %v3990, %v3992
        %v3998 = vsel %vm485, %v3994, %v3996
        %v4001 = vadd.f32 %v3956, %v3997
        %v4002 = vadd.f32 %v3957, %v3998
        %v4003 = vld [vmem:[#allocation12 + $0x28] sm:$0x1]
        %v4004 = vlaneseq
        %v4005 = vshrl.u32 %v4004, 7
        %v4006 = vsub.s32 0, %v4005
        %v4007 = vrot.slane %v4003, %v4006
        %4009 = vrot.lane.b32.xlu0 %v4007, 120
        %v4010 = vpop.permute.xlu0 %4009
        %v4012 = vmul.f32 %v3799, %v4010
        %v4013 = vmul.f32 %v3821, %v4010
        %v4014 = vmul.f32 %v3205, %v4010
        %v4015 = vmul.f32 %v3228, %v4010
        %v4016 = vmul.f32 %v3800, %v4010
        %v4017 = vmul.f32 %v3822, %v4010
        %v4024 = vrot.slane %v4012, 7
        %v4025 = vrot.slane %v4014, 7
        %v4026 = vsel %vm877, %v4024, %v4025
        %v4027 = vrot.slane %v4013, 7
        %v4028 = vrot.slane %v4015, 7
        %v4029 = vsel %vm877, %v4027, %v4028
        %v4030 = vrot.slane %v4016, 7
        %v4031 = vsel %vm877, %v4025, %v4030
        %v4032 = vrot.slane %v4017, 7
        %v4033 = vsel %vm877, %v4028, %v4032
        %4034 = vrot.lane.b32.xlu0 %v4026, 8
        %v4035 = vpop.permute.xlu0 %4034
        %4036 = vrot.lane.b32.xlu0 %v4029, 8
        %v4037 = vpop.permute.xlu0 %4036
        %4038 = vrot.lane.b32.xlu0 %v4031, 8
        %v4039 = vpop.permute.xlu0 %4038
        %4040 = vrot.lane.b32.xlu0 %v4033, 8
        %v4041 = vpop.permute.xlu0 %4040
        %v4042 = vsel %vm865, %v4035, %v4037
        %v4043 = vsel %vm865, %v4039, %v4041
        %v4046 = vadd.f32 %v4001, %v4042
        %v4047 = vadd.f32 %v4002, %v4043
        %v4048 = vld [vmem:[#allocation3 + $0x28] sm:$0x80]
        %v4049 = vld [vmem:[#allocation3 + $0x58] sm:$0x7f]
        %v4050 = vld [vmem:[#allocation12 + $0x29] sm:$0x1]
        %v4051 = vlaneseq
        %v4052 = vshrl.u32 %v4051, 7
        %v4053 = vsub.s32 0, %v4052
        %v4054 = vrot.slane %v4050, %v4053
        %4056 = vrot.lane.b32.xlu0 %v4054, 16
        %v4057 = vpop.permute.xlu0 %4056
        %v4059 = vmul.f32 %v3821, %v4057
        %v4060 = vmul.f32 %v4048, %v4057
        %v4061 = vmul.f32 %v3228, %v4057
        %v4062 = vmul.f32 %v3456, %v4057
        %v4063 = vmul.f32 %v3822, %v4057
        %v4064 = vmul.f32 %v4049, %v4057
        %v4071 = vrot.slane %v4059, 7
        %v4072 = vrot.slane %v4061, 7
        %v4073 = vsel %vm877, %v4071, %v4072
        %v4074 = vrot.slane %v4060, 7
        %v4075 = vrot.slane %v4062, 7
        %v4076 = vsel %vm877, %v4074, %v4075
        %v4077 = vrot.slane %v4063, 7
        %v4078 = vsel %vm877, %v4072, %v4077
        %v4079 = vrot.slane %v4064, 7
        %v4080 = vsel %vm877, %v4075, %v4079
        %4081 = vrot.lane.b32.xlu0 %v4073, 112
        %v4082 = vpop.permute.xlu0 %4081
        %4083 = vrot.lane.b32.xlu0 %v4076, 112
        %v4084 = vpop.permute.xlu0 %4083
        %4085 = vrot.lane.b32.xlu0 %v4078, 112
        %v4086 = vpop.permute.xlu0 %4085
        %4087 = vrot.lane.b32.xlu0 %v4080, 112
        %v4088 = vpop.permute.xlu0 %4087
        %v4089 = vsel %vm985, %v4082, %v4084
        %v4090 = vsel %vm985, %v4086, %v4088
        %v4093 = vadd.f32 %v4046, %v4089
        %v4094 = vadd.f32 %v4047, %v4090
        %v4095 = vld [vmem:[#allocation3 + $0x30] sm:$0xfc]
        %v4096 = vld [vmem:[#allocation3 + $0x48] sm:$0xff]
        %v4097 = vld [vmem:[#allocation3 + $0x60] sm:$0x3]
        %v4098 = vld [vmem:[#allocation12 + $0x2a] sm:$0x1]
        %v4099 = vlaneseq
        %v4100 = vshrl.u32 %v4099, 7
        %v4101 = vsub.s32 0, %v4100
        %v4102 = vrot.slane %v4098, %v4101
        %v4103 = vmul.f32 %v4095, %v4102
        %v4104 = vmul.f32 %v4096, %v4102
        %v4105 = vmul.f32 %v4097, %v4102
        %v4109 = vrot.slane %v4103, 2
        %v4110 = vrot.slane %v4104, 2
        %v4111 = vsel %vm1105, %v4109, %v4110
        %v4112 = vrot.slane %v4105, 2
        %v4113 = vsel %vm1105, %v4110, %v4112
        %v4116 = vadd.f32 %v4093, %v4111
        %v4117 = vadd.f32 %v4094, %v4113
        %v4118 = vld [vmem:[#allocation3 + $0x38] sm:$0xfc]
        %v4119 = vld [vmem:[#allocation3 + $0x50] sm:$0xff]
        %v4120 = vld [vmem:[#allocation3 + $0x68] sm:$0x3]
        %v4121 = vld [vmem:[#allocation12 + $0x2b] sm:$0x1]
        %v4122 = vlaneseq
        %v4123 = vshrl.u32 %v4122, 7
        %v4124 = vsub.s32 0, %v4123
        %v4125 = vrot.slane %v4121, %v4124
        %4127 = vrot.lane.b32.xlu0 %v4125, 24
        %v4128 = vpop.permute.xlu0 %4127
        %v4130 = vmul.f32 %v4095, %v4128
        %v4131 = vmul.f32 %v4118, %v4128
        %v4132 = vmul.f32 %v4096, %v4128
        %v4133 = vmul.f32 %v4119, %v4128
        %v4134 = vmul.f32 %v4097, %v4128
        %v4135 = vmul.f32 %v4120, %v4128
        %v4142 = vrot.slane %v4130, 2
        %v4143 = vrot.slane %v4132, 2
        %v4144 = vsel %vm1105, %v4142, %v4143
        %v4145 = vrot.slane %v4131, 2
        %v4146 = vrot.slane %v4133, 2
        %v4147 = vsel %vm1105, %v4145, %v4146
        %v4148 = vrot.slane %v4134, 2
        %v4149 = vsel %vm1105, %v4143, %v4148
        %v4150 = vrot.slane %v4135, 2
        %v4151 = vsel %vm1105, %v4146, %v4150
        %4152 = vrot.lane.b32.xlu0 %v4144, 104
        %v4153 = vpop.permute.xlu0 %4152
        %4154 = vrot.lane.b32.xlu0 %v4147, 104
        %v4155 = vpop.permute.xlu0 %4154
        %4156 = vrot.lane.b32.xlu0 %v4149, 104
        %v4157 = vpop.permute.xlu0 %4156
        %4158 = vrot.lane.b32.xlu0 %v4151, 104
        %v4159 = vpop.permute.xlu0 %4158
        %v4160 = vsel %vm2446, %v4153, %v4155
        %v4161 = vsel %vm2446, %v4157, %v4159
        %v4164 = vadd.f32 %v4116, %v4160
        %v4165 = vadd.f32 %v4117, %v4161
        %v4166 = vld [vmem:[#allocation12 + $0x2c] sm:$0x1]
        %v4167 = vlaneseq
        %v4168 = vshrl.u32 %v4167, 7
        %v4169 = vsub.s32 0, %v4168
        %v4170 = vrot.slane %v4166, %v4169
        %4172 = vrot.lane.b32.xlu0 %v4170, 48
        %v4173 = vpop.permute.xlu0 %4172
        %v4175 = vmul.f32 %v4095, %v4173
        %v4176 = vmul.f32 %v4118, %v4173
        %v4177 = vmul.f32 %v4096, %v4173
        %v4178 = vmul.f32 %v4119, %v4173
        %v4179 = vmul.f32 %v4097, %v4173
        %v4180 = vmul.f32 %v4120, %v4173
        %v4187 = vrot.slane %v4175, 2
        %v4188 = vrot.slane %v4177, 2
        %v4189 = vsel %vm1105, %v4187, %v4188
        %v4190 = vrot.slane %v4176, 2
        %v4191 = vrot.slane %v4178, 2
        %v4192 = vsel %vm1105, %v4190, %v4191
        %v4193 = vrot.slane %v4179, 2
        %v4194 = vsel %vm1105, %v4188, %v4193
        %v4195 = vrot.slane %v4180, 2
        %v4196 = vsel %vm1105, %v4191, %v4195
        %4197 = vrot.lane.b32.xlu0 %v4189, 80
        %v4198 = vpop.permute.xlu0 %4197
        %4199 = vrot.lane.b32.xlu0 %v4192, 80
        %v4200 = vpop.permute.xlu0 %4199
        %4201 = vrot.lane.b32.xlu0 %v4194, 80
        %v4202 = vpop.permute.xlu0 %4201
        %4203 = vrot.lane.b32.xlu0 %v4196, 80
        %v4204 = vpop.permute.xlu0 %4203
        %v4205 = vsel %vm1561, %v4198, %v4200
        %v4206 = vsel %vm1561, %v4202, %v4204
        %v4209 = vadd.f32 %v4164, %v4205
        %v4210 = vadd.f32 %v4165, %v4206
        %v4211 = vld [vmem:[#allocation12 + $0x2d] sm:$0x1]
        %v4212 = vlaneseq
        %v4213 = vshrl.u32 %v4212, 7
        %v4214 = vsub.s32 0, %v4213
        %v4215 = vrot.slane %v4211, %v4214
        %4217 = vrot.lane.b32.xlu0 %v4215, 72
        %v4218 = vpop.permute.xlu0 %4217
        %v4220 = vmul.f32 %v4095, %v4218
        %v4221 = vmul.f32 %v4118, %v4218
        %v4222 = vmul.f32 %v4096, %v4218
        %v4223 = vmul.f32 %v4119, %v4218
        %v4224 = vmul.f32 %v4097, %v4218
        %v4225 = vmul.f32 %v4120, %v4218
        %v4232 = vrot.slane %v4220, 2
        %v4233 = vrot.slane %v4222, 2
        %v4234 = vsel %vm1105, %v4232, %v4233
        %v4235 = vrot.slane %v4221, 2
        %v4236 = vrot.slane %v4223, 2
        %v4237 = vsel %vm1105, %v4235, %v4236
        %v4238 = vrot.slane %v4224, 2
        %v4239 = vsel %vm1105, %v4233, %v4238
        %v4240 = vrot.slane %v4225, 2
        %v4241 = vsel %vm1105, %v4236, %v4240
        %4242 = vrot.lane.b32.xlu0 %v4234, 56
        %v4243 = vpop.permute.xlu0 %4242
        %4244 = vrot.lane.b32.xlu0 %v4237, 56
        %v4245 = vpop.permute.xlu0 %4244
        %4246 = vrot.lane.b32.xlu0 %v4239, 56
        %v4247 = vpop.permute.xlu0 %4246
        %4248 = vrot.lane.b32.xlu0 %v4241, 56
        %v4249 = vpop.permute.xlu0 %4248
        %v4250 = vsel %vm2509, %v4243, %v4245
        %v4251 = vsel %vm2509, %v4247, %v4249
        %v4254 = vadd.f32 %v4209, %v4250
        %v4255 = vadd.f32 %v4210, %v4251
        %v4256 = vld [vmem:[#allocation12 + $0x2e] sm:$0x1]
        %v4257 = vlaneseq
        %v4258 = vshrl.u32 %v4257, 7
        %v4259 = vsub.s32 0, %v4258
        %v4260 = vrot.slane %v4256, %v4259
        %4262 = vrot.lane.b32.xlu0 %v4260, 96
        %v4263 = vpop.permute.xlu0 %4262
        %v4265 = vmul.f32 %v4095, %v4263
        %v4266 = vmul.f32 %v4118, %v4263
        %v4267 = vmul.f32 %v4096, %v4263
        %v4268 = vmul.f32 %v4119, %v4263
        %v4269 = vmul.f32 %v4097, %v4263
        %v4270 = vmul.f32 %v4120, %v4263
        %v4277 = vrot.slane %v4265, 2
        %v4278 = vrot.slane %v4267, 2
        %v4279 = vsel %vm1105, %v4277, %v4278
        %v4280 = vrot.slane %v4266, 2
        %v4281 = vrot.slane %v4268, 2
        %v4282 = vsel %vm1105, %v4280, %v4281
        %v4283 = vrot.slane %v4269, 2
        %v4284 = vsel %vm1105, %v4278, %v4283
        %v4285 = vrot.slane %v4270, 2
        %v4286 = vsel %vm1105, %v4281, %v4285
        %4287 = vrot.lane.b32.xlu0 %v4279, 32
        %v4288 = vpop.permute.xlu0 %4287
        %4289 = vrot.lane.b32.xlu0 %v4282, 32
        %v4290 = vpop.permute.xlu0 %4289
        %4291 = vrot.lane.b32.xlu0 %v4284, 32
        %v4292 = vpop.permute.xlu0 %4291
        %4293 = vrot.lane.b32.xlu0 %v4286, 32
        %v4294 = vpop.permute.xlu0 %4293
        %v4295 = vsel %vm485, %v4288, %v4290
        %v4296 = vsel %vm485, %v4292, %v4294
        %v4299 = vadd.f32 %v4254, %v4295
        %v4300 = vadd.f32 %v4255, %v4296
        %v4301 = vld [vmem:[#allocation12 + $0x2f] sm:$0x1]
        %v4302 = vlaneseq
        %v4303 = vshrl.u32 %v4302, 7
        %v4304 = vsub.s32 0, %v4303
        %v4305 = vrot.slane %v4301, %v4304
        %4307 = vrot.lane.b32.xlu0 %v4305, 120
        %v4308 = vpop.permute.xlu0 %4307
        %v4310 = vmul.f32 %v4095, %v4308
        %v4311 = vmul.f32 %v4118, %v4308
        %v4312 = vmul.f32 %v4096, %v4308
        %v4313 = vmul.f32 %v4119, %v4308
        %v4314 = vmul.f32 %v4097, %v4308
        %v4315 = vmul.f32 %v4120, %v4308
        %v4322 = vrot.slane %v4310, 2
        %v4323 = vrot.slane %v4312, 2
        %v4324 = vsel %vm1105, %v4322, %v4323
        %v4325 = vrot.slane %v4311, 2
        %v4326 = vrot.slane %v4313, 2
        %v4327 = vsel %vm1105, %v4325, %v4326
        %v4328 = vrot.slane %v4314, 2
        %v4329 = vsel %vm1105, %v4323, %v4328
        %v4330 = vrot.slane %v4315, 2
        %v4331 = vsel %vm1105, %v4326, %v4330
        %4332 = vrot.lane.b32.xlu0 %v4324, 8
        %v4333 = vpop.permute.xlu0 %4332
        %4334 = vrot.lane.b32.xlu0 %v4327, 8
        %v4335 = vpop.permute.xlu0 %4334
        %4336 = vrot.lane.b32.xlu0 %v4329, 8
        %v4337 = vpop.permute.xlu0 %4336
        %4338 = vrot.lane.b32.xlu0 %v4331, 8
        %v4339 = vpop.permute.xlu0 %4338
        %v4340 = vsel %vm865, %v4333, %v4335
        %v4341 = vsel %vm865, %v4337, %v4339
        %v4344 = vadd.f32 %v4299, %v4340
        %v4345 = vadd.f32 %v4300, %v4341
        %v4346 = vld [vmem:[#allocation3 + $0x40] sm:$0xfc]
        %v4347 = vld [vmem:[#allocation3 + $0x58] sm:$0xff]
        %v4348 = vld [vmem:[#allocation3 + $0x70] sm:$0x3]
        %v4349 = vld [vmem:[#allocation12 + $0x30] sm:$0x1]
        %v4350 = vlaneseq
        %v4351 = vshrl.u32 %v4350, 7
        %v4352 = vsub.s32 0, %v4351
        %v4353 = vrot.slane %v4349, %v4352
        %4355 = vrot.lane.b32.xlu0 %v4353, 16
        %v4356 = vpop.permute.xlu0 %4355
        %v4358 = vmul.f32 %v4118, %v4356
        %v4359 = vmul.f32 %v4346, %v4356
        %v4360 = vmul.f32 %v4119, %v4356
        %v4361 = vmul.f32 %v4347, %v4356
        %v4362 = vmul.f32 %v4120, %v4356
        %v4363 = vmul.f32 %v4348, %v4356
        %v4370 = vrot.slane %v4358, 2
        %v4371 = vrot.slane %v4360, 2
        %v4372 = vsel %vm1105, %v4370, %v4371
        %v4373 = vrot.slane %v4359, 2
        %v4374 = vrot.slane %v4361, 2
        %v4375 = vsel %vm1105, %v4373, %v4374
        %v4376 = vrot.slane %v4362, 2
        %v4377 = vsel %vm1105, %v4371, %v4376
        %v4378 = vrot.slane %v4363, 2
        %v4379 = vsel %vm1105, %v4374, %v4378
        %4380 = vrot.lane.b32.xlu0 %v4372, 112
        %v4381 = vpop.permute.xlu0 %4380
        %4382 = vrot.lane.b32.xlu0 %v4375, 112
        %v4383 = vpop.permute.xlu0 %4382
        %4384 = vrot.lane.b32.xlu0 %v4377, 112
        %v4385 = vpop.permute.xlu0 %4384
        %4386 = vrot.lane.b32.xlu0 %v4379, 112
        %v4387 = vpop.permute.xlu0 %4386
        %v4388 = vsel %vm985, %v4381, %v4383
        %v4389 = vsel %vm985, %v4385, %v4387
        %v4392 = vadd.f32 %v4344, %v4388
        %v4393 = vadd.f32 %v4345, %v4389
        %v4394 = vld [vmem:[%s4] sm:$0x1]
        %v4396 = vlaneseq
        %v4397 = vshrl.u32 %v4396, 7
        %v4398 = vsub.s32 0, %v4397
        %v4399 = vrot.slane %v4394, %v4398
        %v4401 = vadd.f32 %v4392, %v4399
        %v4402 = vadd.f32 %v4393, %v4399
        %v4403 = vld [vmem:[#allocation2] sm:$0xf8]
        %v4404 = vld [vmem:[#allocation2 + $0x8] sm:$0xf8]
        %v4405 = vld [vmem:[#allocation2 + $0x10] sm:$0xff]
        %v4406 = vld [vmem:[#allocation2 + $0x18] sm:$0xff]
        %v4407 = vld [vmem:[#allocation2 + $0x20] sm:$0x7]
        %v4408 = vld [vmem:[#allocation2 + $0x28] sm:$0x7]
        %v4409 = vld [vmem:[%s5] sm:$0x1]
        %v4410 = vlaneseq
        %v4411 = vshrl.u32 %v4410, 7
        %v4412 = vsub.s32 0, %v4411
        %v4413 = vrot.slane %v4409, %v4412
        %4415 = vrot.lane.b32.xlu0 %v4413, 24
        %v4416 = vpop.permute.xlu0 %4415
        %v4418 = vmul.f32 %v4403, %v4416
        %v4419 = vmul.f32 %v4404, %v4416
        %v4420 = vmul.f32 %v4405, %v4416
        %v4421 = vmul.f32 %v4406, %v4416
        %v4422 = vmul.f32 %v4407, %v4416
        %v4423 = vmul.f32 %v4408, %v4416
        %v4424 = vadd.f32 %v4418, 0.0
        %v4425 = vadd.f32 %v4419, 0.0
        %v4426 = vadd.f32 %v4420, 0.0
        %v4427 = vadd.f32 %v4421, 0.0
        %v4428 = vadd.f32 %v4422, 0.0
        %v4429 = vadd.f32 %v4423, 0.0
        %v4430 = vld [vmem:[%s5 + $0x1] sm:$0x1]
        %v4431 = vlaneseq
        %v4432 = vshrl.u32 %v4431, 7
        %v4433 = vsub.s32 0, %v4432
        %v4434 = vrot.slane %v4430, %v4433
        %4436 = vrot.lane.b32.xlu0 %v4434, 32
        %v4437 = vpop.permute.xlu0 %4436
        %v4439 = vmul.f32 %v4403, %v4437
        %v4440 = vmul.f32 %v4404, %v4437
        %v4441 = vmul.f32 %v4405, %v4437
        %v4442 = vmul.f32 %v4406, %v4437
        %v4443 = vmul.f32 %v4407, %v4437
        %v4444 = vmul.f32 %v4408, %v4437
        %4451 = vrot.lane.b32.xlu0 %v4439, 120
        %v4452 = vpop.permute.xlu0 %4451
        %4453 = vrot.lane.b32.xlu0 %v4440, 120
        %v4454 = vpop.permute.xlu0 %4453
        %4455 = vrot.lane.b32.xlu0 %v4441, 120
        %v4456 = vpop.permute.xlu0 %4455
        %4457 = vrot.lane.b32.xlu0 %v4442, 120
        %v4458 = vpop.permute.xlu0 %4457
        %4459 = vrot.lane.b32.xlu0 %v4443, 120
        %v4460 = vpop.permute.xlu0 %4459
        %4461 = vrot.lane.b32.xlu0 %v4444, 120
        %v4462 = vpop.permute.xlu0 %4461
        %v4463 = vsel %vm960, %v4452, %v4454
        %v4464 = vsel %vm960, %v4456, %v4458
        %v4465 = vsel %vm960, %v4460, %v4462
        %v4472 = vadd.f32 %v4424, %v4463
        %v4473 = vadd.f32 %v4425, %v4454
        %v4474 = vadd.f32 %v4426, %v4464
        %v4475 = vadd.f32 %v4427, %v4458
        %v4476 = vadd.f32 %v4428, %v4465
        %v4477 = vadd.f32 %v4429, %v4462
        %v4478 = vld [vmem:[%s5 + $0x2] sm:$0x1]
        %v4479 = vlaneseq
        %v4480 = vshrl.u32 %v4479, 7
        %v4481 = vsub.s32 0, %v4480
        %v4482 = vrot.slane %v4478, %v4481
        %4484 = vrot.lane.b32.xlu0 %v4482, 40
        %v4485 = vpop.permute.xlu0 %4484
        %v4487 = vmul.f32 %v4403, %v4485
        %v4488 = vmul.f32 %v4404, %v4485
        %v4489 = vmul.f32 %v4405, %v4485
        %v4490 = vmul.f32 %v4406, %v4485
        %v4491 = vmul.f32 %v4407, %v4485
        %v4492 = vmul.f32 %v4408, %v4485
        %4499 = vrot.lane.b32.xlu0 %v4487, 112
        %v4500 = vpop.permute.xlu0 %4499
        %4501 = vrot.lane.b32.xlu0 %v4488, 112
        %v4502 = vpop.permute.xlu0 %4501
        %4503 = vrot.lane.b32.xlu0 %v4489, 112
        %v4504 = vpop.permute.xlu0 %4503
        %4505 = vrot.lane.b32.xlu0 %v4490, 112
        %v4506 = vpop.permute.xlu0 %4505
        %4507 = vrot.lane.b32.xlu0 %v4491, 112
        %v4508 = vpop.permute.xlu0 %4507
        %4509 = vrot.lane.b32.xlu0 %v4492, 112
        %v4510 = vpop.permute.xlu0 %4509
        %v4511 = vsel %vm985, %v4500, %v4502
        %v4512 = vsel %vm985, %v4504, %v4506
        %v4513 = vsel %vm985, %v4508, %v4510
        %v4520 = vadd.f32 %v4472, %v4511
        %v4521 = vadd.f32 %v4473, %v4502
        %v4522 = vadd.f32 %v4474, %v4512
        %v4523 = vadd.f32 %v4475, %v4506
        %v4524 = vadd.f32 %v4476, %v4513
        %v4525 = vadd.f32 %v4477, %v4510
        %v4526 = vld [vmem:[#allocation2] sm:$0xf0]
        %v4527 = vld [vmem:[#allocation2 + $0x8] sm:$0xf0]
        %v4528 = vld [vmem:[#allocation2 + $0x20] sm:$0xf]
        %v4529 = vld [vmem:[#allocation2 + $0x28] sm:$0xf]
        %v4530 = vld [vmem:[%s5 + $0x3] sm:$0x1]
        %v4531 = vlaneseq
        %v4532 = vshrl.u32 %v4531, 7
        %v4533 = vsub.s32 0, %v4532
        %v4534 = vrot.slane %v4530, %v4533
        %4536 = vrot.lane.b32.xlu0 %v4534, 24
        %v4537 = vpop.permute.xlu0 %4536
        %v4539 = vmul.f32 %v4526, %v4537
        %v4540 = vmul.f32 %v4527, %v4537
        %v4541 = vmul.f32 %v4405, %v4537
        %v4542 = vmul.f32 %v4406, %v4537
        %v4543 = vmul.f32 %v4528, %v4537
        %v4544 = vmul.f32 %v4529, %v4537
        %v4551 = vrot.slane %v4539, 1
        %v4552 = vrot.slane %v4541, 1
        %v4553 = vsel %vm1003, %v4551, %v4552
        %v4554 = vrot.slane %v4540, 1
        %v4555 = vrot.slane %v4542, 1
        %v4556 = vsel %vm1003, %v4554, %v4555
        %v4557 = vrot.slane %v4543, 1
        %v4558 = vsel %vm1003, %v4552, %v4557
        %v4559 = vrot.slane %v4544, 1
        %v4560 = vsel %vm1003, %v4555, %v4559
        %v4567 = vadd.f32 %v4520, %v4553
        %v4568 = vadd.f32 %v4521, %v4556
        %v4569 = vadd.f32 %v4522, %v4558
        %v4570 = vadd.f32 %v4523, %v4560
        %v4571 = vadd.f32 %v4524, %v4557
        %v4572 = vadd.f32 %v4525, %v4559
        %v4573 = vld [vmem:[%s5 + $0x4] sm:$0x1]
        %v4574 = vlaneseq
        %v4575 = vshrl.u32 %v4574, 7
        %v4576 = vsub.s32 0, %v4575
        %v4577 = vrot.slane %v4573, %v4576
        %4579 = vrot.lane.b32.xlu0 %v4577, 32
        %v4580 = vpop.permute.xlu0 %4579
        %v4582 = vmul.f32 %v4526, %v4580
        %v4583 = vmul.f32 %v4527, %v4580
        %v4584 = vmul.f32 %v4405, %v4580
        %v4585 = vmul.f32 %v4406, %v4580
        %v4586 = vmul.f32 %v4528, %v4580
        %v4587 = vmul.f32 %v4529, %v4580
        %v4594 = vrot.slane %v4582, 1
        %v4595 = vrot.slane %v4584, 1
        %v4596 = vsel %vm1003, %v4594, %v4595
        %v4597 = vrot.slane %v4583, 1
        %v4598 = vrot.slane %v4585, 1
        %v4599 = vsel %vm1003, %v4597, %v4598
        %v4600 = vrot.slane %v4586, 1
        %v4601 = vsel %vm1003, %v4595, %v4600
        %v4602 = vrot.slane %v4587, 1
        %v4603 = vsel %vm1003, %v4598, %v4602
        %4604 = vrot.lane.b32.xlu0 %v4596, 120
        %v4605 = vpop.permute.xlu0 %4604
        %4606 = vrot.lane.b32.xlu0 %v4599, 120
        %v4607 = vpop.permute.xlu0 %4606
        %4608 = vrot.lane.b32.xlu0 %v4601, 120
        %v4609 = vpop.permute.xlu0 %4608
        %4610 = vrot.lane.b32.xlu0 %v4603, 120
        %v4611 = vpop.permute.xlu0 %4610
        %4612 = vrot.lane.b32.xlu0 %v4600, 120
        %v4613 = vpop.permute.xlu0 %4612
        %4614 = vrot.lane.b32.xlu0 %v4602, 120
        %v4615 = vpop.permute.xlu0 %4614
        %v4616 = vsel %vm960, %v4605, %v4607
        %v4617 = vsel %vm960, %v4609, %v4611
        %v4618 = vsel %vm960, %v4613, %v4615
        %v4625 = vadd.f32 %v4567, %v4616
        %v4626 = vadd.f32 %v4568, %v4607
        %v4627 = vadd.f32 %v4569, %v4617
        %v4628 = vadd.f32 %v4570, %v4611
        %v4629 = vadd.f32 %v4571, %v4618
        %v4630 = vadd.f32 %v4572, %v4615
        %v4631 = vld [vmem:[%s5 + $0x5] sm:$0x1]
        %v4632 = vlaneseq
        %v4633 = vshrl.u32 %v4632, 7
        %v4634 = vsub.s32 0, %v4633
        %v4635 = vrot.slane %v4631, %v4634
        %4637 = vrot.lane.b32.xlu0 %v4635, 40
        %v4638 = vpop.permute.xlu0 %4637
        %v4640 = vmul.f32 %v4526, %v4638
        %v4641 = vmul.f32 %v4527, %v4638
        %v4642 = vmul.f32 %v4405, %v4638
        %v4643 = vmul.f32 %v4406, %v4638
        %v4644 = vmul.f32 %v4528, %v4638
        %v4645 = vmul.f32 %v4529, %v4638
        %v4652 = vrot.slane %v4640, 1
        %v4653 = vrot.slane %v4642, 1
        %v4654 = vsel %vm1003, %v4652, %v4653
        %v4655 = vrot.slane %v4641, 1
        %v4656 = vrot.slane %v4643, 1
        %v4657 = vsel %vm1003, %v4655, %v4656
        %v4658 = vrot.slane %v4644, 1
        %v4659 = vsel %vm1003, %v4653, %v4658
        %v4660 = vrot.slane %v4645, 1
        %v4661 = vsel %vm1003, %v4656, %v4660
        %4662 = vrot.lane.b32.xlu0 %v4654, 112
        %v4663 = vpop.permute.xlu0 %4662
        %4664 = vrot.lane.b32.xlu0 %v4657, 112
        %v4665 = vpop.permute.xlu0 %4664
        %4666 = vrot.lane.b32.xlu0 %v4659, 112
        %v4667 = vpop.permute.xlu0 %4666
        %4668 = vrot.lane.b32.xlu0 %v4661, 112
        %v4669 = vpop.permute.xlu0 %4668
        %4670 = vrot.lane.b32.xlu0 %v4658, 112
        %v4671 = vpop.permute.xlu0 %4670
        %4672 = vrot.lane.b32.xlu0 %v4660, 112
        %v4673 = vpop.permute.xlu0 %4672
        %v4674 = vsel %vm985, %v4663, %v4665
        %v4675 = vsel %vm985, %v4667, %v4669
        %v4676 = vsel %vm985, %v4671, %v4673
        %v4683 = vadd.f32 %v4625, %v4674
        %v4684 = vadd.f32 %v4626, %v4665
        %v4685 = vadd.f32 %v4627, %v4675
        %v4686 = vadd.f32 %v4628, %v4669
        %v4687 = vadd.f32 %v4629, %v4676
        %v4688 = vadd.f32 %v4630, %v4673
        %v4689 = vld [vmem:[#allocation2] sm:$0xe0]
        %v4690 = vld [vmem:[#allocation2 + $0x8] sm:$0xe0]
        %v4691 = vld [vmem:[#allocation2 + $0x20] sm:$0x1f]
        %v4692 = vld [vmem:[#allocation2 + $0x28] sm:$0x1f]
        %v4693 = vld [vmem:[%s5 + $0x6] sm:$0x1]
        %v4694 = vlaneseq
        %v4695 = vshrl.u32 %v4694, 7
        %v4696 = vsub.s32 0, %v4695
        %v4697 = vrot.slane %v4693, %v4696
        %4699 = vrot.lane.b32.xlu0 %v4697, 24
        %v4700 = vpop.permute.xlu0 %4699
        %v4702 = vmul.f32 %v4689, %v4700
        %v4703 = vmul.f32 %v4690, %v4700
        %v4704 = vmul.f32 %v4405, %v4700
        %v4705 = vmul.f32 %v4406, %v4700
        %v4706 = vmul.f32 %v4691, %v4700
        %v4707 = vmul.f32 %v4692, %v4700
        %v4714 = vrot.slane %v4702, 2
        %v4715 = vrot.slane %v4704, 2
        %v4716 = vsel %vm1105, %v4714, %v4715
        %v4717 = vrot.slane %v4703, 2
        %v4718 = vrot.slane %v4705, 2
        %v4719 = vsel %vm1105, %v4717, %v4718
        %v4720 = vrot.slane %v4706, 2
        %v4721 = vsel %vm1105, %v4715, %v4720
        %v4722 = vrot.slane %v4707, 2
        %v4723 = vsel %vm1105, %v4718, %v4722
        %v4730 = vadd.f32 %v4683, %v4716
        %v4731 = vadd.f32 %v4684, %v4719
        %v4732 = vadd.f32 %v4685, %v4721
        %v4733 = vadd.f32 %v4686, %v4723
        %v4734 = vadd.f32 %v4687, %v4720
        %v4735 = vadd.f32 %v4688, %v4722
        %v4736 = vld [vmem:[%s5 + $0x7] sm:$0x1]
        %v4737 = vlaneseq
        %v4738 = vshrl.u32 %v4737, 7
        %v4739 = vsub.s32 0, %v4738
        %v4740 = vrot.slane %v4736, %v4739
        %4742 = vrot.lane.b32.xlu0 %v4740, 32
        %v4743 = vpop.permute.xlu0 %4742
        %v4745 = vmul.f32 %v4689, %v4743
        %v4746 = vmul.f32 %v4690, %v4743
        %v4747 = vmul.f32 %v4405, %v4743
        %v4748 = vmul.f32 %v4406, %v4743
        %v4749 = vmul.f32 %v4691, %v4743
        %v4750 = vmul.f32 %v4692, %v4743
        %v4757 = vrot.slane %v4745, 2
        %v4758 = vrot.slane %v4747, 2
        %v4759 = vsel %vm1105, %v4757, %v4758
        %v4760 = vrot.slane %v4746, 2
        %v4761 = vrot.slane %v4748, 2
        %v4762 = vsel %vm1105, %v4760, %v4761
        %v4763 = vrot.slane %v4749, 2
        %v4764 = vsel %vm1105, %v4758, %v4763
        %v4765 = vrot.slane %v4750, 2
        %v4766 = vsel %vm1105, %v4761, %v4765
        %4767 = vrot.lane.b32.xlu0 %v4759, 120
        %v4768 = vpop.permute.xlu0 %4767
        %4769 = vrot.lane.b32.xlu0 %v4762, 120
        %v4770 = vpop.permute.xlu0 %4769
        %4771 = vrot.lane.b32.xlu0 %v4764, 120
        %v4772 = vpop.permute.xlu0 %4771
        %4773 = vrot.lane.b32.xlu0 %v4766, 120
        %v4774 = vpop.permute.xlu0 %4773
        %4775 = vrot.lane.b32.xlu0 %v4763, 120
        %v4776 = vpop.permute.xlu0 %4775
        %4777 = vrot.lane.b32.xlu0 %v4765, 120
        %v4778 = vpop.permute.xlu0 %4777
        %v4779 = vsel %vm960, %v4768, %v4770
        %v4780 = vsel %vm960, %v4772, %v4774
        %v4781 = vsel %vm960, %v4776, %v4778
        %v4788 = vadd.f32 %v4730, %v4779
        %v4789 = vadd.f32 %v4731, %v4770
        %v4790 = vadd.f32 %v4732, %v4780
        %v4791 = vadd.f32 %v4733, %v4774
        %v4792 = vadd.f32 %v4734, %v4781
        %v4793 = vadd.f32 %v4735, %v4778
        %v4794 = vld [vmem:[%s5 + $0x8] sm:$0x1]
        %v4795 = vlaneseq
        %v4796 = vshrl.u32 %v4795, 7
        %v4797 = vsub.s32 0, %v4796
        %v4798 = vrot.slane %v4794, %v4797
        %4800 = vrot.lane.b32.xlu0 %v4798, 40
        %v4801 = vpop.permute.xlu0 %4800
        %v4803 = vmul.f32 %v4689, %v4801
        %v4804 = vmul.f32 %v4690, %v4801
        %v4805 = vmul.f32 %v4405, %v4801
        %v4806 = vmul.f32 %v4406, %v4801
        %v4807 = vmul.f32 %v4691, %v4801
        %v4808 = vmul.f32 %v4692, %v4801
        %v4815 = vrot.slane %v4803, 2
        %v4816 = vrot.slane %v4805, 2
        %v4817 = vsel %vm1105, %v4815, %v4816
        %v4818 = vrot.slane %v4804, 2
        %v4819 = vrot.slane %v4806, 2
        %v4820 = vsel %vm1105, %v4818, %v4819
        %v4821 = vrot.slane %v4807, 2
        %v4822 = vsel %vm1105, %v4816, %v4821
        %v4823 = vrot.slane %v4808, 2
        %v4824 = vsel %vm1105, %v4819, %v4823
        %4825 = vrot.lane.b32.xlu0 %v4817, 112
        %v4826 = vpop.permute.xlu0 %4825
        %4827 = vrot.lane.b32.xlu0 %v4820, 112
        %v4828 = vpop.permute.xlu0 %4827
        %4829 = vrot.lane.b32.xlu0 %v4822, 112
        %v4830 = vpop.permute.xlu0 %4829
        %4831 = vrot.lane.b32.xlu0 %v4824, 112
        %v4832 = vpop.permute.xlu0 %4831
        %4833 = vrot.lane.b32.xlu0 %v4821, 112
        %v4834 = vpop.permute.xlu0 %4833
        %4835 = vrot.lane.b32.xlu0 %v4823, 112
        %v4836 = vpop.permute.xlu0 %4835
        %v4837 = vsel %vm985, %v4826, %v4828
        %v4838 = vsel %vm985, %v4830, %v4832
        %v4839 = vsel %vm985, %v4834, %v4836
        %v4846 = vadd.f32 %v4788, %v4837
        %v4847 = vadd.f32 %v4789, %v4828
        %v4848 = vadd.f32 %v4790, %v4838
        %v4849 = vadd.f32 %v4791, %v4832
        %v4850 = vadd.f32 %v4792, %v4839
        %v4851 = vadd.f32 %v4793, %v4836
        %v4852 = vld [vmem:[%s6] sm:$0x1]
        %v4854 = vlaneseq
        %v4855 = vshrl.u32 %v4854, 7
        %v4856 = vsub.s32 0, %v4855
        %v4857 = vrot.slane %v4852, %v4856
        %4858 = vrot.lane.b32.xlu0 %v4857, 24
        %v4859 = vpop.permute.xlu0 %4858
        %v4861 = vadd.f32 %v4846, %v4859
        %v4862 = vadd.f32 %v4847, %v4859
        %v4863 = vadd.f32 %v4848, %v4859
        %v4864 = vadd.f32 %v4849, %v4859
        %v4865 = vadd.f32 %v4850, %v4859
        %v4866 = vadd.f32 %v4851, %v4859
        %v4867 = vmul.f32 %v4401, %v1458
        %v4868 = vmul.f32 %v4402, %v1459
        %v4875 = vrot.slane %v4861, 3
        %v4876 = vrot.slane %v4863, 3
        %v4877 = vsel %vm2624, %v4875, %v4876
        %v4878 = vrot.slane %v4862, 3
        %v4879 = vrot.slane %v4864, 3
        %v4880 = vsel %vm2624, %v4878, %v4879
        %v4881 = vrot.slane %v4865, 3
        %v4882 = vsel %vm2624, %v4876, %v4881
        %v4883 = vrot.slane %v4866, 3
        %v4884 = vsel %vm2624, %v4879, %v4883
        %4885 = vrot.lane.b32.xlu0 %v4877, 104
        %v4886 = vpop.permute.xlu0 %4885
        %4887 = vrot.lane.b32.xlu0 %v4880, 104
        %v4888 = vpop.permute.xlu0 %4887
        %4889 = vrot.lane.b32.xlu0 %v4882, 104
        %v4890 = vpop.permute.xlu0 %4889
        %4891 = vrot.lane.b32.xlu0 %v4884, 104
        %v4892 = vpop.permute.xlu0 %4891
        %v4893 = vsel %vm2446, %v4886, %v4888
        %v4894 = vsel %vm2446, %v4890, %v4892
        %v4897 = vadd.f32 %v4867, %v4893
        %v4898 = vadd.f32 %v4868, %v4894
        %v4899 = vadd.f32 %v4897, %v4898
        %v4900 = vrot.slane %v4899, 4
        %v4901 = vadd.f32 %v4899, %v4900
        %v4902 = vrot.slane %v4901, 2
        %v4903 = vadd.f32 %v4901, %v4902
        %v4904 = vrot.slane %v4903, 1
        %v4905 = vadd.f32 %v4903, %v4904
        %4906 = vrot.lane.b32.xlu0 %v4905, 8
        %v4907 = vpop.permute.xlu0 %4906
        %v4908 = vadd.f32 %v4905, %v4907
        %4909 = vrot.lane.b32.xlu0 %v4908, 16
        %v4910 = vpop.permute.xlu0 %4909
        %v4911 = vadd.f32 %v4908, %v4910
        %4912 = vrot.lane.b32.xlu0 %v4911, 32
        %v4913 = vpop.permute.xlu0 %4912
        %v4914 = vadd.f32 %v4911, %v4913
        %4915 = vrot.lane.b32.xlu0 %v4914, 64
        %v4916 = vpop.permute.xlu0 %4915
        %v4917 = vadd.f32 %v4914, %v4916
        %v4918 = vmul.f32 %v4917, 0.00390625
        %v4919 = vld [vmem:[%s8] sm:$0x1]
        %v4920 = vlaneseq
        %v4921 = vshrl.u32 %v4920, 7
        %v4922 = vsub.s32 0, %v4921
        %v4923 = vrot.slane %v4918, %v4922
        %v4924 = vsub.f32 %v4897, %v4923
        %v4925 = vsub.f32 %v4898, %v4923
        %v4927 = vlaneseq
        %v4928 = vshrl.u32 %v4927, 7
        %v4929 = vsub.s32 0, %v4928
        %v4930 = vrot.slane %v4919, %v4929
        %v4932 = vmul.f32 %v4930, %v4924
        %v4933 = vmul.f32 %v4930, %v4925
        %v4934 = vmul.f32 %v4932, %v4897
        %v4935 = vmul.f32 %v4933, %v4898
        %v4936 = vld [vmem:[%s9] sm:$0x1]
        %v4938 = vlaneseq
        %v4939 = vshrl.u32 %v4938, 7
        %v4940 = vsub.s32 0, %v4939
        %v4941 = vrot.slane %v4936, %v4940
        %v4943 = vmul.f32 %v4941, %v4897
        %v4944 = vmul.f32 %v4941, %v4898
        %v4945 = vadd.f32 %v4934, %v4943
        %v4946 = vadd.f32 %v4935, %v4944
        %v4947 = vld [vmem:[%s10] sm:$0x1]
        %v4949 = vlaneseq
        %v4950 = vshrl.u32 %v4949, 7
        %v4951 = vsub.s32 0, %v4950
        %v4952 = vrot.slane %v4947, %v4951
        %v4954 = vmul.f32 %v4952, %v4945
        %v4955 = vmul.f32 %v4952, %v4946
        %v4956 = vld [vmem:[%s11] sm:$0x1]
        %v4958 = vlaneseq
        %v4959 = vshrl.u32 %v4958, 7
        %v4960 = vsub.s32 0, %v4959
        %v4961 = vrot.slane %v4956, %v4960
        %v4963 = vmul.f32 %v4961, %v475
        %v4964 = vmul.f32 %v4961, %v476
        %v4965 = vadd.f32 %v4954, %v4963
        %v4966 = vadd.f32 %v4955, %v4964
        %4967 = vst [vmem:[%s474] sm:$0xff] %v4965
        %4968 = vst [vmem:[%s474 + $0x8] sm:$0xff] %v4966
        %s4969 = sand.u32 %s296, 1
        %s4970 = scalar_lea.sflag [#allocation8], %s4969
        %s4971 = sand.u32 %s296, 1
        %s4972 = smul.addr %s4971, 16
        %s4973 = scalar_lea.vmem [#allocation14], %s4972
        // Predicated region
        $region85: #{tpu_custom_call.1} parent=67 // pred_check
          %p4974 = pneg %p306
        $region86: #{tpu_custom_call.1} parent=67 // pred_check_branch
          %4976 = sbr.rel (%p4974) target = $region88
        $region87: #{tpu_custom_call.1} parent=67 // pred_region
          %s4978 = ssub.s32 256, 256
          %4979 = vsyncadd %s4970, %s4978
          %s4980 = smul.addr %s31, 2
          %s4981 = smul.addr %s4980, 128
          %s4982 = scalar_lea.hbm %s12, %s4981
          %s4983 = sshll.u32 %s4973, 4
          %s4984 = int_to_ptr.vmem [resolvable:$true] %s4983
          %4989 = dma.vmem_to_hbm [thread:$0]  %s4984, 256, %s4982, %s4970, 128, 128, 8
        $region88: #{tpu_custom_call.1} parent=67 // pred_fallthru
          _
      $region68: #{tpu_custom_call.1} parent=5 // pred_fallthru
        _
      %p4990 = scmp.le.s32.totalorder 2, %s26
      // Predicated region
      $region89: #{tpu_custom_call.1} parent=5 // pred_check
        %p4991 = pneg %p4990
      $region90: #{tpu_custom_call.1} parent=5 // pred_check_branch
        %4993 = sbr.rel (%p4991) target = $region92
      $region91: #{tpu_custom_call.1} parent=5 // pred_region
        %s4994 = ssub.s32 %s26, 2
        // Predicated region
        $region93: #{tpu_custom_call.1} parent=91 // pred_check
          %p4995 = pneg %p312
        $region94: #{tpu_custom_call.1} parent=91 // pred_check_branch
          %4997 = sbr.rel (%p4995) target = $region96
        $region95: #{tpu_custom_call.1} parent=91 // pred_region
          %s4998 = sand.u32 %s297, 1
          %s4999 = scalar_lea.sflag [#allocation8], %s4998
          %s5000 = sand.u32 %s297, 1
          %s5001 = smul.addr %s5000, 16
          %s5002 = scalar_lea.vmem [#allocation14], %s5001
          %5003 = dma.done %s4999, 256
        $region96: #{tpu_custom_call.1} parent=91 // pred_fallthru
          _
      $region92: #{tpu_custom_call.1} parent=5 // pred_fallthru
        _
    $region6: #{tpu_custom_call.1} parent=1 // loop_footer
      %s30 = sadd.s32 1, %s26
    $region7: #{tpu_custom_call.1} parent=1 // loop_footer_branch
      %25 = sbr.rel target = $region3
    $region8: #{tpu_custom_call.1} parent=1 // loop_exit
      _
    %5004 = vsyncpa [#allocation7], 1
    %s5005 = scalar_lea.sflag [#allocation7], 1
    %5006 = vsyncpa %s5005, 1
    %5007 = vsyncpa [#allocation11], 1
    %5008 = vsyncpa [#allocation8], 1
    %s5009 = scalar_lea.sflag [#allocation8], 1
    %5010 = vsyncpa %s5009, 1
    %5011 = vsyncpa [#allocation9], 1
    %s5012 = scalar_lea.sflag [#allocation9], 1
    %5013 = vsyncpa %s5012, 1

</llo_original>
